<compile_context>
chip_gen: v5e
topology: v5e:2x2
jax: 0.10.0
libtpu: 0.0.40
codegen_flags: <defaults>
</compile_context>

<pallas_src>
import functools

import jax
import jax.numpy as jnp
from jax.experimental import pallas as pl
from jax.experimental.pallas import tpu as pltpu

EPS = 1e-5
LANE = 128
MAX_TILE_N = 1024                # raised from 512 (v6e/v7x guidance)
VMEM_LIMIT = 32 * 1024 * 1024    # safe scoped-VMEM cap on v5e/v6e/v7x

_VMEM = pl.BlockSpec(memory_space=pltpu.MemorySpace.VMEM)


def _round_up(x, m):
    return (x + m - 1) // m * m


def _pick_tile(n):
    """Tile size (multiple of 128, <= MAX_TILE_N) and padded N (multiple of tile)."""
    npad = _round_up(n, LANE)
    tile = min(MAX_TILE_N, npad)
    npad = _round_up(npad, tile)
    return tile, npad


# ---------------------------------------------------------------------------
# Kernel 1: head = (folded embedding + concat + Linear) + BatchNorm1d + ReLU
# ---------------------------------------------------------------------------
def head_kernel(x_ref, w_ref, b_ref, g_ref, be_ref, o_ref):
    x = x_ref[...]                       # (B, K) f32, K = latent + num_mode (tiny)
    w = w_ref[...]                       # (K, P) f32
    # Exact f32 contraction on the VPU: K is tiny and BatchNorm1d over a tiny
    # batch would amplify any matmul-precision discrepancy.
    y = b_ref[...]
    for k in range(x.shape[1]):
        y = y + x[:, k:k + 1] * w[k:k + 1, :]
    mean = jnp.mean(y, axis=0, keepdims=True)
    var = jnp.mean((y - mean) ** 2, axis=0, keepdims=True)   # biased (train)
    y = (y - mean) * jax.lax.rsqrt(var + EPS) * g_ref[...] + be_ref[...]
    o_ref[...] = jnp.maximum(y, 0.0)


def head_pallas(x, w, b, g, be):
    # TODO(synk): for large P, tile over P / fold into the first conv kernel.
    B, P = x.shape[0], w.shape[1]
    return pl.pallas_call(
        head_kernel,
        out_shape=jax.ShapeDtypeStruct((B, P), jnp.float32),
        in_specs=[_VMEM] * 5,
        out_specs=_VMEM,
        compiler_params=pltpu.CompilerParams(vmem_limit_bytes=VMEM_LIMIT),
    )(x, w, b, g, be)


# ---------------------------------------------------------------------------
# Kernel 2: fused conv GEMM + BatchNorm(train) + residual + activation.
#   grid = (2, num_tiles):
#     pass 0: GEMM into VMEM-resident y scratch + per-channel sum/sumsq
#     pass 1: normalize + residual + activation, lane-dense output tiles
#   Rows of the GEMM are phase-major (pg phase groups per output channel);
#   pg=1 for ordinary 3x3 convs, pg=4 for the phase-fused ConvTranspose.
# ---------------------------------------------------------------------------
def _make_fused_conv_kernel(tile_n, num_tiles, n_real, cout, pg, inv_count,
                            use_residual, act, need_mask):
    def kernel(*refs):
        if use_residual:
            x_ref, w_ref, b_ref, g_ref, be_ref, r_ref, o_ref, y_scr, s_scr, q_scr = refs
        else:
            x_ref, w_ref, b_ref, g_ref, be_ref, o_ref, y_scr, s_scr, q_scr = refs
            r_ref = None
        p = pl.program_id(0)
        t = pl.program_id(1)
        off = pl.multiple_of(t * tile_n, tile_n)

        @pl.when(p == 0)
        def _pass0():
            y = jnp.dot(w_ref[...], x_ref[...],
                        preferred_element_type=jnp.float32) + b_ref[...]
            y_scr[:, pl.ds(off, tile_n)] = y

            @pl.when(t == 0)
            def _():
                s_scr[...] = jnp.zeros_like(s_scr)
                q_scr[...] = jnp.zeros_like(q_scr)

            def acc(yv):
                s_p = jnp.zeros((cout, 1), jnp.float32)
                q_p = jnp.zeros((cout, 1), jnp.float32)
                for ph in range(pg):                 # static unroll, reduce phases
                    blk = yv[ph * cout:(ph + 1) * cout, :]
                    s_p = s_p + jnp.sum(blk, axis=1, keepdims=True)
                    q_p = q_p + jnp.sum(blk * blk, axis=1, keepdims=True)
                s_scr[...] += s_p
                q_scr[...] += q_p

            if need_mask:
                # Only the last tile contains zero-padded pixel columns.
                @pl.when(t == num_tiles - 1)
                def _():
                    col = jax.lax.broadcasted_iota(jnp.int32, y.shape, 1) + t * tile_n
                    acc(jnp.where(col < n_real, y, 0.0))

                @pl.when(t != num_tiles - 1)
                def _():
                    acc(y)
            else:
                acc(y)

        @pl.when(p == 1)
        def _pass1():
            mean = s_scr[...] * inv_count
            var = jnp.maximum(q_scr[...] * inv_count - mean * mean, 0.0)
            scale = jax.lax.rsqrt(var + EPS) * g_ref[...]
            shift = be_ref[...] - mean * scale
            if pg == 1:
                y = y_scr[:, pl.ds(off, tile_n)] * scale + shift
                if use_residual:
                    y = y + r_ref[...]
                if act == "relu":
                    y = jnp.maximum(y, 0.0)
                o_ref[...] = y
            else:
                for ph in range(pg):
                    y = y_scr[pl.ds(ph * cout, cout), pl.ds(off, tile_n)]
                    y = y * scale + shift
                    if act == "relu":
                        y = jnp.maximum(y, 0.0)
                    o_ref[pl.ds(ph * cout, cout), :] = y
    return kernel


def fused_conv_bn_act_pallas(xcol, w_packed, b_col, g_col, be_col, *,
                             n_real, tile_n, pg, act, residual=None):
    kkc, npad = xcol.shape
    R = w_packed.shape[0]
    cout = R // pg
    num_tiles = npad // tile_n
    need_mask = (n_real != npad)
    inv_count = 1.0 / float(pg * n_real)
    if residual is not None:
        assert pg == 1

    kernel = _make_fused_conv_kernel(tile_n, num_tiles, n_real, cout, pg,
                                     inv_count, residual is not None, act,
                                     need_mask)
    in_specs = [
        pl.BlockSpec((kkc, tile_n), lambda p, t: (0, t * (1 - p))),   # xcol (bf16)
        pl.BlockSpec((R, kkc), lambda p, t: (0, 0)),                  # weights
        pl.BlockSpec((R, 1), lambda p, t: (0, 0)),                    # bias
        pl.BlockSpec((cout, 1), lambda p, t: (0, 0)),                 # gamma
        pl.BlockSpec((cout, 1), lambda p, t: (0, 0)),                 # beta
    ]
    args = [xcol, w_packed, b_col, g_col, be_col]
    if residual is not None:
        in_specs.append(pl.BlockSpec((cout, tile_n), lambda p, t: (0, t * p)))
        args.append(residual)

    return pl.pallas_call(
        kernel,
        grid=(2, num_tiles),
        in_specs=in_specs,
        out_specs=pl.BlockSpec((R, tile_n), lambda p, t: (0, t * p)),
        out_shape=jax.ShapeDtypeStruct((R, npad), jnp.float32),
        scratch_shapes=[pltpu.VMEM((R, npad), jnp.float32),   # resident pre-BN y
                        pltpu.VMEM((cout, 1), jnp.float32),   # sum
                        pltpu.VMEM((cout, 1), jnp.float32)],  # sum of squares
        compiler_params=pltpu.CompilerParams(
            dimension_semantics=("arbitrary", "arbitrary"),
            vmem_limit_bytes=VMEM_LIMIT),
    )(*args)


# ---------------------------------------------------------------------------
# Kernel 3: conv GEMM + activation (no BatchNorm) — final ConvTranspose+Sigmoid
# ---------------------------------------------------------------------------
def _make_conv_act_kernel(act):
    def kernel(x_ref, w_ref, b_ref, o_ref):
        y = jnp.dot(w_ref[...], x_ref[...],
                    preferred_element_type=jnp.float32) + b_ref[...]
        if act == "relu":
            y = jnp.maximum(y, 0.0)
        elif act == "sigmoid":
            y = jax.nn.sigmoid(y)
        o_ref[...] = y
    return kernel


def conv_act_pallas(xcol, w_packed, b_col, tile_n, act):
    kkc, npad = xcol.shape
    R = w_packed.shape[0]
    return pl.pallas_call(
        _make_conv_act_kernel(act),
        grid=(npad // tile_n,),
        in_specs=[pl.BlockSpec((kkc, tile_n), lambda t: (0, t)),
                  pl.BlockSpec((R, kkc), lambda t: (0, 0)),
                  pl.BlockSpec((R, 1), lambda t: (0, 0))],
        out_specs=pl.BlockSpec((R, tile_n), lambda t: (0, t)),
        out_shape=jax.ShapeDtypeStruct((R, npad), jnp.float32),
        compiler_params=pltpu.CompilerParams(
            dimension_semantics=("parallel",),
            vmem_limit_bytes=VMEM_LIMIT),
    )(xcol, w_packed, b_col)


# ---------------------------------------------------------------------------
# Wrapper-side layout glue: activations live in (C, B, H, W) between layers.
# ---------------------------------------------------------------------------
def _im2col_cbhw(x_cbhw, K, pad):
    # TODO(synk): build the columns in-kernel from a VMEM-resident input tile.
    C, B, H, W = x_cbhw.shape
    xp = jnp.pad(x_cbhw, ((0, 0), (0, 0), (pad, pad), (pad, pad)))
    Ho, Wo = H + 2 * pad - K + 1, W + 2 * pad - K + 1
    cols = [xp[:, :, ky:ky + Ho, kx:kx + Wo] for ky in range(K) for kx in range(K)]
    xc = jnp.stack(cols, axis=0).reshape(K * K * C, B * Ho * Wo)
    return xc, (B, Ho, Wo)


def _prep_xcol(x_cbhw):
    # bf16 cast BEFORE im2col / padding (halves the inflated glue traffic).
    xc, (B, Ho, Wo) = _im2col_cbhw(x_cbhw.astype(jnp.bfloat16), 3, 1)
    n = B * Ho * Wo
    tile_n, npad = _pick_tile(n)
    xc = jnp.pad(xc, ((0, 0), (0, npad - n)))
    return xc, n, npad, tile_n, (B, Ho, Wo)


def conv3x3_bn_act(x_cbhw, layer, residual_cbhw=None, act="relu"):
    xc, n, npad, tile_n, (B, Ho, Wo) = _prep_xcol(x_cbhw)
    res = None
    if residual_cbhw is not None:
        res = residual_cbhw.reshape(residual_cbhw.shape[0], n)
        res = jnp.pad(res, ((0, 0), (0, npad - n)))
    out = fused_conv_bn_act_pallas(xc, layer["w"], layer["b"], layer["g"],
                                   layer["be"], n_real=n, tile_n=tile_n,
                                   pg=1, act=act, residual=res)
    cout = layer["g"].shape[0]
    return out[:, :n].reshape(cout, B, Ho, Wo)


def _interleave_phases(out_cn, cout, B, H, W):
    # rows are phase-major: row = (py*2+px)*cout + co ; columns = (b, h, w)
    y = out_cn.reshape(2, 2, cout, B, H, W)
    y = y.transpose(2, 3, 4, 0, 5, 1)
    return y.reshape(cout, B, 2 * H, 2 * W)


def deconv_bn_relu(x_cbhw, layer):
    xc, n, npad, tile_n, (B, H, W) = _prep_xcol(x_cbhw)
    out = fused_conv_bn_act_pallas(xc, layer["w"], layer["b"], layer["g"],
                                   layer["be"], n_real=n, tile_n=tile_n,
                                   pg=4, act="relu")
    cout = layer["g"].shape[0]
    return _interleave_phases(out[:, :n], cout, B, H, W)


def deconv_sigmoid(x_cbhw, layer):
    xc, n, npad, tile_n, (B, H, W) = _prep_xcol(x_cbhw)
    out = conv_act_pallas(xc, layer["w"], layer["b"], tile_n, "sigmoid")
    cout = layer["b"].shape[0] // 4
    return _interleave_phases(out[:, :n], cout, B, H, W)


# ---------------------------------------------------------------------------
# One-time parameter packing (hoisted out of the forward pass).
# ---------------------------------------------------------------------------
def _pack_conv3x3(w_oihw, b, g, be):
    cout, cin = w_oihw.shape[:2]
    wp = w_oihw.transpose(0, 2, 3, 1).reshape(cout, 9 * cin).astype(jnp.bfloat16)
    return {"w": wp,
            "b": b.reshape(cout, 1).astype(jnp.float32),
            "g": g.reshape(cout, 1).astype(jnp.float32),
            "be": be.reshape(cout, 1).astype(jnp.float32)}


def _pack_deconv(w_pt, b, g=None, be=None):
    # ConvTranspose2d(4,2,1) via sub-pixel phases embedded in a shared 3x3
    # im2col: row = (py*2+px)*Cout + co, 4 of 9 taps populated per phase.
    cin, cout = w_pt.shape[:2]
    wm = jnp.zeros((4 * cout, 9 * cin), jnp.float32)
    for py in range(2):
        for px in range(2):
            ph = py * 2 + px
            for a in range(2):
                for bb in range(2):
                    ky, kx = 3 - py - 2 * a, 3 - px - 2 * bb
                    tap = (py + a) * 3 + (px + bb)
                    wm = wm.at[ph * cout:(ph + 1) * cout,
                               tap * cin:(tap + 1) * cin].set(w_pt[:, :, ky, kx].T)
    out = {"w": wm.astype(jnp.bfloat16),
           "b": jnp.tile(b, 4).reshape(4 * cout, 1).astype(jnp.float32)}
    if g is not None:
        out["g"] = g.reshape(cout, 1).astype(jnp.float32)
        out["be"] = be.reshape(cout, 1).astype(jnp.float32)
    return out


def pack_params(raw, latent_size):
    # Fold the bias-free embedding matmul into the linear weight (exact):
    #   cat(z, ind @ W_emb) @ W_lin == cat(z, ind) @ [[W_lz],[W_emb @ W_le]]
    head_w = jnp.concatenate(
        [raw["w_lin"][:latent_size], raw["w_emb"] @ raw["w_lin"][latent_size:]],
        axis=0).astype(jnp.float32)
    packed = {"head": {"w": head_w, "b": raw["b_lin"], "g": raw["g_lin"],
                       "be": raw["be_lin"]},
              "res_blocks": [], "ups": []}
    for blk in raw["res"]:
        packed["res_blocks"].append({
            "c1": _pack_conv3x3(blk["w1"], blk["b1"], blk["g1"], blk["be1"]),
            "c2": _pack_conv3x3(blk["w2"], blk["b2"], blk["g2"], blk["be2"])})
    for up in raw["ups"]:
        packed["ups"].append(_pack_deconv(up["w"], up["b"], up["g"], up["be"]))
    packed["final"] = _pack_deconv(raw["final"]["w"], raw["final"]["b"])
    return packed


def init_raw_params(key, data_shape, hidden_size, latent_size,
                    num_res_block, num_mode, embedding_size):
    def nrm(k, shape, scale=0.1):
        return scale * jax.random.normal(k, shape, jnp.float32)

    keys = iter(jax.random.split(key, 64))
    enc_c = hidden_size[-1]
    enc_h = data_shape[1] // 2 ** len(hidden_size)
    enc_w = data_shape[2] // 2 ** len(hidden_size)
    P = enc_c * enc_h * enc_w
    raw = {
        "w_emb": nrm(next(keys), (num_mode, embedding_size)),               # (M, E)
        "w_lin": nrm(next(keys), (latent_size + embedding_size, P)),        # (L+E, P)
        "b_lin": nrm(next(keys), (1, P)),
        "g_lin": 1.0 + nrm(next(keys), (1, P)),
        "be_lin": nrm(next(keys), (1, P)),
        "res": [], "ups": [],
    }
    C = enc_c
    for _ in range(num_res_block):
        raw["res"].append({
            "w1": nrm(next(keys), (C, C, 3, 3)), "b1": nrm(next(keys), (C,)),
            "g1": 1.0 + nrm(next(keys), (C,)), "be1": nrm(next(keys), (C,)),
            "w2": nrm(next(keys), (C, C, 3, 3)), "b2": nrm(next(keys), (C,)),
            "g2": 1.0 + nrm(next(keys), (C,)), "be2": nrm(next(keys), (C,)),
        })
    for i in range(len(hidden_size) - 1, 0, -1):
        cin, cout = hidden_size[i], hidden_size[i - 1]
        raw["ups"].append({
            "w": nrm(next(keys), (cin, cout, 4, 4)), "b": nrm(next(keys), (cout,)),
            "g": 1.0 + nrm(next(keys), (cout,)), "be": nrm(next(keys), (cout,)),
        })
    raw["final"] = {"w": nrm(next(keys), (hidden_size[0], data_shape[0], 4, 4)),
                    "b": nrm(next(keys), (data_shape[0],))}
    return raw, (enc_c, enc_h, enc_w)


# ---------------------------------------------------------------------------
# Decoder forward (matches PyTorch Decoder.forward semantics, training-mode BN)
# ---------------------------------------------------------------------------
def decoder_forward(packed, z, indicator, encoded_shape):
    B = z.shape[0]
    x_in = jnp.concatenate([z, indicator], axis=1)
    h = head_pallas(x_in, packed["head"]["w"], packed["head"]["b"],
                    packed["head"]["g"], packed["head"]["be"])          # (B, P)
    C, H, W = encoded_shape
    x = h.reshape(B, C, H, W).transpose(1, 0, 2, 3)                     # (C, B, H, W)

    # ResBlocks: ReLU(BN2(conv2(ReLU(BN1(conv1(x))))) + x)
    for blk in packed["res_blocks"]:
        inp = x
        y = conv3x3_bn_act(x, blk["c1"], None, "relu")
        x = conv3x3_bn_act(y, blk["c2"], inp, "relu")

    # Upsampling ConvTranspose + BN + ReLU (four phases fused per layer)
    for up in packed["ups"]:
        x = deconv_bn_relu(x, up)

    # Final ConvTranspose + Sigmoid
    x = deconv_sigmoid(x, packed["final"])
    return x.transpose(1, 0, 2, 3)                                      # NCHW


# ---------------------------------------------------------------------------
# Pure-JAX f32 reference (ground truth for the correctness check)
# ---------------------------------------------------------------------------
def ref_decoder_forward(raw, z, indicator, encoded_shape, latent_size):
    HIGH = jax.lax.Precision.HIGHEST

    def bn(x, g, be, axes):
        m = jnp.mean(x, axis=axes, keepdims=True)
        v = jnp.mean((x - m) ** 2, axis=axes, keepdims=True)
        return (x - m) * jax.lax.rsqrt(v + EPS) * g + be

    def bn2d(x, g, be):
        return bn(x, g.reshape(1, -1, 1, 1), be.reshape(1, -1, 1, 1), (0, 2, 3))

    def conv3(x, w, b):
        y = jax.lax.conv_general_dilated(
            x, w, (1, 1), ((1, 1), (1, 1)),
            dimension_numbers=("NCHW", "OIHW", "NCHW"), precision=HIGH)
        return y + b.reshape(1, -1, 1, 1)

    def convT(x, w_pt, b):        # PyTorch ConvTranspose2d(4, 2, 1)
        w = jnp.flip(w_pt, axis=(2, 3)).transpose(1, 0, 2, 3)
        y = jax.lax.conv_general_dilated(
            x, w, (1, 1), ((2, 2), (2, 2)), lhs_dilation=(2, 2),
            dimension_numbers=("NCHW", "OIHW", "NCHW"), precision=HIGH)
        return y + b.reshape(1, -1, 1, 1)

    B = z.shape[0]
    emb = jnp.dot(indicator, raw["w_emb"], precision=HIGH)
    x = jnp.concatenate([z, emb], axis=1)
    y = jnp.dot(x, raw["w_lin"], precision=HIGH) + raw["b_lin"]
    x = jnp.maximum(bn(y, raw["g_lin"], raw["be_lin"], (0,)), 0.0)
    C, H, W = encoded_shape
    x = x.reshape(B, C, H, W)
    for blk in raw["res"]:
        inp = x
        y = jnp.maximum(bn2d(conv3(x, blk["w1"], blk["b1"]), blk["g1"], blk["be1"]), 0.0)
        y = bn2d(conv3(y, blk["w2"], blk["b2"]), blk["g2"], blk["be2"])
        x = jnp.maximum(y + inp, 0.0)
    for up in raw["ups"]:
        x = jnp.maximum(bn2d(convT(x, up["w"], up["b"]), up["g"], up["be"]), 0.0)
    return jax.nn.sigmoid(convT(x, raw["final"]["w"], raw["final"]["b"]))


# ---------------------------------------------------------------------------
if __name__ == "__main__":
    data_shape = (1, 16, 16)      # (C, H, W)
    hidden_size = (8, 16)
    latent_size = 4
    num_res_block = 1
    num_mode = 4
    embedding_size = 4
    B = 2

    root = jax.random.PRNGKey(0)
    k_params, k_z, k_mode = jax.random.split(root, 3)
    raw, encoded_shape = init_raw_params(
        k_params, data_shape, hidden_size, latent_size,
        num_res_block, num_mode, embedding_size)
    packed = pack_params(raw, latent_size)     # one-time weight packing (hoisted)

    z = jax.random.normal(k_z, (B, latent_size), jnp.float32)
    modes = jax.random.randint(k_mode, (B,), 0, num_mode)
    indicator = jax.nn.one_hot(modes, num_mode, dtype=jnp.float32)

    fwd = jax.jit(functools.partial(decoder_forward, encoded_shape=encoded_shape))
    out = jax.block_until_ready(fwd(packed, z, indicator))

    assert out.shape == (B,) + data_shape, out.shape
    assert bool(jnp.all(jnp.isfinite(out)))
    assert bool(jnp.all((out >= 0.0) & (out <= 1.0)))        # sigmoid output range

    ref = ref_decoder_forward(raw, z, indicator, encoded_shape, latent_size)
    err = float(jnp.max(jnp.abs(out - ref)))
    assert err < 5e-2, f"max abs err vs f32 reference = {err}"
    print("KERNEL_OK")
</pallas_src>

<mosaic_0001>
module attributes {stable_mosaic.version = 11 : i64} {
  func.func @head_kernel(%arg0: memref<2x8xf32, #tpu.memory_space<vmem>>, %arg1: memref<8x256xf32, #tpu.memory_space<vmem>>, %arg2: memref<1x256xf32, #tpu.memory_space<vmem>>, %arg3: memref<1x256xf32, #tpu.memory_space<vmem>>, %arg4: memref<1x256xf32, #tpu.memory_space<vmem>>, %arg5: memref<2x256xf32, #tpu.memory_space<vmem>>) attributes {dimension_semantics = [], scalar_prefetch = 0 : i64, scratch_operands = 0 : i64, tpu.core_type = #tpu.core_type<tc>} {
    %c0 = arith.constant 0 : index
    %c0_0 = arith.constant 0 : index
    %0 = vector.load %arg0[%c0, %c0_0] : memref<2x8xf32, #tpu.memory_space<vmem>>, vector<2x8xf32>
    %c0_1 = arith.constant 0 : index
    %c0_2 = arith.constant 0 : index
    %1 = vector.load %arg1[%c0_1, %c0_2] : memref<8x256xf32, #tpu.memory_space<vmem>>, vector<8x256xf32>
    %c0_3 = arith.constant 0 : index
    %c0_4 = arith.constant 0 : index
    %2 = vector.load %arg2[%c0_3, %c0_4] : memref<1x256xf32, #tpu.memory_space<vmem>>, vector<1x256xf32>
    %3 = vector.extract_strided_slice %0 {offsets = [0, 0], sizes = [2, 1], strides = [1, 1]} : vector<2x8xf32> to vector<2x1xf32>
    %4 = vector.extract_strided_slice %1 {offsets = [0, 0], sizes = [1, 256], strides = [1, 1]} : vector<8x256xf32> to vector<1x256xf32>
    %5 = vector.broadcast %3 : vector<2x1xf32> to vector<2x256xf32>
    %6 = vector.broadcast %4 : vector<1x256xf32> to vector<2x256xf32>
    %7 = arith.mulf %5, %6 : vector<2x256xf32>
    %8 = vector.broadcast %2 : vector<1x256xf32> to vector<2x256xf32>
    %9 = arith.addf %8, %7 : vector<2x256xf32>
    %10 = vector.extract_strided_slice %0 {offsets = [0, 1], sizes = [2, 1], strides = [1, 1]} : vector<2x8xf32> to vector<2x1xf32>
    %11 = vector.extract_strided_slice %1 {offsets = [1, 0], sizes = [1, 256], strides = [1, 1]} : vector<8x256xf32> to vector<1x256xf32>
    %12 = vector.broadcast %10 : vector<2x1xf32> to vector<2x256xf32>
    %13 = vector.broadcast %11 : vector<1x256xf32> to vector<2x256xf32>
    %14 = arith.mulf %12, %13 : vector<2x256xf32>
    %15 = arith.addf %9, %14 : vector<2x256xf32>
    %16 = vector.extract_strided_slice %0 {offsets = [0, 2], sizes = [2, 1], strides = [1, 1]} : vector<2x8xf32> to vector<2x1xf32>
    %17 = vector.extract_strided_slice %1 {offsets = [2, 0], sizes = [1, 256], strides = [1, 1]} : vector<8x256xf32> to vector<1x256xf32>
    %18 = vector.broadcast %16 : vector<2x1xf32> to vector<2x256xf32>
    %19 = vector.broadcast %17 : vector<1x256xf32> to vector<2x256xf32>
    %20 = arith.mulf %18, %19 : vector<2x256xf32>
    %21 = arith.addf %15, %20 : vector<2x256xf32>
    %22 = vector.extract_strided_slice %0 {offsets = [0, 3], sizes = [2, 1], strides = [1, 1]} : vector<2x8xf32> to vector<2x1xf32>
    %23 = vector.extract_strided_slice %1 {offsets = [3, 0], sizes = [1, 256], strides = [1, 1]} : vector<8x256xf32> to vector<1x256xf32>
    %24 = vector.broadcast %22 : vector<2x1xf32> to vector<2x256xf32>
    %25 = vector.broadcast %23 : vector<1x256xf32> to vector<2x256xf32>
    %26 = arith.mulf %24, %25 : vector<2x256xf32>
    %27 = arith.addf %21, %26 : vector<2x256xf32>
    %28 = vector.extract_strided_slice %0 {offsets = [0, 4], sizes = [2, 1], strides = [1, 1]} : vector<2x8xf32> to vector<2x1xf32>
    %29 = vector.extract_strided_slice %1 {offsets = [4, 0], sizes = [1, 256], strides = [1, 1]} : vector<8x256xf32> to vector<1x256xf32>
    %30 = vector.broadcast %28 : vector<2x1xf32> to vector<2x256xf32>
    %31 = vector.broadcast %29 : vector<1x256xf32> to vector<2x256xf32>
    %32 = arith.mulf %30, %31 : vector<2x256xf32>
    %33 = arith.addf %27, %32 : vector<2x256xf32>
    %34 = vector.extract_strided_slice %0 {offsets = [0, 5], sizes = [2, 1], strides = [1, 1]} : vector<2x8xf32> to vector<2x1xf32>
    %35 = vector.extract_strided_slice %1 {offsets = [5, 0], sizes = [1, 256], strides = [1, 1]} : vector<8x256xf32> to vector<1x256xf32>
    %36 = vector.broadcast %34 : vector<2x1xf32> to vector<2x256xf32>
    %37 = vector.broadcast %35 : vector<1x256xf32> to vector<2x256xf32>
    %38 = arith.mulf %36, %37 : vector<2x256xf32>
    %39 = arith.addf %33, %38 : vector<2x256xf32>
    %40 = vector.extract_strided_slice %0 {offsets = [0, 6], sizes = [2, 1], strides = [1, 1]} : vector<2x8xf32> to vector<2x1xf32>
    %41 = vector.extract_strided_slice %1 {offsets = [6, 0], sizes = [1, 256], strides = [1, 1]} : vector<8x256xf32> to vector<1x256xf32>
    %42 = vector.broadcast %40 : vector<2x1xf32> to vector<2x256xf32>
    %43 = vector.broadcast %41 : vector<1x256xf32> to vector<2x256xf32>
    %44 = arith.mulf %42, %43 : vector<2x256xf32>
    %45 = arith.addf %39, %44 : vector<2x256xf32>
    %46 = vector.extract_strided_slice %0 {offsets = [0, 7], sizes = [2, 1], strides = [1, 1]} : vector<2x8xf32> to vector<2x1xf32>
    %47 = vector.extract_strided_slice %1 {offsets = [7, 0], sizes = [1, 256], strides = [1, 1]} : vector<8x256xf32> to vector<1x256xf32>
    %48 = vector.broadcast %46 : vector<2x1xf32> to vector<2x256xf32>
    %49 = vector.broadcast %47 : vector<1x256xf32> to vector<2x256xf32>
    %50 = arith.mulf %48, %49 : vector<2x256xf32>
    %51 = arith.addf %45, %50 : vector<2x256xf32>
    %cst = arith.constant dense<0.000000e+00> : vector<256xf32>
    %52 = vector.multi_reduction <add>, %51, %cst [0] : vector<2x256xf32> to vector<256xf32>
    %53 = vector.shape_cast %52 : vector<256xf32> to vector<1x256xf32>
    %cst_5 = arith.constant 2.000000e+00 : f32
    %54 = vector.broadcast %cst_5 : f32 to vector<1x256xf32>
    %55 = arith.divf %53, %54 : vector<1x256xf32>
    %56 = vector.broadcast %55 : vector<1x256xf32> to vector<2x256xf32>
    %57 = arith.subf %51, %56 : vector<2x256xf32>
    %58 = arith.mulf %57, %57 : vector<2x256xf32>
    %cst_6 = arith.constant dense<0.000000e+00> : vector<256xf32>
    %59 = vector.multi_reduction <add>, %58, %cst_6 [0] : vector<2x256xf32> to vector<256xf32>
    %60 = vector.shape_cast %59 : vector<256xf32> to vector<1x256xf32>
    %cst_7 = arith.constant 2.000000e+00 : f32
    %61 = vector.broadcast %cst_7 : f32 to vector<1x256xf32>
    %62 = arith.divf %60, %61 : vector<1x256xf32>
    %63 = vector.broadcast %55 : vector<1x256xf32> to vector<2x256xf32>
    %64 = arith.subf %51, %63 : vector<2x256xf32>
    %cst_8 = arith.constant 9.99999974E-6 : f32
    %65 = vector.broadcast %cst_8 : f32 to vector<1x256xf32>
    %66 = arith.addf %62, %65 : vector<1x256xf32>
    %67 = math.rsqrt %66 : vector<1x256xf32>
    %68 = vector.broadcast %67 : vector<1x256xf32> to vector<2x256xf32>
    %69 = arith.mulf %64, %68 : vector<2x256xf32>
    %c0_9 = arith.constant 0 : index
    %c0_10 = arith.constant 0 : index
    %70 = vector.load %arg3[%c0_9, %c0_10] : memref<1x256xf32, #tpu.memory_space<vmem>>, vector<1x256xf32>
    %71 = vector.broadcast %70 : vector<1x256xf32> to vector<2x256xf32>
    %72 = arith.mulf %69, %71 : vector<2x256xf32>
    %c0_11 = arith.constant 0 : index
    %c0_12 = arith.constant 0 : index
    %73 = vector.load %arg4[%c0_11, %c0_12] : memref<1x256xf32, #tpu.memory_space<vmem>>, vector<1x256xf32>
    %74 = vector.broadcast %73 : vector<1x256xf32> to vector<2x256xf32>
    %75 = arith.addf %72, %74 : vector<2x256xf32>
    %cst_13 = arith.constant 0.000000e+00 : f32
    %76 = vector.broadcast %cst_13 : f32 to vector<2x256xf32>
    %77 = arith.maximumf %75, %76 : vector<2x256xf32>
    %c0_14 = arith.constant 0 : index
    %c0_15 = arith.constant 0 : index
    %78 = vector.load %arg5[%c0_14, %c0_15] : memref<2x256xf32, #tpu.memory_space<vmem>>, vector<2x256xf32>
    tpu.vector_store %arg5[%c0_14, %c0_15], %77 {strides = array<i32>} : memref<2x256xf32, #tpu.memory_space<vmem>>, vector<2x256xf32>,
    return
  }
}

module attributes {stable_mosaic.version = 11 : i64} {
  func.func @kernel(%arg0: i32, %arg1: i32, %arg2: memref<144x128xbf16, #tpu.memory_space<vmem>>, %arg3: memref<16x144xbf16, #tpu.memory_space<vmem>>, %arg4: memref<16x1xf32, #tpu.memory_space<vmem>>, %arg5: memref<16x1xf32, #tpu.memory_space<vmem>>, %arg6: memref<16x1xf32, #tpu.memory_space<vmem>>, %arg7: memref<16x128xf32, #tpu.memory_space<vmem>>, %arg8: memref<16x128xf32, #tpu.memory_space<vmem>>, %arg9: memref<16x1xf32, #tpu.memory_space<vmem>>, %arg10: memref<16x1xf32, #tpu.memory_space<vmem>>) attributes {dimension_semantics = [#tpu.dimension_semantics<arbitrary>, #tpu.dimension_semantics<arbitrary>], iteration_bounds = array<i64: 2, 1>, scalar_prefetch = 0 : i64, scratch_operands = 3 : i64, tpu.core_type = #tpu.core_type<tc>, window_params = [{transform_indices = @transform_0, window_bounds = array<i64: 144, 128>}, {pipeline_mode = #tpu.pipeline_mode<synchronous>, transform_indices = @transform_1, window_bounds = array<i64: 16, 144>}, {pipeline_mode = #tpu.pipeline_mode<synchronous>, transform_indices = @transform_2, window_bounds = array<i64: 16, 1>}, {pipeline_mode = #tpu.pipeline_mode<synchronous>, transform_indices = @transform_3, window_bounds = array<i64: 16, 1>}, {pipeline_mode = #tpu.pipeline_mode<synchronous>, transform_indices = @transform_4, window_bounds = array<i64: 16, 1>}, {transform_indices = @transform_5, window_bounds = array<i64: 16, 128>}]} {
    %c128_i32 = arith.constant 128 : i32
    %0 = arith.muli %arg1, %c128_i32 : i32
    %1 = tpu.assume_multiple %0, 128 : i32
    %c0_i32 = arith.constant 0 : i32
    %2 = arith.cmpi eq, %arg0, %c0_i32 : i32
    %3 = arith.extui %2 : i1 to i32
    %c0_i32_0 = arith.constant 0 : i32
    %4 = arith.cmpi ne, %3, %c0_i32_0 : i32
    scf.if %4 {
      %c0 = arith.constant 0 : index
      %c0_2 = arith.constant 0 : index
      %8 = vector.load %arg3[%c0, %c0_2] : memref<16x144xbf16, #tpu.memory_space<vmem>>, vector<16x144xbf16>
      %c0_3 = arith.constant 0 : index
      %c0_4 = arith.constant 0 : index
      %9 = vector.load %arg2[%c0_3, %c0_4] : memref<144x128xbf16, #tpu.memory_space<vmem>>, vector<144x128xbf16>
      %cst = arith.constant dense<0.000000e+00> : vector<16x128xf32>
      %10 = tpu.matmul %8, %9, %cst {dimension_numbers = #tpu.dot_dimension_numbers<[1], [0], [0], [1], [0, 0, 1, 1], [], []>} : vector<16x144xbf16>, vector<144x128xbf16>, vector<16x128xf32> -> vector<16x128xf32>
      %c0_5 = arith.constant 0 : index
      %c0_6 = arith.constant 0 : index
      %11 = vector.load %arg4[%c0_5, %c0_6] : memref<16x1xf32, #tpu.memory_space<vmem>>, vector<16x1xf32>
      %12 = vector.broadcast %11 : vector<16x1xf32> to vector<16x128xf32>
      %13 = arith.addf %10, %12 : vector<16x128xf32>
      %c0_7 = arith.constant 0 : index
      %14 = arith.index_cast %1 : i32 to index
      %15 = vector.load %arg8[%c0_7, %14] : memref<16x128xf32, #tpu.memory_space<vmem>>, vector<16x128xf32>
      tpu.vector_store %arg8[%c0_7, %14], %13 {strides = array<i32>} : memref<16x128xf32, #tpu.memory_space<vmem>>, vector<16x128xf32>,
      %c0_i32_8 = arith.constant 0 : i32
      %16 = arith.cmpi eq, %arg1, %c0_i32_8 : i32
      %17 = arith.extui %16 : i1 to i32
      %c0_i32_9 = arith.constant 0 : i32
      %18 = arith.cmpi ne, %17, %c0_i32_9 : i32
      scf.if %18 {
        %cst_14 = arith.constant 0.000000e+00 : f32
        %25 = vector.broadcast %cst_14 : f32 to vector<16x1xf32>
        %c0_15 = arith.constant 0 : index
        %c0_16 = arith.constant 0 : index
        %26 = vector.load %arg9[%c0_15, %c0_16] : memref<16x1xf32, #tpu.memory_space<vmem>>, vector<16x1xf32>
        tpu.vector_store %arg9[%c0_15, %c0_16], %25 {strides = array<i32>} : memref<16x1xf32, #tpu.memory_space<vmem>>, vector<16x1xf32>,
        %cst_17 = arith.constant 0.000000e+00 : f32
        %27 = vector.broadcast %cst_17 : f32 to vector<16x1xf32>
        %c0_18 = arith.constant 0 : index
        %c0_19 = arith.constant 0 : index
        %28 = vector.load %arg10[%c0_18, %c0_19] : memref<16x1xf32, #tpu.memory_space<vmem>>, vector<16x1xf32>
        tpu.vector_store %arg10[%c0_18, %c0_19], %27 {strides = array<i32>} : memref<16x1xf32, #tpu.memory_space<vmem>>, vector<16x1xf32>,
      } else {
      }
      %c0_i32_10 = arith.constant 0 : i32
      %19 = arith.cmpi eq, %arg1, %c0_i32_10 : i32
      %20 = arith.extui %19 : i1 to i32
      %c0_i32_11 = arith.constant 0 : i32
      %21 = arith.cmpi ne, %20, %c0_i32_11 : i32
      scf.if %21 {
        %25 = tpu.iota {dimensions = array<i32: 1>} : vector<16x128xi32>
        %c128_i32_14 = arith.constant 128 : i32
        %26 = arith.muli %arg1, %c128_i32_14 : i32
        %27 = vector.broadcast %26 : i32 to vector<16x128xi32>
        %28 = arith.addi %25, %27 : vector<16x128xi32>
        %c32_i32 = arith.constant 32 : i32
        %29 = vector.broadcast %c32_i32 : i32 to vector<16x128xi32>
        %30 = arith.cmpi slt, %28, %29 : vector<16x128xi32>
        %cst_15 = arith.constant 0.000000e+00 : f32
        %31 = vector.broadcast %cst_15 : f32 to vector<16x128xf32>
        %32 = arith.select %30, %13, %31 : vector<16x128xi1>, vector<16x128xf32>
        %cst_16 = arith.constant 0.000000e+00 : f32
        %33 = vector.broadcast %cst_16 : f32 to vector<16x1xf32>
        %cst_17 = arith.constant 0.000000e+00 : f32
        %34 = vector.broadcast %cst_17 : f32 to vector<16x1xf32>
        %cst_18 = arith.constant dense<0.000000e+00> : vector<16xf32>
        %35 = vector.multi_reduction <add>, %32, %cst_18 [1] : vector<16x128xf32> to vector<16xf32>
        %36 = vector.shape_cast %35 : vector<16xf32> to vector<16x1xf32>
        %37 = arith.addf %33, %36 : vector<16x1xf32>
        %38 = arith.mulf %32, %32 : vector<16x128xf32>
        %cst_19 = arith.constant dense<0.000000e+00> : vector<16xf32>
        %39 = vector.multi_reduction <add>, %38, %cst_19 [1] : vector<16x128xf32> to vector<16xf32>
        %40 = vector.shape_cast %39 : vector<16xf32> to vector<16x1xf32>
        %41 = arith.addf %34, %40 : vector<16x1xf32>
        %c0_20 = arith.constant 0 : index
        %c0_21 = arith.constant 0 : index
        %42 = vector.load %arg9[%c0_20, %c0_21] : memref<16x1xf32, #tpu.memory_space<vmem>>, vector<16x1xf32>
        %43 = arith.addf %42, %37 : vector<16x1xf32>
        %c0_22 = arith.constant 0 : index
        %c0_23 = arith.constant 0 : index
        %44 = vector.load %arg9[%c0_22, %c0_23] : memref<16x1xf32, #tpu.memory_space<vmem>>, vector<16x1xf32>
        tpu.vector_store %arg9[%c0_22, %c0_23], %43 {strides = array<i32>} : memref<16x1xf32, #tpu.memory_space<vmem>>, vector<16x1xf32>,
        %c0_24 = arith.constant 0 : index
        %c0_25 = arith.constant 0 : index
        %45 = vector.load %arg10[%c0_24, %c0_25] : memref<16x1xf32, #tpu.memory_space<vmem>>, vector<16x1xf32>
        %46 = arith.addf %45, %41 : vector<16x1xf32>
        %c0_26 = arith.constant 0 : index
        %c0_27 = arith.constant 0 : index
        %47 = vector.load %arg10[%c0_26, %c0_27] : memref<16x1xf32, #tpu.memory_space<vmem>>, vector<16x1xf32>
        tpu.vector_store %arg10[%c0_26, %c0_27], %46 {strides = array<i32>} : memref<16x1xf32, #tpu.memory_space<vmem>>, vector<16x1xf32>,
      } else {
      }
      %c0_i32_12 = arith.constant 0 : i32
      %22 = arith.cmpi ne, %arg1, %c0_i32_12 : i32
      %23 = arith.extui %22 : i1 to i32
      %c0_i32_13 = arith.constant 0 : i32
      %24 = arith.cmpi ne, %23, %c0_i32_13 : i32
      scf.if %24 {
        %cst_14 = arith.constant 0.000000e+00 : f32
        %25 = vector.broadcast %cst_14 : f32 to vector<16x1xf32>
        %cst_15 = arith.constant 0.000000e+00 : f32
        %26 = vector.broadcast %cst_15 : f32 to vector<16x1xf32>
        %cst_16 = arith.constant dense<0.000000e+00> : vector<16xf32>
        %27 = vector.multi_reduction <add>, %13, %cst_16 [1] : vector<16x128xf32> to vector<16xf32>
        %28 = vector.shape_cast %27 : vector<16xf32> to vector<16x1xf32>
        %29 = arith.addf %25, %28 : vector<16x1xf32>
        %30 = arith.mulf %13, %13 : vector<16x128xf32>
        %cst_17 = arith.constant dense<0.000000e+00> : vector<16xf32>
        %31 = vector.multi_reduction <add>, %30, %cst_17 [1] : vector<16x128xf32> to vector<16xf32>
        %32 = vector.shape_cast %31 : vector<16xf32> to vector<16x1xf32>
        %33 = arith.addf %26, %32 : vector<16x1xf32>
        %c0_18 = arith.constant 0 : index
        %c0_19 = arith.constant 0 : index
        %34 = vector.load %arg9[%c0_18, %c0_19] : memref<16x1xf32, #tpu.memory_space<vmem>>, vector<16x1xf32>
        %35 = arith.addf %34, %29 : vector<16x1xf32>
        %c0_20 = arith.constant 0 : index
        %c0_21 = arith.constant 0 : index
        %36 = vector.load %arg9[%c0_20, %c0_21] : memref<16x1xf32, #tpu.memory_space<vmem>>, vector<16x1xf32>
        tpu.vector_store %arg9[%c0_20, %c0_21], %35 {strides = array<i32>} : memref<16x1xf32, #tpu.memory_space<vmem>>, vector<16x1xf32>,
        %c0_22 = arith.constant 0 : index
        %c0_23 = arith.constant 0 : index
        %37 = vector.load %arg10[%c0_22, %c0_23] : memref<16x1xf32, #tpu.memory_space<vmem>>, vector<16x1xf32>
        %38 = arith.addf %37, %33 : vector<16x1xf32>
        %c0_24 = arith.constant 0 : index
        %c0_25 = arith.constant 0 : index
        %39 = vector.load %arg10[%c0_24, %c0_25] : memref<16x1xf32, #tpu.memory_space<vmem>>, vector<16x1xf32>
        tpu.vector_store %arg10[%c0_24, %c0_25], %38 {strides = array<i32>} : memref<16x1xf32, #tpu.memory_space<vmem>>, vector<16x1xf32>,
      } else {
      }
    } else {
    }
    %c1_i32 = arith.constant 1 : i32
    %5 = arith.cmpi eq, %arg0, %c1_i32 : i32
    %6 = arith.extui %5 : i1 to i32
    %c0_i32_1 = arith.constant 0 : i32
    %7 = arith.cmpi ne, %6, %c0_i32_1 : i32
    scf.if %7 {
      %c0 = arith.constant 0 : index
      %c0_2 = arith.constant 0 : index
      %8 = vector.load %arg9[%c0, %c0_2] : memref<16x1xf32, #tpu.memory_space<vmem>>, vector<16x1xf32>
      %cst = arith.constant 3.125000e-02 : f32
      %9 = vector.broadcast %cst : f32 to vector<16x1xf32>
      %10 = arith.mulf %8, %9 : vector<16x1xf32>
      %c0_3 = arith.constant 0 : index
      %c0_4 = arith.constant 0 : index
      %11 = vector.load %arg10[%c0_3, %c0_4] : memref<16x1xf32, #tpu.memory_space<vmem>>, vector<16x1xf32>
      %cst_5 = arith.constant 3.125000e-02 : f32
      %12 = vector.broadcast %cst_5 : f32 to vector<16x1xf32>
      %13 = arith.mulf %11, %12 : vector<16x1xf32>
      %14 = arith.mulf %10, %10 : vector<16x1xf32>
      %15 = arith.subf %13, %14 : vector<16x1xf32>
      %cst_6 = arith.constant 0.000000e+00 : f32
      %16 = vector.broadcast %cst_6 : f32 to vector<16x1xf32>
      %17 = arith.maximumf %15, %16 : vector<16x1xf32>
      %cst_7 = arith.constant 9.99999974E-6 : f32
      %18 = vector.broadcast %cst_7 : f32 to vector<16x1xf32>
      %19 = arith.addf %17, %18 : vector<16x1xf32>
      %20 = math.rsqrt %19 : vector<16x1xf32>
      %c0_8 = arith.constant 0 : index
      %c0_9 = arith.constant 0 : index
      %21 = vector.load %arg5[%c0_8, %c0_9] : memref<16x1xf32, #tpu.memory_space<vmem>>, vector<16x1xf32>
      %22 = arith.mulf %20, %21 : vector<16x1xf32>
      %c0_10 = arith.constant 0 : index
      %c0_11 = arith.constant 0 : index
      %23 = vector.load %arg6[%c0_10, %c0_11] : memref<16x1xf32, #tpu.memory_space<vmem>>, vector<16x1xf32>
      %24 = arith.mulf %10, %22 : vector<16x1xf32>
      %25 = arith.subf %23, %24 : vector<16x1xf32>
      %c0_12 = arith.constant 0 : index
      %26 = arith.index_cast %1 : i32 to index
      %27 = vector.load %arg8[%c0_12, %26] : memref<16x128xf32, #tpu.memory_space<vmem>>, vector<16x128xf32>
      %28 = vector.broadcast %22 : vector<16x1xf32> to vector<16x128xf32>
      %29 = arith.mulf %27, %28 : vector<16x128xf32>
      %30 = vector.broadcast %25 : vector<16x1xf32> to vector<16x128xf32>
      %31 = arith.addf %29, %30 : vector<16x128xf32>
      %cst_13 = arith.constant 0.000000e+00 : f32
      %32 = vector.broadcast %cst_13 : f32 to vector<16x128xf32>
      %33 = arith.maximumf %31, %32 : vector<16x128xf32>
      %c0_14 = arith.constant 0 : index
      %c0_15 = arith.constant 0 : index
      %34 = vector.load %arg7[%c0_14, %c0_15] : memref<16x128xf32, #tpu.memory_space<vmem>>, vector<16x128xf32>
      tpu.vector_store %arg7[%c0_14, %c0_15], %33 {strides = array<i32>} : memref<16x128xf32, #tpu.memory_space<vmem>>, vector<16x128xf32>,
    } else {
    }
    return
  }
  func.func @transform_0(%arg0: i32, %arg1: i32) -> (i32, i32) {
    %c1_i32 = arith.constant 1 : i32
    %0 = arith.subi %c1_i32, %arg0 : i32
    %1 = arith.muli %arg1, %0 : i32
    %c0_i32 = arith.constant 0 : i32
    %c0_i32_0 = arith.constant 0 : i32
    return %c0_i32, %1 : i32, i32
  }
  func.func @transform_1(%arg0: i32, %arg1: i32) -> (i32, i32) {
    %c0_i32 = arith.constant 0 : i32
    %c0_i32_0 = arith.constant 0 : i32
    %c0_i32_1 = arith.constant 0 : i32
    return %c0_i32, %c0_i32_0 : i32, i32
  }
  func.func @transform_2(%arg0: i32, %arg1: i32) -> (i32, i32) {
    %c0_i32 = arith.constant 0 : i32
    %c0_i32_0 = arith.constant 0 : i32
    %c0_i32_1 = arith.constant 0 : i32
    return %c0_i32, %c0_i32_0 : i32, i32
  }
  func.func @transform_3(%arg0: i32, %arg1: i32) -> (i32, i32) {
    %c0_i32 = arith.constant 0 : i32
    %c0_i32_0 = arith.constant 0 : i32
    %c0_i32_1 = arith.constant 0 : i32
    return %c0_i32, %c0_i32_0 : i32, i32
  }
  func.func @transform_4(%arg0: i32, %arg1: i32) -> (i32, i32) {
    %c0_i32 = arith.constant 0 : i32
    %c0_i32_0 = arith.constant 0 : i32
    %c0_i32_1 = arith.constant 0 : i32
    return %c0_i32, %c0_i32_0 : i32, i32
  }
  func.func @transform_5(%arg0: i32, %arg1: i32) -> (i32, i32) {
    %0 = arith.muli %arg1, %arg0 : i32
    %c0_i32 = arith.constant 0 : i32
    %c0_i32_0 = arith.constant 0 : i32
    return %c0_i32, %0 : i32, i32
  }
}

module attributes {stable_mosaic.version = 11 : i64} {
  func.func @kernel(%arg0: i32, %arg1: i32, %arg2: memref<144x128xbf16, #tpu.memory_space<vmem>>, %arg3: memref<16x144xbf16, #tpu.memory_space<vmem>>, %arg4: memref<16x1xf32, #tpu.memory_space<vmem>>, %arg5: memref<16x1xf32, #tpu.memory_space<vmem>>, %arg6: memref<16x1xf32, #tpu.memory_space<vmem>>, %arg7: memref<16x128xf32, #tpu.memory_space<vmem>>, %arg8: memref<16x128xf32, #tpu.memory_space<vmem>>, %arg9: memref<16x128xf32, #tpu.memory_space<vmem>>, %arg10: memref<16x1xf32, #tpu.memory_space<vmem>>, %arg11: memref<16x1xf32, #tpu.memory_space<vmem>>) attributes {dimension_semantics = [#tpu.dimension_semantics<arbitrary>, #tpu.dimension_semantics<arbitrary>], iteration_bounds = array<i64: 2, 1>, scalar_prefetch = 0 : i64, scratch_operands = 3 : i64, tpu.core_type = #tpu.core_type<tc>, window_params = [{transform_indices = @transform_0, window_bounds = array<i64: 144, 128>}, {pipeline_mode = #tpu.pipeline_mode<synchronous>, transform_indices = @transform_1, window_bounds = array<i64: 16, 144>}, {pipeline_mode = #tpu.pipeline_mode<synchronous>, transform_indices = @transform_2, window_bounds = array<i64: 16, 1>}, {pipeline_mode = #tpu.pipeline_mode<synchronous>, transform_indices = @transform_3, window_bounds = array<i64: 16, 1>}, {pipeline_mode = #tpu.pipeline_mode<synchronous>, transform_indices = @transform_4, window_bounds = array<i64: 16, 1>}, {transform_indices = @transform_5, window_bounds = array<i64: 16, 128>}, {transform_indices = @transform_6, window_bounds = array<i64: 16, 128>}]} {
    %c128_i32 = arith.constant 128 : i32
    %0 = arith.muli %arg1, %c128_i32 : i32
    %1 = tpu.assume_multiple %0, 128 : i32
    %c0_i32 = arith.constant 0 : i32
    %2 = arith.cmpi eq, %arg0, %c0_i32 : i32
    %3 = arith.extui %2 : i1 to i32
    %c0_i32_0 = arith.constant 0 : i32
    %4 = arith.cmpi ne, %3, %c0_i32_0 : i32
    scf.if %4 {
      %c0 = arith.constant 0 : index
      %c0_2 = arith.constant 0 : index
      %8 = vector.load %arg3[%c0, %c0_2] : memref<16x144xbf16, #tpu.memory_space<vmem>>, vector<16x144xbf16>
      %c0_3 = arith.constant 0 : index
      %c0_4 = arith.constant 0 : index
      %9 = vector.load %arg2[%c0_3, %c0_4] : memref<144x128xbf16, #tpu.memory_space<vmem>>, vector<144x128xbf16>
      %cst = arith.constant dense<0.000000e+00> : vector<16x128xf32>
      %10 = tpu.matmul %8, %9, %cst {dimension_numbers = #tpu.dot_dimension_numbers<[1], [0], [0], [1], [0, 0, 1, 1], [], []>} : vector<16x144xbf16>, vector<144x128xbf16>, vector<16x128xf32> -> vector<16x128xf32>
      %c0_5 = arith.constant 0 : index
      %c0_6 = arith.constant 0 : index
      %11 = vector.load %arg4[%c0_5, %c0_6] : memref<16x1xf32, #tpu.memory_space<vmem>>, vector<16x1xf32>
      %12 = vector.broadcast %11 : vector<16x1xf32> to vector<16x128xf32>
      %13 = arith.addf %10, %12 : vector<16x128xf32>
      %c0_7 = arith.constant 0 : index
      %14 = arith.index_cast %1 : i32 to index
      %15 = vector.load %arg9[%c0_7, %14] : memref<16x128xf32, #tpu.memory_space<vmem>>, vector<16x128xf32>
      tpu.vector_store %arg9[%c0_7, %14], %13 {strides = array<i32>} : memref<16x128xf32, #tpu.memory_space<vmem>>, vector<16x128xf32>,
      %c0_i32_8 = arith.constant 0 : i32
      %16 = arith.cmpi eq, %arg1, %c0_i32_8 : i32
      %17 = arith.extui %16 : i1 to i32
      %c0_i32_9 = arith.constant 0 : i32
      %18 = arith.cmpi ne, %17, %c0_i32_9 : i32
      scf.if %18 {
        %cst_14 = arith.constant 0.000000e+00 : f32
        %25 = vector.broadcast %cst_14 : f32 to vector<16x1xf32>
        %c0_15 = arith.constant 0 : index
        %c0_16 = arith.constant 0 : index
        %26 = vector.load %arg10[%c0_15, %c0_16] : memref<16x1xf32, #tpu.memory_space<vmem>>, vector<16x1xf32>
        tpu.vector_store %arg10[%c0_15, %c0_16], %25 {strides = array<i32>} : memref<16x1xf32, #tpu.memory_space<vmem>>, vector<16x1xf32>,
        %cst_17 = arith.constant 0.000000e+00 : f32
        %27 = vector.broadcast %cst_17 : f32 to vector<16x1xf32>
        %c0_18 = arith.constant 0 : index
        %c0_19 = arith.constant 0 : index
        %28 = vector.load %arg11[%c0_18, %c0_19] : memref<16x1xf32, #tpu.memory_space<vmem>>, vector<16x1xf32>
        tpu.vector_store %arg11[%c0_18, %c0_19], %27 {strides = array<i32>} : memref<16x1xf32, #tpu.memory_space<vmem>>, vector<16x1xf32>,
      } else {
      }
      %c0_i32_10 = arith.constant 0 : i32
      %19 = arith.cmpi eq, %arg1, %c0_i32_10 : i32
      %20 = arith.extui %19 : i1 to i32
      %c0_i32_11 = arith.constant 0 : i32
      %21 = arith.cmpi ne, %20, %c0_i32_11 : i32
      scf.if %21 {
        %25 = tpu.iota {dimensions = array<i32: 1>} : vector<16x128xi32>
        %c128_i32_14 = arith.constant 128 : i32
        %26 = arith.muli %arg1, %c128_i32_14 : i32
        %27 = vector.broadcast %26 : i32 to vector<16x128xi32>
        %28 = arith.addi %25, %27 : vector<16x128xi32>
        %c32_i32 = arith.constant 32 : i32
        %29 = vector.broadcast %c32_i32 : i32 to vector<16x128xi32>
        %30 = arith.cmpi slt, %28, %29 : vector<16x128xi32>
        %cst_15 = arith.constant 0.000000e+00 : f32
        %31 = vector.broadcast %cst_15 : f32 to vector<16x128xf32>
        %32 = arith.select %30, %13, %31 : vector<16x128xi1>, vector<16x128xf32>
        %cst_16 = arith.constant 0.000000e+00 : f32
        %33 = vector.broadcast %cst_16 : f32 to vector<16x1xf32>
        %cst_17 = arith.constant 0.000000e+00 : f32
        %34 = vector.broadcast %cst_17 : f32 to vector<16x1xf32>
        %cst_18 = arith.constant dense<0.000000e+00> : vector<16xf32>
        %35 = vector.multi_reduction <add>, %32, %cst_18 [1] : vector<16x128xf32> to vector<16xf32>
        %36 = vector.shape_cast %35 : vector<16xf32> to vector<16x1xf32>
        %37 = arith.addf %33, %36 : vector<16x1xf32>
        %38 = arith.mulf %32, %32 : vector<16x128xf32>
        %cst_19 = arith.constant dense<0.000000e+00> : vector<16xf32>
        %39 = vector.multi_reduction <add>, %38, %cst_19 [1] : vector<16x128xf32> to vector<16xf32>
        %40 = vector.shape_cast %39 : vector<16xf32> to vector<16x1xf32>
        %41 = arith.addf %34, %40 : vector<16x1xf32>
        %c0_20 = arith.constant 0 : index
        %c0_21 = arith.constant 0 : index
        %42 = vector.load %arg10[%c0_20, %c0_21] : memref<16x1xf32, #tpu.memory_space<vmem>>, vector<16x1xf32>
        %43 = arith.addf %42, %37 : vector<16x1xf32>
        %c0_22 = arith.constant 0 : index
        %c0_23 = arith.constant 0 : index
        %44 = vector.load %arg10[%c0_22, %c0_23] : memref<16x1xf32, #tpu.memory_space<vmem>>, vector<16x1xf32>
        tpu.vector_store %arg10[%c0_22, %c0_23], %43 {strides = array<i32>} : memref<16x1xf32, #tpu.memory_space<vmem>>, vector<16x1xf32>,
        %c0_24 = arith.constant 0 : index
        %c0_25 = arith.constant 0 : index
        %45 = vector.load %arg11[%c0_24, %c0_25] : memref<16x1xf32, #tpu.memory_space<vmem>>, vector<16x1xf32>
        %46 = arith.addf %45, %41 : vector<16x1xf32>
        %c0_26 = arith.constant 0 : index
        %c0_27 = arith.constant 0 : index
        %47 = vector.load %arg11[%c0_26, %c0_27] : memref<16x1xf32, #tpu.memory_space<vmem>>, vector<16x1xf32>
        tpu.vector_store %arg11[%c0_26, %c0_27], %46 {strides = array<i32>} : memref<16x1xf32, #tpu.memory_space<vmem>>, vector<16x1xf32>,
      } else {
      }
      %c0_i32_12 = arith.constant 0 : i32
      %22 = arith.cmpi ne, %arg1, %c0_i32_12 : i32
      %23 = arith.extui %22 : i1 to i32
      %c0_i32_13 = arith.constant 0 : i32
      %24 = arith.cmpi ne, %23, %c0_i32_13 : i32
      scf.if %24 {
        %cst_14 = arith.constant 0.000000e+00 : f32
        %25 = vector.broadcast %cst_14 : f32 to vector<16x1xf32>
        %cst_15 = arith.constant 0.000000e+00 : f32
        %26 = vector.broadcast %cst_15 : f32 to vector<16x1xf32>
        %cst_16 = arith.constant dense<0.000000e+00> : vector<16xf32>
        %27 = vector.multi_reduction <add>, %13, %cst_16 [1] : vector<16x128xf32> to vector<16xf32>
        %28 = vector.shape_cast %27 : vector<16xf32> to vector<16x1xf32>
        %29 = arith.addf %25, %28 : vector<16x1xf32>
        %30 = arith.mulf %13, %13 : vector<16x128xf32>
        %cst_17 = arith.constant dense<0.000000e+00> : vector<16xf32>
        %31 = vector.multi_reduction <add>, %30, %cst_17 [1] : vector<16x128xf32> to vector<16xf32>
        %32 = vector.shape_cast %31 : vector<16xf32> to vector<16x1xf32>
        %33 = arith.addf %26, %32 : vector<16x1xf32>
        %c0_18 = arith.constant 0 : index
        %c0_19 = arith.constant 0 : index
        %34 = vector.load %arg10[%c0_18, %c0_19] : memref<16x1xf32, #tpu.memory_space<vmem>>, vector<16x1xf32>
        %35 = arith.addf %34, %29 : vector<16x1xf32>
        %c0_20 = arith.constant 0 : index
        %c0_21 = arith.constant 0 : index
        %36 = vector.load %arg10[%c0_20, %c0_21] : memref<16x1xf32, #tpu.memory_space<vmem>>, vector<16x1xf32>
        tpu.vector_store %arg10[%c0_20, %c0_21], %35 {strides = array<i32>} : memref<16x1xf32, #tpu.memory_space<vmem>>, vector<16x1xf32>,
        %c0_22 = arith.constant 0 : index
        %c0_23 = arith.constant 0 : index
        %37 = vector.load %arg11[%c0_22, %c0_23] : memref<16x1xf32, #tpu.memory_space<vmem>>, vector<16x1xf32>
        %38 = arith.addf %37, %33 : vector<16x1xf32>
        %c0_24 = arith.constant 0 : index
        %c0_25 = arith.constant 0 : index
        %39 = vector.load %arg11[%c0_24, %c0_25] : memref<16x1xf32, #tpu.memory_space<vmem>>, vector<16x1xf32>
        tpu.vector_store %arg11[%c0_24, %c0_25], %38 {strides = array<i32>} : memref<16x1xf32, #tpu.memory_space<vmem>>, vector<16x1xf32>,
      } else {
      }
    } else {
    }
    %c1_i32 = arith.constant 1 : i32
    %5 = arith.cmpi eq, %arg0, %c1_i32 : i32
    %6 = arith.extui %5 : i1 to i32
    %c0_i32_1 = arith.constant 0 : i32
    %7 = arith.cmpi ne, %6, %c0_i32_1 : i32
    scf.if %7 {
      %c0 = arith.constant 0 : index
      %c0_2 = arith.constant 0 : index
      %8 = vector.load %arg10[%c0, %c0_2] : memref<16x1xf32, #tpu.memory_space<vmem>>, vector<16x1xf32>
      %cst = arith.constant 3.125000e-02 : f32
      %9 = vector.broadcast %cst : f32 to vector<16x1xf32>
      %10 = arith.mulf %8, %9 : vector<16x1xf32>
      %c0_3 = arith.constant 0 : index
      %c0_4 = arith.constant 0 : index
      %11 = vector.load %arg11[%c0_3, %c0_4] : memref<16x1xf32, #tpu.memory_space<vmem>>, vector<16x1xf32>
      %cst_5 = arith.constant 3.125000e-02 : f32
      %12 = vector.broadcast %cst_5 : f32 to vector<16x1xf32>
      %13 = arith.mulf %11, %12 : vector<16x1xf32>
      %14 = arith.mulf %10, %10 : vector<16x1xf32>
      %15 = arith.subf %13, %14 : vector<16x1xf32>
      %cst_6 = arith.constant 0.000000e+00 : f32
      %16 = vector.broadcast %cst_6 : f32 to vector<16x1xf32>
      %17 = arith.maximumf %15, %16 : vector<16x1xf32>
      %cst_7 = arith.constant 9.99999974E-6 : f32
      %18 = vector.broadcast %cst_7 : f32 to vector<16x1xf32>
      %19 = arith.addf %17, %18 : vector<16x1xf32>
      %20 = math.rsqrt %19 : vector<16x1xf32>
      %c0_8 = arith.constant 0 : index
      %c0_9 = arith.constant 0 : index
      %21 = vector.load %arg5[%c0_8, %c0_9] : memref<16x1xf32, #tpu.memory_space<vmem>>, vector<16x1xf32>
      %22 = arith.mulf %20, %21 : vector<16x1xf32>
      %c0_10 = arith.constant 0 : index
      %c0_11 = arith.constant 0 : index
      %23 = vector.load %arg6[%c0_10, %c0_11] : memref<16x1xf32, #tpu.memory_space<vmem>>, vector<16x1xf32>
      %24 = arith.mulf %10, %22 : vector<16x1xf32>
      %25 = arith.subf %23, %24 : vector<16x1xf32>
      %c0_12 = arith.constant 0 : index
      %26 = arith.index_cast %1 : i32 to index
      %27 = vector.load %arg9[%c0_12, %26] : memref<16x128xf32, #tpu.memory_space<vmem>>, vector<16x128xf32>
      %28 = vector.broadcast %22 : vector<16x1xf32> to vector<16x128xf32>
      %29 = arith.mulf %27, %28 : vector<16x128xf32>
      %30 = vector.broadcast %25 : vector<16x1xf32> to vector<16x128xf32>
      %31 = arith.addf %29, %30 : vector<16x128xf32>
      %c0_13 = arith.constant 0 : index
      %c0_14 = arith.constant 0 : index
      %32 = vector.load %arg7[%c0_13, %c0_14] : memref<16x128xf32, #tpu.memory_space<vmem>>, vector<16x128xf32>
      %33 = arith.addf %31, %32 : vector<16x128xf32>
      %cst_15 = arith.constant 0.000000e+00 : f32
      %34 = vector.broadcast %cst_15 : f32 to vector<16x128xf32>
      %35 = arith.maximumf %33, %34 : vector<16x128xf32>
      %c0_16 = arith.constant 0 : index
      %c0_17 = arith.constant 0 : index
      %36 = vector.load %arg8[%c0_16, %c0_17] : memref<16x128xf32, #tpu.memory_space<vmem>>, vector<16x128xf32>
      tpu.vector_store %arg8[%c0_16, %c0_17], %35 {strides = array<i32>} : memref<16x128xf32, #tpu.memory_space<vmem>>, vector<16x128xf32>,
    } else {
    }
    return
  }
  func.func @transform_0(%arg0: i32, %arg1: i32) -> (i32, i32) {
    %c1_i32 = arith.constant 1 : i32
    %0 = arith.subi %c1_i32, %arg0 : i32
    %1 = arith.muli %arg1, %0 : i32
    %c0_i32 = arith.constant 0 : i32
    %c0_i32_0 = arith.constant 0 : i32
    return %c0_i32, %1 : i32, i32
  }
  func.func @transform_1(%arg0: i32, %arg1: i32) -> (i32, i32) {
    %c0_i32 = arith.constant 0 : i32
    %c0_i32_0 = arith.constant 0 : i32
    %c0_i32_1 = arith.constant 0 : i32
    return %c0_i32, %c0_i32_0 : i32, i32
  }
  func.func @transform_2(%arg0: i32, %arg1: i32) -> (i32, i32) {
    %c0_i32 = arith.constant 0 : i32
    %c0_i32_0 = arith.constant 0 : i32
    %c0_i32_1 = arith.constant 0 : i32
    return %c0_i32, %c0_i32_0 : i32, i32
  }
  func.func @transform_3(%arg0: i32, %arg1: i32) -> (i32, i32) {
    %c0_i32 = arith.constant 0 : i32
    %c0_i32_0 = arith.constant 0 : i32
    %c0_i32_1 = arith.constant 0 : i32
    return %c0_i32, %c0_i32_0 : i32, i32
  }
  func.func @transform_4(%arg0: i32, %arg1: i32) -> (i32, i32) {
    %c0_i32 = arith.constant 0 : i32
    %c0_i32_0 = arith.constant 0 : i32
    %c0_i32_1 = arith.constant 0 : i32
    return %c0_i32, %c0_i32_0 : i32, i32
  }
  func.func @transform_5(%arg0: i32, %arg1: i32) -> (i32, i32) {
    %0 = arith.muli %arg1, %arg0 : i32
    %c0_i32 = arith.constant 0 : i32
    %c0_i32_0 = arith.constant 0 : i32
    return %c0_i32, %0 : i32, i32
  }
  func.func @transform_6(%arg0: i32, %arg1: i32) -> (i32, i32) {
    %0 = arith.muli %arg1, %arg0 : i32
    %c0_i32 = arith.constant 0 : i32
    %c0_i32_0 = arith.constant 0 : i32
    return %c0_i32, %0 : i32, i32
  }
}

module attributes {stable_mosaic.version = 11 : i64} {
  func.func @kernel(%arg0: i32, %arg1: i32, %arg2: memref<144x128xbf16, #tpu.memory_space<vmem>>, %arg3: memref<32x144xbf16, #tpu.memory_space<vmem>>, %arg4: memref<32x1xf32, #tpu.memory_space<vmem>>, %arg5: memref<8x1xf32, #tpu.memory_space<vmem>>, %arg6: memref<8x1xf32, #tpu.memory_space<vmem>>, %arg7: memref<32x128xf32, #tpu.memory_space<vmem>>, %arg8: memref<32x128xf32, #tpu.memory_space<vmem>>, %arg9: memref<8x1xf32, #tpu.memory_space<vmem>>, %arg10: memref<8x1xf32, #tpu.memory_space<vmem>>) attributes {dimension_semantics = [#tpu.dimension_semantics<arbitrary>, #tpu.dimension_semantics<arbitrary>], iteration_bounds = array<i64: 2, 1>, scalar_prefetch = 0 : i64, scratch_operands = 3 : i64, tpu.core_type = #tpu.core_type<tc>, window_params = [{transform_indices = @transform_0, window_bounds = array<i64: 144, 128>}, {pipeline_mode = #tpu.pipeline_mode<synchronous>, transform_indices = @transform_1, window_bounds = array<i64: 32, 144>}, {pipeline_mode = #tpu.pipeline_mode<synchronous>, transform_indices = @transform_2, window_bounds = array<i64: 32, 1>}, {pipeline_mode = #tpu.pipeline_mode<synchronous>, transform_indices = @transform_3, window_bounds = array<i64: 8, 1>}, {pipeline_mode = #tpu.pipeline_mode<synchronous>, transform_indices = @transform_4, window_bounds = array<i64: 8, 1>}, {transform_indices = @transform_5, window_bounds = array<i64: 32, 128>}]} {
    %c128_i32 = arith.constant 128 : i32
    %0 = arith.muli %arg1, %c128_i32 : i32
    %1 = tpu.assume_multiple %0, 128 : i32
    %c0_i32 = arith.constant 0 : i32
    %2 = arith.cmpi eq, %arg0, %c0_i32 : i32
    %3 = arith.extui %2 : i1 to i32
    %c0_i32_0 = arith.constant 0 : i32
    %4 = arith.cmpi ne, %3, %c0_i32_0 : i32
    scf.if %4 {
      %c0 = arith.constant 0 : index
      %c0_2 = arith.constant 0 : index
      %8 = vector.load %arg3[%c0, %c0_2] : memref<32x144xbf16, #tpu.memory_space<vmem>>, vector<32x144xbf16>
      %c0_3 = arith.constant 0 : index
      %c0_4 = arith.constant 0 : index
      %9 = vector.load %arg2[%c0_3, %c0_4] : memref<144x128xbf16, #tpu.memory_space<vmem>>, vector<144x128xbf16>
      %cst = arith.constant dense<0.000000e+00> : vector<32x128xf32>
      %10 = tpu.matmul %8, %9, %cst {dimension_numbers = #tpu.dot_dimension_numbers<[1], [0], [0], [1], [0, 0, 1, 1], [], []>} : vector<32x144xbf16>, vector<144x128xbf16>, vector<32x128xf32> -> vector<32x128xf32>
      %c0_5 = arith.constant 0 : index
      %c0_6 = arith.constant 0 : index
      %11 = vector.load %arg4[%c0_5, %c0_6] : memref<32x1xf32, #tpu.memory_space<vmem>>, vector<32x1xf32>
      %12 = vector.broadcast %11 : vector<32x1xf32> to vector<32x128xf32>
      %13 = arith.addf %10, %12 : vector<32x128xf32>
      %c0_7 = arith.constant 0 : index
      %14 = arith.index_cast %1 : i32 to index
      %15 = vector.load %arg8[%c0_7, %14] : memref<32x128xf32, #tpu.memory_space<vmem>>, vector<32x128xf32>
      tpu.vector_store %arg8[%c0_7, %14], %13 {strides = array<i32>} : memref<32x128xf32, #tpu.memory_space<vmem>>, vector<32x128xf32>,
      %c0_i32_8 = arith.constant 0 : i32
      %16 = arith.cmpi eq, %arg1, %c0_i32_8 : i32
      %17 = arith.extui %16 : i1 to i32
      %c0_i32_9 = arith.constant 0 : i32
      %18 = arith.cmpi ne, %17, %c0_i32_9 : i32
      scf.if %18 {
        %cst_14 = arith.constant 0.000000e+00 : f32
        %25 = vector.broadcast %cst_14 : f32 to vector<8x1xf32>
        %c0_15 = arith.constant 0 : index
        %c0_16 = arith.constant 0 : index
        %26 = vector.load %arg9[%c0_15, %c0_16] : memref<8x1xf32, #tpu.memory_space<vmem>>, vector<8x1xf32>
        tpu.vector_store %arg9[%c0_15, %c0_16], %25 {strides = array<i32>} : memref<8x1xf32, #tpu.memory_space<vmem>>, vector<8x1xf32>,
        %cst_17 = arith.constant 0.000000e+00 : f32
        %27 = vector.broadcast %cst_17 : f32 to vector<8x1xf32>
        %c0_18 = arith.constant 0 : index
        %c0_19 = arith.constant 0 : index
        %28 = vector.load %arg10[%c0_18, %c0_19] : memref<8x1xf32, #tpu.memory_space<vmem>>, vector<8x1xf32>
        tpu.vector_store %arg10[%c0_18, %c0_19], %27 {strides = array<i32>} : memref<8x1xf32, #tpu.memory_space<vmem>>, vector<8x1xf32>,
      } else {
      }
      %c0_i32_10 = arith.constant 0 : i32
      %19 = arith.cmpi eq, %arg1, %c0_i32_10 : i32
      %20 = arith.extui %19 : i1 to i32
      %c0_i32_11 = arith.constant 0 : i32
      %21 = arith.cmpi ne, %20, %c0_i32_11 : i32
      scf.if %21 {
        %25 = tpu.iota {dimensions = array<i32: 1>} : vector<32x128xi32>
        %c128_i32_14 = arith.constant 128 : i32
        %26 = arith.muli %arg1, %c128_i32_14 : i32
        %27 = vector.broadcast %26 : i32 to vector<32x128xi32>
        %28 = arith.addi %25, %27 : vector<32x128xi32>
        %c32_i32 = arith.constant 32 : i32
        %29 = vector.broadcast %c32_i32 : i32 to vector<32x128xi32>
        %30 = arith.cmpi slt, %28, %29 : vector<32x128xi32>
        %cst_15 = arith.constant 0.000000e+00 : f32
        %31 = vector.broadcast %cst_15 : f32 to vector<32x128xf32>
        %32 = arith.select %30, %13, %31 : vector<32x128xi1>, vector<32x128xf32>
        %cst_16 = arith.constant 0.000000e+00 : f32
        %33 = vector.broadcast %cst_16 : f32 to vector<8x1xf32>
        %cst_17 = arith.constant 0.000000e+00 : f32
        %34 = vector.broadcast %cst_17 : f32 to vector<8x1xf32>
        %35 = vector.extract_strided_slice %32 {offsets = [0, 0], sizes = [8, 128], strides = [1, 1]} : vector<32x128xf32> to vector<8x128xf32>
        %cst_18 = arith.constant dense<0.000000e+00> : vector<8xf32>
        %36 = vector.multi_reduction <add>, %35, %cst_18 [1] : vector<8x128xf32> to vector<8xf32>
        %37 = vector.shape_cast %36 : vector<8xf32> to vector<8x1xf32>
        %38 = arith.addf %33, %37 : vector<8x1xf32>
        %39 = arith.mulf %35, %35 : vector<8x128xf32>
        %cst_19 = arith.constant dense<0.000000e+00> : vector<8xf32>
        %40 = vector.multi_reduction <add>, %39, %cst_19 [1] : vector<8x128xf32> to vector<8xf32>
        %41 = vector.shape_cast %40 : vector<8xf32> to vector<8x1xf32>
        %42 = arith.addf %34, %41 : vector<8x1xf32>
        %43 = vector.extract_strided_slice %32 {offsets = [8, 0], sizes = [8, 128], strides = [1, 1]} : vector<32x128xf32> to vector<8x128xf32>
        %cst_20 = arith.constant dense<0.000000e+00> : vector<8xf32>
        %44 = vector.multi_reduction <add>, %43, %cst_20 [1] : vector<8x128xf32> to vector<8xf32>
        %45 = vector.shape_cast %44 : vector<8xf32> to vector<8x1xf32>
        %46 = arith.addf %38, %45 : vector<8x1xf32>
        %47 = arith.mulf %43, %43 : vector<8x128xf32>
        %cst_21 = arith.constant dense<0.000000e+00> : vector<8xf32>
        %48 = vector.multi_reduction <add>, %47, %cst_21 [1] : vector<8x128xf32> to vector<8xf32>
        %49 = vector.shape_cast %48 : vector<8xf32> to vector<8x1xf32>
        %50 = arith.addf %42, %49 : vector<8x1xf32>
        %51 = vector.extract_strided_slice %32 {offsets = [16, 0], sizes = [8, 128], strides = [1, 1]} : vector<32x128xf32> to vector<8x128xf32>
        %cst_22 = arith.constant dense<0.000000e+00> : vector<8xf32>
        %52 = vector.multi_reduction <add>, %51, %cst_22 [1] : vector<8x128xf32> to vector<8xf32>
        %53 = vector.shape_cast %52 : vector<8xf32> to vector<8x1xf32>
        %54 = arith.addf %46, %53 : vector<8x1xf32>
        %55 = arith.mulf %51, %51 : vector<8x128xf32>
        %cst_23 = arith.constant dense<0.000000e+00> : vector<8xf32>
        %56 = vector.multi_reduction <add>, %55, %cst_23 [1] : vector<8x128xf32> to vector<8xf32>
        %57 = vector.shape_cast %56 : vector<8xf32> to vector<8x1xf32>
        %58 = arith.addf %50, %57 : vector<8x1xf32>
        %59 = vector.extract_strided_slice %32 {offsets = [24, 0], sizes = [8, 128], strides = [1, 1]} : vector<32x128xf32> to vector<8x128xf32>
        %cst_24 = arith.constant dense<0.000000e+00> : vector<8xf32>
        %60 = vector.multi_reduction <add>, %59, %cst_24 [1] : vector<8x128xf32> to vector<8xf32>
        %61 = vector.shape_cast %60 : vector<8xf32> to vector<8x1xf32>
        %62 = arith.addf %54, %61 : vector<8x1xf32>
        %63 = arith.mulf %59, %59 : vector<8x128xf32>
        %cst_25 = arith.constant dense<0.000000e+00> : vector<8xf32>
        %64 = vector.multi_reduction <add>, %63, %cst_25 [1] : vector<8x128xf32> to vector<8xf32>
        %65 = vector.shape_cast %64 : vector<8xf32> to vector<8x1xf32>
        %66 = arith.addf %58, %65 : vector<8x1xf32>
        %c0_26 = arith.constant 0 : index
        %c0_27 = arith.constant 0 : index
        %67 = vector.load %arg9[%c0_26, %c0_27] : memref<8x1xf32, #tpu.memory_space<vmem>>, vector<8x1xf32>
        %68 = arith.addf %67, %62 : vector<8x1xf32>
        %c0_28 = arith.constant 0 : index
        %c0_29 = arith.constant 0 : index
        %69 = vector.load %arg9[%c0_28, %c0_29] : memref<8x1xf32, #tpu.memory_space<vmem>>, vector<8x1xf32>
        tpu.vector_store %arg9[%c0_28, %c0_29], %68 {strides = array<i32>} : memref<8x1xf32, #tpu.memory_space<vmem>>, vector<8x1xf32>,
        %c0_30 = arith.constant 0 : index
        %c0_31 = arith.constant 0 : index
        %70 = vector.load %arg10[%c0_30, %c0_31] : memref<8x1xf32, #tpu.memory_space<vmem>>, vector<8x1xf32>
        %71 = arith.addf %70, %66 : vector<8x1xf32>
        %c0_32 = arith.constant 0 : index
        %c0_33 = arith.constant 0 : index
        %72 = vector.load %arg10[%c0_32, %c0_33] : memref<8x1xf32, #tpu.memory_space<vmem>>, vector<8x1xf32>
        tpu.vector_store %arg10[%c0_32, %c0_33], %71 {strides = array<i32>} : memref<8x1xf32, #tpu.memory_space<vmem>>, vector<8x1xf32>,
      } else {
      }
      %c0_i32_12 = arith.constant 0 : i32
      %22 = arith.cmpi ne, %arg1, %c0_i32_12 : i32
      %23 = arith.extui %22 : i1 to i32
      %c0_i32_13 = arith.constant 0 : i32
      %24 = arith.cmpi ne, %23, %c0_i32_13 : i32
      scf.if %24 {
        %cst_14 = arith.constant 0.000000e+00 : f32
        %25 = vector.broadcast %cst_14 : f32 to vector<8x1xf32>
        %cst_15 = arith.constant 0.000000e+00 : f32
        %26 = vector.broadcast %cst_15 : f32 to vector<8x1xf32>
        %27 = vector.extract_strided_slice %13 {offsets = [0, 0], sizes = [8, 128], strides = [1, 1]} : vector<32x128xf32> to vector<8x128xf32>
        %cst_16 = arith.constant dense<0.000000e+00> : vector<8xf32>
        %28 = vector.multi_reduction <add>, %27, %cst_16 [1] : vector<8x128xf32> to vector<8xf32>
        %29 = vector.shape_cast %28 : vector<8xf32> to vector<8x1xf32>
        %30 = arith.addf %25, %29 : vector<8x1xf32>
        %31 = arith.mulf %27, %27 : vector<8x128xf32>
        %cst_17 = arith.constant dense<0.000000e+00> : vector<8xf32>
        %32 = vector.multi_reduction <add>, %31, %cst_17 [1] : vector<8x128xf32> to vector<8xf32>
        %33 = vector.shape_cast %32 : vector<8xf32> to vector<8x1xf32>
        %34 = arith.addf %26, %33 : vector<8x1xf32>
        %35 = vector.extract_strided_slice %13 {offsets = [8, 0], sizes = [8, 128], strides = [1, 1]} : vector<32x128xf32> to vector<8x128xf32>
        %cst_18 = arith.constant dense<0.000000e+00> : vector<8xf32>
        %36 = vector.multi_reduction <add>, %35, %cst_18 [1] : vector<8x128xf32> to vector<8xf32>
        %37 = vector.shape_cast %36 : vector<8xf32> to vector<8x1xf32>
        %38 = arith.addf %30, %37 : vector<8x1xf32>
        %39 = arith.mulf %35, %35 : vector<8x128xf32>
        %cst_19 = arith.constant dense<0.000000e+00> : vector<8xf32>
        %40 = vector.multi_reduction <add>, %39, %cst_19 [1] : vector<8x128xf32> to vector<8xf32>
        %41 = vector.shape_cast %40 : vector<8xf32> to vector<8x1xf32>
        %42 = arith.addf %34, %41 : vector<8x1xf32>
        %43 = vector.extract_strided_slice %13 {offsets = [16, 0], sizes = [8, 128], strides = [1, 1]} : vector<32x128xf32> to vector<8x128xf32>
        %cst_20 = arith.constant dense<0.000000e+00> : vector<8xf32>
        %44 = vector.multi_reduction <add>, %43, %cst_20 [1] : vector<8x128xf32> to vector<8xf32>
        %45 = vector.shape_cast %44 : vector<8xf32> to vector<8x1xf32>
        %46 = arith.addf %38, %45 : vector<8x1xf32>
        %47 = arith.mulf %43, %43 : vector<8x128xf32>
        %cst_21 = arith.constant dense<0.000000e+00> : vector<8xf32>
        %48 = vector.multi_reduction <add>, %47, %cst_21 [1] : vector<8x128xf32> to vector<8xf32>
        %49 = vector.shape_cast %48 : vector<8xf32> to vector<8x1xf32>
        %50 = arith.addf %42, %49 : vector<8x1xf32>
        %51 = vector.extract_strided_slice %13 {offsets = [24, 0], sizes = [8, 128], strides = [1, 1]} : vector<32x128xf32> to vector<8x128xf32>
        %cst_22 = arith.constant dense<0.000000e+00> : vector<8xf32>
        %52 = vector.multi_reduction <add>, %51, %cst_22 [1] : vector<8x128xf32> to vector<8xf32>
        %53 = vector.shape_cast %52 : vector<8xf32> to vector<8x1xf32>
        %54 = arith.addf %46, %53 : vector<8x1xf32>
        %55 = arith.mulf %51, %51 : vector<8x128xf32>
        %cst_23 = arith.constant dense<0.000000e+00> : vector<8xf32>
        %56 = vector.multi_reduction <add>, %55, %cst_23 [1] : vector<8x128xf32> to vector<8xf32>
        %57 = vector.shape_cast %56 : vector<8xf32> to vector<8x1xf32>
        %58 = arith.addf %50, %57 : vector<8x1xf32>
        %c0_24 = arith.constant 0 : index
        %c0_25 = arith.constant 0 : index
        %59 = vector.load %arg9[%c0_24, %c0_25] : memref<8x1xf32, #tpu.memory_space<vmem>>, vector<8x1xf32>
        %60 = arith.addf %59, %54 : vector<8x1xf32>
        %c0_26 = arith.constant 0 : index
        %c0_27 = arith.constant 0 : index
        %61 = vector.load %arg9[%c0_26, %c0_27] : memref<8x1xf32, #tpu.memory_space<vmem>>, vector<8x1xf32>
        tpu.vector_store %arg9[%c0_26, %c0_27], %60 {strides = array<i32>} : memref<8x1xf32, #tpu.memory_space<vmem>>, vector<8x1xf32>,
        %c0_28 = arith.constant 0 : index
        %c0_29 = arith.constant 0 : index
        %62 = vector.load %arg10[%c0_28, %c0_29] : memref<8x1xf32, #tpu.memory_space<vmem>>, vector<8x1xf32>
        %63 = arith.addf %62, %58 : vector<8x1xf32>
        %c0_30 = arith.constant 0 : index
        %c0_31 = arith.constant 0 : index
        %64 = vector.load %arg10[%c0_30, %c0_31] : memref<8x1xf32, #tpu.memory_space<vmem>>, vector<8x1xf32>
        tpu.vector_store %arg10[%c0_30, %c0_31], %63 {strides = array<i32>} : memref<8x1xf32, #tpu.memory_space<vmem>>, vector<8x1xf32>,
      } else {
      }
    } else {
    }
    %c1_i32 = arith.constant 1 : i32
    %5 = arith.cmpi eq, %arg0, %c1_i32 : i32
    %6 = arith.extui %5 : i1 to i32
    %c0_i32_1 = arith.constant 0 : i32
    %7 = arith.cmpi ne, %6, %c0_i32_1 : i32
    scf.if %7 {
      %c0 = arith.constant 0 : index
      %c0_2 = arith.constant 0 : index
      %8 = vector.load %arg9[%c0, %c0_2] : memref<8x1xf32, #tpu.memory_space<vmem>>, vector<8x1xf32>
      %cst = arith.constant 7.812500e-03 : f32
      %9 = vector.broadcast %cst : f32 to vector<8x1xf32>
      %10 = arith.mulf %8, %9 : vector<8x1xf32>
      %c0_3 = arith.constant 0 : index
      %c0_4 = arith.constant 0 : index
      %11 = vector.load %arg10[%c0_3, %c0_4] : memref<8x1xf32, #tpu.memory_space<vmem>>, vector<8x1xf32>
      %cst_5 = arith.constant 7.812500e-03 : f32
      %12 = vector.broadcast %cst_5 : f32 to vector<8x1xf32>
      %13 = arith.mulf %11, %12 : vector<8x1xf32>
      %14 = arith.mulf %10, %10 : vector<8x1xf32>
      %15 = arith.subf %13, %14 : vector<8x1xf32>
      %cst_6 = arith.constant 0.000000e+00 : f32
      %16 = vector.broadcast %cst_6 : f32 to vector<8x1xf32>
      %17 = arith.maximumf %15, %16 : vector<8x1xf32>
      %cst_7 = arith.constant 9.99999974E-6 : f32
      %18 = vector.broadcast %cst_7 : f32 to vector<8x1xf32>
      %19 = arith.addf %17, %18 : vector<8x1xf32>
      %20 = math.rsqrt %19 : vector<8x1xf32>
      %c0_8 = arith.constant 0 : index
      %c0_9 = arith.constant 0 : index
      %21 = vector.load %arg5[%c0_8, %c0_9] : memref<8x1xf32, #tpu.memory_space<vmem>>, vector<8x1xf32>
      %22 = arith.mulf %20, %21 : vector<8x1xf32>
      %c0_10 = arith.constant 0 : index
      %c0_11 = arith.constant 0 : index
      %23 = vector.load %arg6[%c0_10, %c0_11] : memref<8x1xf32, #tpu.memory_space<vmem>>, vector<8x1xf32>
      %24 = arith.mulf %10, %22 : vector<8x1xf32>
      %25 = arith.subf %23, %24 : vector<8x1xf32>
      %c0_12 = arith.constant 0 : index
      %26 = arith.index_cast %1 : i32 to index
      %27 = vector.load %arg8[%c0_12, %26] : memref<32x128xf32, #tpu.memory_space<vmem>>, vector<8x128xf32>
      %28 = vector.broadcast %22 : vector<8x1xf32> to vector<8x128xf32>
      %29 = arith.mulf %27, %28 : vector<8x128xf32>
      %30 = vector.broadcast %25 : vector<8x1xf32> to vector<8x128xf32>
      %31 = arith.addf %29, %30 : vector<8x128xf32>
      %cst_13 = arith.constant 0.000000e+00 : f32
      %32 = vector.broadcast %cst_13 : f32 to vector<8x128xf32>
      %33 = arith.maximumf %31, %32 : vector<8x128xf32>
      %c0_14 = arith.constant 0 : index
      %c0_15 = arith.constant 0 : index
      %34 = vector.load %arg7[%c0_14, %c0_15] : memref<32x128xf32, #tpu.memory_space<vmem>>, vector<8x128xf32>
      tpu.vector_store %arg7[%c0_14, %c0_15], %33 {strides = array<i32>} : memref<32x128xf32, #tpu.memory_space<vmem>>, vector<8x128xf32>,
      %c8 = arith.constant 8 : index
      %35 = arith.index_cast %1 : i32 to index
      %36 = vector.load %arg8[%c8, %35] : memref<32x128xf32, #tpu.memory_space<vmem>>, vector<8x128xf32>
      %37 = vector.broadcast %22 : vector<8x1xf32> to vector<8x128xf32>
      %38 = arith.mulf %36, %37 : vector<8x128xf32>
      %39 = vector.broadcast %25 : vector<8x1xf32> to vector<8x128xf32>
      %40 = arith.addf %38, %39 : vector<8x128xf32>
      %cst_16 = arith.constant 0.000000e+00 : f32
      %41 = vector.broadcast %cst_16 : f32 to vector<8x128xf32>
      %42 = arith.maximumf %40, %41 : vector<8x128xf32>
      %c8_17 = arith.constant 8 : index
      %c0_18 = arith.constant 0 : index
      %43 = vector.load %arg7[%c8_17, %c0_18] : memref<32x128xf32, #tpu.memory_space<vmem>>, vector<8x128xf32>
      tpu.vector_store %arg7[%c8_17, %c0_18], %42 {strides = array<i32>} : memref<32x128xf32, #tpu.memory_space<vmem>>, vector<8x128xf32>,
      %c16 = arith.constant 16 : index
      %44 = arith.index_cast %1 : i32 to index
      %45 = vector.load %arg8[%c16, %44] : memref<32x128xf32, #tpu.memory_space<vmem>>, vector<8x128xf32>
      %46 = vector.broadcast %22 : vector<8x1xf32> to vector<8x128xf32>
      %47 = arith.mulf %45, %46 : vector<8x128xf32>
      %48 = vector.broadcast %25 : vector<8x1xf32> to vector<8x128xf32>
      %49 = arith.addf %47, %48 : vector<8x128xf32>
      %cst_19 = arith.constant 0.000000e+00 : f32
      %50 = vector.broadcast %cst_19 : f32 to vector<8x128xf32>
      %51 = arith.maximumf %49, %50 : vector<8x128xf32>
      %c16_20 = arith.constant 16 : index
      %c0_21 = arith.constant 0 : index
      %52 = vector.load %arg7[%c16_20, %c0_21] : memref<32x128xf32, #tpu.memory_space<vmem>>, vector<8x128xf32>
      tpu.vector_store %arg7[%c16_20, %c0_21], %51 {strides = array<i32>} : memref<32x128xf32, #tpu.memory_space<vmem>>, vector<8x128xf32>,
      %c24 = arith.constant 24 : index
      %53 = arith.index_cast %1 : i32 to index
      %54 = vector.load %arg8[%c24, %53] : memref<32x128xf32, #tpu.memory_space<vmem>>, vector<8x128xf32>
      %55 = vector.broadcast %22 : vector<8x1xf32> to vector<8x128xf32>
      %56 = arith.mulf %54, %55 : vector<8x128xf32>
      %57 = vector.broadcast %25 : vector<8x1xf32> to vector<8x128xf32>
      %58 = arith.addf %56, %57 : vector<8x128xf32>
      %cst_22 = arith.constant 0.000000e+00 : f32
      %59 = vector.broadcast %cst_22 : f32 to vector<8x128xf32>
      %60 = arith.maximumf %58, %59 : vector<8x128xf32>
      %c24_23 = arith.constant 24 : index
      %c0_24 = arith.constant 0 : index
      %61 = vector.load %arg7[%c24_23, %c0_24] : memref<32x128xf32, #tpu.memory_space<vmem>>, vector<8x128xf32>
      tpu.vector_store %arg7[%c24_23, %c0_24], %60 {strides = array<i32>} : memref<32x128xf32, #tpu.memory_space<vmem>>, vector<8x128xf32>,
    } else {
    }
    return
  }
  func.func @transform_0(%arg0: i32, %arg1: i32) -> (i32, i32) {
    %c1_i32 = arith.constant 1 : i32
    %0 = arith.subi %c1_i32, %arg0 : i32
    %1 = arith.muli %arg1, %0 : i32
    %c0_i32 = arith.constant 0 : i32
    %c0_i32_0 = arith.constant 0 : i32
    return %c0_i32, %1 : i32, i32
  }
  func.func @transform_1(%arg0: i32, %arg1: i32) -> (i32, i32) {
    %c0_i32 = arith.constant 0 : i32
    %c0_i32_0 = arith.constant 0 : i32
    %c0_i32_1 = arith.constant 0 : i32
    return %c0_i32, %c0_i32_0 : i32, i32
  }
  func.func @transform_2(%arg0: i32, %arg1: i32) -> (i32, i32) {
    %c0_i32 = arith.constant 0 : i32
    %c0_i32_0 = arith.constant 0 : i32
    %c0_i32_1 = arith.constant 0 : i32
    return %c0_i32, %c0_i32_0 : i32, i32
  }
  func.func @transform_3(%arg0: i32, %arg1: i32) -> (i32, i32) {
    %c0_i32 = arith.constant 0 : i32
    %c0_i32_0 = arith.constant 0 : i32
    %c0_i32_1 = arith.constant 0 : i32
    return %c0_i32, %c0_i32_0 : i32, i32
  }
  func.func @transform_4(%arg0: i32, %arg1: i32) -> (i32, i32) {
    %c0_i32 = arith.constant 0 : i32
    %c0_i32_0 = arith.constant 0 : i32
    %c0_i32_1 = arith.constant 0 : i32
    return %c0_i32, %c0_i32_0 : i32, i32
  }
  func.func @transform_5(%arg0: i32, %arg1: i32) -> (i32, i32) {
    %0 = arith.muli %arg1, %arg0 : i32
    %c0_i32 = arith.constant 0 : i32
    %c0_i32_0 = arith.constant 0 : i32
    return %c0_i32, %0 : i32, i32
  }
}

module attributes {stable_mosaic.version = 11 : i64} {
  func.func @kernel(%arg0: i32, %arg1: memref<72x128xbf16, #tpu.memory_space<vmem>>, %arg2: memref<4x72xbf16, #tpu.memory_space<vmem>>, %arg3: memref<4x1xf32, #tpu.memory_space<vmem>>, %arg4: memref<4x128xf32, #tpu.memory_space<vmem>>) attributes {dimension_semantics = [#tpu.dimension_semantics<parallel>], iteration_bounds = array<i64: 1>, scalar_prefetch = 0 : i64, scratch_operands = 0 : i64, tpu.core_type = #tpu.core_type<tc>, window_params = [{transform_indices = @transform_0, window_bounds = array<i64: 72, 128>}, {pipeline_mode = #tpu.pipeline_mode<synchronous>, transform_indices = @transform_1, window_bounds = array<i64: 4, 72>}, {pipeline_mode = #tpu.pipeline_mode<synchronous>, transform_indices = @transform_2, window_bounds = array<i64: 4, 1>}, {transform_indices = @transform_3, window_bounds = array<i64: 4, 128>}]} {
    %c0 = arith.constant 0 : index
    %c0_0 = arith.constant 0 : index
    %0 = vector.load %arg2[%c0, %c0_0] : memref<4x72xbf16, #tpu.memory_space<vmem>>, vector<4x72xbf16>
    %c0_1 = arith.constant 0 : index
    %c0_2 = arith.constant 0 : index
    %1 = vector.load %arg1[%c0_1, %c0_2] : memref<72x128xbf16, #tpu.memory_space<vmem>>, vector<72x128xbf16>
    %cst = arith.constant dense<0.000000e+00> : vector<4x128xf32>
    %2 = tpu.matmul %0, %1, %cst {dimension_numbers = #tpu.dot_dimension_numbers<[1], [0], [0], [1], [0, 0, 1, 1], [], []>} : vector<4x72xbf16>, vector<72x128xbf16>, vector<4x128xf32> -> vector<4x128xf32>
    %c0_3 = arith.constant 0 : index
    %c0_4 = arith.constant 0 : index
    %3 = vector.load %arg3[%c0_3, %c0_4] : memref<4x1xf32, #tpu.memory_space<vmem>>, vector<4x1xf32>
    %4 = vector.broadcast %3 : vector<4x1xf32> to vector<4x128xf32>
    %5 = arith.addf %2, %4 : vector<4x128xf32>
    %6 = arith.negf %5 : vector<4x128xf32>
    %7 = math.exp %6 : vector<4x128xf32>
    %cst_5 = arith.constant 1.000000e+00 : f32
    %8 = vector.broadcast %cst_5 : f32 to vector<4x128xf32>
    %9 = arith.addf %8, %7 : vector<4x128xf32>
    %10 = arith.divf %8, %9 : vector<4x128xf32>
    %c0_6 = arith.constant 0 : index
    %c0_7 = arith.constant 0 : index
    %11 = vector.load %arg4[%c0_6, %c0_7] : memref<4x128xf32, #tpu.memory_space<vmem>>, vector<4x128xf32>
    tpu.vector_store %arg4[%c0_6, %c0_7], %10 {strides = array<i32>} : memref<4x128xf32, #tpu.memory_space<vmem>>, vector<4x128xf32>,
    return
  }
  func.func @transform_0(%arg0: i32) -> (i32, i32) {
    %c0_i32 = arith.constant 0 : i32
    %c0_i32_0 = arith.constant 0 : i32
    return %c0_i32, %arg0 : i32, i32
  }
  func.func @transform_1(%arg0: i32) -> (i32, i32) {
    %c0_i32 = arith.constant 0 : i32
    %c0_i32_0 = arith.constant 0 : i32
    %c0_i32_1 = arith.constant 0 : i32
    return %c0_i32, %c0_i32_0 : i32, i32
  }
  func.func @transform_2(%arg0: i32) -> (i32, i32) {
    %c0_i32 = arith.constant 0 : i32
    %c0_i32_0 = arith.constant 0 : i32
    %c0_i32_1 = arith.constant 0 : i32
    return %c0_i32, %c0_i32_0 : i32, i32
  }
  func.func @transform_3(%arg0: i32) -> (i32, i32) {
    %c0_i32 = arith.constant 0 : i32
    %c0_i32_0 = arith.constant 0 : i32
    return %c0_i32, %arg0 : i32, i32
  }
}

</mosaic_0001>

<llo_original>
// kernel: decoder_forward.5
$region0: #{decoder_forward.5}
  #allocation0 [shape = 'u32[]', space=smem, size = 0x4, offset = 0x4, fixed_abs, tag = 'smem constant byte address 0x4 - core index']
  #allocation1 [shape = 'u32[72,128]{1,0:T(1,128)}', space=vmem, size = 0x9000, scoped, tag = 'internal scratch']
  %s0 = inlined_call_operand.vmem [shape: f32[2,8], index: 0, kind: input, shape index: {}]
  %s1 = inlined_call_operand.hbm [shape: f32[8,256], index: 1, kind: input, shape index: {}]
  %s2 = inlined_call_operand.vmem [shape: f32[1,256], index: 2, kind: input, shape index: {}]
  %s3 = inlined_call_operand.vmem [shape: f32[1,256], index: 3, kind: input, shape index: {}]
  %s4 = inlined_call_operand.vmem [shape: f32[1,256], index: 4, kind: input, shape index: {}]
  %s5 = inlined_call_operand.vmem [shape: f32[2,256], index: 5, kind: output, shape index: {}]
  %s6 = sld [smem:[#allocation0]]
  $region34: #{decoder_forward.5} parent=0
    _
  %s8 = ssub.s32 1, %s6
  %s9 = scalar_select 0, %s8, %s6
  $region1: #{decoder_forward.5} parent=0
    #allocation2 [shape = 'u8[8192]{0}', space=vmem, size = 0x2000, scoped, tag = 'input window, operand 1, single buffered']
    #allocation3 [shape = 's32[1]{0}', space=sflag, size = 0x4, scoped, tag = 'scoped memory for decoder_forward.5']
    %10 = vsyncpa [#allocation3], 0
    // Predicated region
    $region2: #{decoder_forward.5} parent=1 // pred_check
      _
    $region3: #{decoder_forward.5} parent=1 // pred_check_branch
      %12 = sbr.rel (0) target = $region5
    $region4: #{decoder_forward.5} parent=1 // pred_region
      _
    $region5: #{decoder_forward.5} parent=1 // pred_fallthru
      _
    // Predicated region
    $region6: #{decoder_forward.5} parent=1 // pred_check
      _
    $region7: #{decoder_forward.5} parent=1 // pred_check_branch
      %14 = sbr.rel (0) target = $region9
    $region8: #{decoder_forward.5} parent=1 // pred_region
      %16 = vsyncadd [#allocation3], 0
      %s18 = sshll.u32 %s1, 4
      %s19 = int_to_ptr.hbm [resolvable:$true] %s18
      %s20 = sshll.u32 [#allocation2], 4
      %s21 = int_to_ptr.vmem [resolvable:$true] %s20
      %23 = dma.hbm_to_vmem [thread:$0]  %s19, 256, %s21, [#allocation3]
    $region9: #{decoder_forward.5} parent=1 // pred_fallthru
      _
    // Predicated region
    $region10: #{decoder_forward.5} parent=1 // pred_check
      _
    $region11: #{decoder_forward.5} parent=1 // pred_check_branch
      %25 = sbr.rel (0) target = $region13
    $region12: #{decoder_forward.5} parent=1 // pred_region
      _
    $region13: #{decoder_forward.5} parent=1 // pred_fallthru
      _
    // Predicated region
    $region14: #{decoder_forward.5} parent=1 // pred_check
      _
    $region15: #{decoder_forward.5} parent=1 // pred_check_branch
      %27 = sbr.rel (0) target = $region17
    $region16: #{decoder_forward.5} parent=1 // pred_region
      _
    $region17: #{decoder_forward.5} parent=1 // pred_fallthru
      _
    // Predicated region
    $region18: #{decoder_forward.5} parent=1 // pred_check
      _
    $region19: #{decoder_forward.5} parent=1 // pred_check_branch
      %29 = sbr.rel (0) target = $region21
    $region20: #{decoder_forward.5} parent=1 // pred_region
      _
    $region21: #{decoder_forward.5} parent=1 // pred_fallthru
      _
    // Predicated region
    $region22: #{decoder_forward.5} parent=1 // pred_check
      _
    $region23: #{decoder_forward.5} parent=1 // pred_check_branch
      %31 = sbr.rel (0) target = $region25
    $region24: #{decoder_forward.5} parent=1 // pred_region
      %33 = dma.done [#allocation3], 256
    $region25: #{decoder_forward.5} parent=1 // pred_fallthru
      _
    %v34 = vld [vmem:[%s0] sm:$0x3]
    %v35 = vld [vmem:[#allocation2] sm:$0xff]
    %v36 = vld [vmem:[#allocation2 + $0x8] sm:$0xff]
    %v37 = vld [vmem:[%s2] sm:$0x3]
    %39 = vset.pattern.permute.xlu0 0
    %40 = vperm.xlu0 %39, %v34
    %v41 = vpop.permute.xlu0 %40
    %v43 = vperm.slane %v35, 0
    %v44 = vperm.slane %v36, 0
    %v45 = vmul.f32 %v41, %v43
    %v46 = vmul.f32 %v41, %v44
    %v48 = vperm.slane %v37, 0
    %v49 = vperm.slane %v37, 1
    %v52 = vadd.f32 %v48, %v45
    %v53 = vadd.f32 %v49, %v46
    %54 = vset.pattern.permute.xlu0 1
    %55 = vperm.xlu0 %54, %v34
    %v56 = vpop.permute.xlu0 %55
    %v58 = vperm.slane %v35, 1
    %v59 = vperm.slane %v36, 1
    %v60 = vmul.f32 %v56, %v58
    %v61 = vmul.f32 %v56, %v59
    %v62 = vadd.f32 %v52, %v60
    %v63 = vadd.f32 %v53, %v61
    %64 = vset.pattern.permute.xlu0 2
    %65 = vperm.xlu0 %64, %v34
    %v66 = vpop.permute.xlu0 %65
    %v68 = vperm.slane %v35, 2
    %v69 = vperm.slane %v36, 2
    %v70 = vmul.f32 %v66, %v68
    %v71 = vmul.f32 %v66, %v69
    %v72 = vadd.f32 %v62, %v70
    %v73 = vadd.f32 %v63, %v71
    %74 = vset.pattern.permute.xlu0 3
    %75 = vperm.xlu0 %74, %v34
    %v76 = vpop.permute.xlu0 %75
    %v78 = vperm.slane %v35, 3
    %v79 = vperm.slane %v36, 3
    %v80 = vmul.f32 %v76, %v78
    %v81 = vmul.f32 %v76, %v79
    %v82 = vadd.f32 %v72, %v80
    %v83 = vadd.f32 %v73, %v81
    %84 = vset.pattern.permute.xlu0 4
    %85 = vperm.xlu0 %84, %v34
    %v86 = vpop.permute.xlu0 %85
    %v88 = vperm.slane %v35, 4
    %v89 = vperm.slane %v36, 4
    %v90 = vmul.f32 %v86, %v88
    %v91 = vmul.f32 %v86, %v89
    %v92 = vadd.f32 %v82, %v90
    %v93 = vadd.f32 %v83, %v91
    %94 = vset.pattern.permute.xlu0 5
    %95 = vperm.xlu0 %94, %v34
    %v96 = vpop.permute.xlu0 %95
    %v98 = vperm.slane %v35, 5
    %v99 = vperm.slane %v36, 5
    %v100 = vmul.f32 %v96, %v98
    %v101 = vmul.f32 %v96, %v99
    %v102 = vadd.f32 %v92, %v100
    %v103 = vadd.f32 %v93, %v101
    %104 = vset.pattern.permute.xlu0 6
    %105 = vperm.xlu0 %104, %v34
    %v106 = vpop.permute.xlu0 %105
    %v108 = vperm.slane %v35, 6
    %v109 = vperm.slane %v36, 6
    %v110 = vmul.f32 %v106, %v108
    %v111 = vmul.f32 %v106, %v109
    %v112 = vadd.f32 %v102, %v110
    %v113 = vadd.f32 %v103, %v111
    %114 = vset.pattern.permute.xlu0 7
    %115 = vperm.xlu0 %114, %v34
    %v116 = vpop.permute.xlu0 %115
    %v118 = vperm.slane %v35, 7
    %v119 = vperm.slane %v36, 7
    %v120 = vmul.f32 %v116, %v118
    %v121 = vmul.f32 %v116, %v119
    %v122 = vadd.f32 %v112, %v120
    %v123 = vadd.f32 %v113, %v121
    %vm124 = vcmask 1041408
    %v125 = vsel %vm124, %v122, 0.0
    %v126 = vrot.slane %v125, 4
    %v127 = vadd.f32 %v125, %v126
    %v128 = vrot.slane %v127, 2
    %v129 = vadd.f32 %v127, %v128
    %v130 = vrot.slane %v129, 1
    %v131 = vadd.f32 %v129, %v130
    %v132 = vsel %vm124, %v123, 0.0
    %v133 = vrot.slane %v132, 4
    %v134 = vadd.f32 %v132, %v133
    %v135 = vrot.slane %v134, 2
    %v136 = vadd.f32 %v134, %v135
    %v137 = vrot.slane %v136, 1
    %v138 = vadd.f32 %v136, %v137
    %v139 = vrcp.pop 2.0
    %v140 = vmul.f32 2.0, %v139
    %v141 = vsub.f32 1.0, %v140
    %v142 = vmul.f32 %v139, %v141
    %v143 = vadd.f32 %v139, %v142
    %vm144 = vweird.f32 %v139
    %v145 = vsel %vm144, %v139, %v143
    %v146 = vmul.f32 %v131, %v145
    %v147 = vmul.f32 %v138, %v145
    %v148 = vsub.f32 %v122, %v146
    %v149 = vsub.f32 %v123, %v147
    %v150 = vmul.f32 %v148, %v148
    %v151 = vmul.f32 %v149, %v149
    %v152 = vsel %vm124, %v150, 0.0
    %v153 = vrot.slane %v152, 4
    %v154 = vadd.f32 %v152, %v153
    %v155 = vrot.slane %v154, 2
    %v156 = vadd.f32 %v154, %v155
    %v157 = vrot.slane %v156, 1
    %v158 = vadd.f32 %v156, %v157
    %v159 = vsel %vm124, %v151, 0.0
    %v160 = vrot.slane %v159, 4
    %v161 = vadd.f32 %v159, %v160
    %v162 = vrot.slane %v161, 2
    %v163 = vadd.f32 %v161, %v162
    %v164 = vrot.slane %v163, 1
    %v165 = vadd.f32 %v163, %v164
    %v166 = vmul.f32 %v158, %v145
    %v167 = vmul.f32 %v165, %v145
    %v168 = vadd.f32 %v166, 1e-05
    %v169 = vadd.f32 %v167, 1e-05
    %v170 = vrsqrt.pop %v168
    %v171 = vmul.f32 %v170, %v168
    %v172 = vmul.f32 %v171, %v170
    %v173 = vmul.f32 0.5, %v172
    %v174 = vsub.f32 1.5, %v173
    %v175 = vmul.f32 %v170, %v174
    %vm176 = vweird.f32 %v168
    %vm177 = vweird.f32 %v170
    %vm178 = vmor %vm176, %vm177
    %v179 = vsel %vm178, %v170, %v175
    %v180 = vrsqrt.pop %v169
    %v181 = vmul.f32 %v180, %v169
    %v182 = vmul.f32 %v181, %v180
    %v183 = vmul.f32 0.5, %v182
    %v184 = vsub.f32 1.5, %v183
    %v185 = vmul.f32 %v180, %v184
    %vm186 = vweird.f32 %v169
    %vm187 = vweird.f32 %v180
    %vm188 = vmor %vm186, %vm187
    %v189 = vsel %vm188, %v180, %v185
    %v190 = vmul.f32 %v148, %v179
    %v191 = vmul.f32 %v149, %v189
    %v192 = vld [vmem:[%s3] sm:$0x3]
    %v194 = vperm.slane %v192, 0
    %v195 = vperm.slane %v192, 1
    %v198 = vmul.f32 %v190, %v194
    %v199 = vmul.f32 %v191, %v195
    %v200 = vld [vmem:[%s4] sm:$0x3]
    %v202 = vperm.slane %v200, 0
    %v203 = vperm.slane %v200, 1
    %v206 = vadd.f32 %v198, %v202
    %v207 = vadd.f32 %v199, %v203
    %v208 = vmax.f32 %v206, 0.0
    %v209 = vmax.f32 %v207, 0.0
    %v212 = vrot.slane %v209, 6
    %v213 = vsel %vm124, %v208, %v212
    %215 = vst [vmem:[%s5] sm:$0xf] %v213
    // Predicated region
    $region26: #{decoder_forward.5} parent=1 // pred_check
      _
    $region27: #{decoder_forward.5} parent=1 // pred_check_branch
      %217 = sbr.rel (0) target = $region29
    $region28: #{decoder_forward.5} parent=1 // pred_region
      _
    $region29: #{decoder_forward.5} parent=1 // pred_fallthru
      _
    // Predicated region
    $region30: #{decoder_forward.5} parent=1 // pred_check
      _
    $region31: #{decoder_forward.5} parent=1 // pred_check_branch
      %219 = sbr.rel (0) target = $region33
    $region32: #{decoder_forward.5} parent=1 // pred_region
      _
    $region33: #{decoder_forward.5} parent=1 // pred_fallthru
      _
    %220 = vsyncpa [#allocation3], 1

// kernel: decoder_forward.6
$region0: #{decoder_forward.6}
  #allocation0 [shape = 'u32[]', space=smem, size = 0x4, offset = 0x4, fixed_abs, tag = 'smem constant byte address 0x4 - core index']
  #allocation1 [shape = 'u32[72,128]{1,0:T(1,128)}', space=vmem, size = 0x9000, scoped, tag = 'internal scratch']
  #allocation2 [shape = 'f32[16,128]{1,0:T(8,128)}', space=vmem, size = 0x2000, scoped, tag = 'scratch operand']
  #allocation3 [shape = 'f32[16,1]{1,0:T(8,128)}', space=vmem, size = 0x2000, scoped, tag = 'scratch operand']
  #allocation4 [shape = 'f32[16,1]{1,0:T(8,128)}', space=vmem, size = 0x2000, scoped, tag = 'scratch operand']
  %s0 = inlined_call_operand.vmem [shape: bf16[144,128], index: 0, kind: input, shape index: {}]
  %s1 = inlined_call_operand.vmem [shape: bf16[16,144], index: 1, kind: input, shape index: {}]
  %s2 = inlined_call_operand.vmem [shape: f32[16,1], index: 2, kind: input, shape index: {}]
  %s3 = inlined_call_operand.vmem [shape: f32[16,1], index: 3, kind: input, shape index: {}]
  %s4 = inlined_call_operand.vmem [shape: f32[16,1], index: 4, kind: input, shape index: {}]
  %s5 = inlined_call_operand.vmem [shape: f32[16,128], index: 5, kind: output, shape index: {}]
  %s6 = sld [smem:[#allocation0]]
  $region69: #{decoder_forward.6} parent=0
    _
  %s8 = ssub.s32 1, %s6
  %s9 = scalar_select 0, %s8, %s6
  loop: start=0, step=1, limit=4
  $region2: #{decoder_forward.6} parent=0 // loop_pre_header
    _
  $region3: #{decoder_forward.6} parent=0 // loop_header
    %s11 = sphi 0, %s15
    %p12 = scmp.ge.s32.totalorder %s11, 4
    %s18 = sphi 0, %s30
    %s19 = sphi 0, %s26
    %s20 = sphi 0, %s18
    %s21 = sphi 0, %s19
    %s22 = sphi 0, %s20
    %s23 = sphi 0, %s21
    %s37 = sphi 0, %s39
    %s40 = sphi 0, %s37
    %s41 = sphi 0, %s40
    %s57 = sphi 0, %s41
    %s61 = sphi 0, %s61
    %s63 = sphi 0, %s61
    %s64 = sphi 0, %s63
    %s78 = sphi 0, %s64
    %s82 = sphi 0, %s82
    %s84 = sphi 0, %s82
    %s85 = sphi 0, %s84
    %s99 = sphi 0, %s85
    %s103 = sphi 0, %s103
    %s105 = sphi 0, %s103
    %s106 = sphi 0, %s105
    %s120 = sphi 0, %s106
    %s124 = sphi 0, %s124
    %s126 = sphi 0, %s124
    %s127 = sphi 0, %s126
    %s141 = sphi 0, %s127
    %s149 = sphi 0, %s151
    %s152 = sphi 0, %s149
    %s153 = sphi 0, %s152
    %s169 = sphi 0, %s153
  $region4: #{decoder_forward.6} parent=0 // loop_header_branch
    %14 = sbr.rel (%p12) target = $region8
  $region5: #{decoder_forward.6} parent=0 // loop_body
    %s16 = ssub.s32 %s11, 1
    %s17 = ssub.s32 %s11, 2
    %s24 = sadd.s32 1, %s19
    %p25 = scmp.ge.s32.totalorder %s24, 1
    %s26 = scalar_select %p25, 0, %s24
    %s27 = sadd.s32 1, %s18
    %s28 = scalar_select %p25, %s27, %s18
    %p29 = scmp.ge.s32.totalorder %s28, 2
    %s30 = scalar_select %p29, 0, %s28
    %s31 = ssub.s32 1, %s18
    %s32 = smul.u32 %s19, %s31
    %s33 = ssub.s32 1, %s30
    %s34 = smul.u32 %s26, %s33
    %s35 = ssub.s32 %s32, %s34
    %p36 = scmp.eq.s32.totalorder %s35, 0
    %s38 = sadd.s32 %s37, 1
    %s39 = scalar_select %p36, %s37, %s38
    %p42 = pneg %p36
    %p43 = scmp.eq.s32.totalorder %s11, 1
    %p44 = por %p42, %p43
    %p45 = scmp.ne.s32.totalorder %s37, %s40
    %p46 = scmp.eq.s32.totalorder %s11, 0
    %p47 = por %p45, %p46
    %p48 = scmp.ne.s32.totalorder %s37, %s40
    %p49 = scmp.eq.s32.totalorder %s16, 1
    %p50 = por %p48, %p49
    %p51 = scmp.ne.s32.totalorder %s40, %s41
    %p52 = scmp.eq.s32.totalorder %s16, 0
    %p53 = por %p51, %p52
    %p54 = scmp.ne.s32.totalorder %s40, %s41
    %p55 = scmp.eq.s32.totalorder %s17, 1
    %p56 = por %p54, %p55
    %p58 = scmp.ne.s32.totalorder %s41, %s57
    %p59 = scmp.eq.s32.totalorder %s17, 0
    %p60 = por %p58, %p59
    %s62 = sadd.s32 %s61, 1
    %p65 = scmp.eq.s32.totalorder %s11, 1
    %p66 = scmp.ne.s32.totalorder %s61, %s63
    %p67 = scmp.eq.s32.totalorder %s11, 0
    %p68 = por %p66, %p67
    %p69 = scmp.ne.s32.totalorder %s61, %s63
    %p70 = scmp.eq.s32.totalorder %s16, 1
    %p71 = por %p69, %p70
    %p72 = scmp.ne.s32.totalorder %s63, %s64
    %p73 = scmp.eq.s32.totalorder %s16, 0
    %p74 = por %p72, %p73
    %p75 = scmp.ne.s32.totalorder %s63, %s64
    %p76 = scmp.eq.s32.totalorder %s17, 1
    %p77 = por %p75, %p76
    %p79 = scmp.ne.s32.totalorder %s64, %s78
    %p80 = scmp.eq.s32.totalorder %s17, 0
    %p81 = por %p79, %p80
    %s83 = sadd.s32 %s82, 1
    %p86 = scmp.eq.s32.totalorder %s11, 1
    %p87 = scmp.ne.s32.totalorder %s82, %s84
    %p88 = scmp.eq.s32.totalorder %s11, 0
    %p89 = por %p87, %p88
    %p90 = scmp.ne.s32.totalorder %s82, %s84
    %p91 = scmp.eq.s32.totalorder %s16, 1
    %p92 = por %p90, %p91
    %p93 = scmp.ne.s32.totalorder %s84, %s85
    %p94 = scmp.eq.s32.totalorder %s16, 0
    %p95 = por %p93, %p94
    %p96 = scmp.ne.s32.totalorder %s84, %s85
    %p97 = scmp.eq.s32.totalorder %s17, 1
    %p98 = por %p96, %p97
    %p100 = scmp.ne.s32.totalorder %s85, %s99
    %p101 = scmp.eq.s32.totalorder %s17, 0
    %p102 = por %p100, %p101
    %s104 = sadd.s32 %s103, 1
    %p107 = scmp.eq.s32.totalorder %s11, 1
    %p108 = scmp.ne.s32.totalorder %s103, %s105
    %p109 = scmp.eq.s32.totalorder %s11, 0
    %p110 = por %p108, %p109
    %p111 = scmp.ne.s32.totalorder %s103, %s105
    %p112 = scmp.eq.s32.totalorder %s16, 1
    %p113 = por %p111, %p112
    %p114 = scmp.ne.s32.totalorder %s105, %s106
    %p115 = scmp.eq.s32.totalorder %s16, 0
    %p116 = por %p114, %p115
    %p117 = scmp.ne.s32.totalorder %s105, %s106
    %p118 = scmp.eq.s32.totalorder %s17, 1
    %p119 = por %p117, %p118
    %p121 = scmp.ne.s32.totalorder %s106, %s120
    %p122 = scmp.eq.s32.totalorder %s17, 0
    %p123 = por %p121, %p122
    %s125 = sadd.s32 %s124, 1
    %p128 = scmp.eq.s32.totalorder %s11, 1
    %p129 = scmp.ne.s32.totalorder %s124, %s126
    %p130 = scmp.eq.s32.totalorder %s11, 0
    %p131 = por %p129, %p130
    %p132 = scmp.ne.s32.totalorder %s124, %s126
    %p133 = scmp.eq.s32.totalorder %s16, 1
    %p134 = por %p132, %p133
    %p135 = scmp.ne.s32.totalorder %s126, %s127
    %p136 = scmp.eq.s32.totalorder %s16, 0
    %p137 = por %p135, %p136
    %p138 = scmp.ne.s32.totalorder %s126, %s127
    %p139 = scmp.eq.s32.totalorder %s17, 1
    %p140 = por %p138, %p139
    %p142 = scmp.ne.s32.totalorder %s127, %s141
    %p143 = scmp.eq.s32.totalorder %s17, 0
    %p144 = por %p142, %p143
    %s145 = smul.u32 %s19, %s18
    %s146 = smul.u32 %s26, %s30
    %s147 = ssub.s32 %s145, %s146
    %p148 = scmp.eq.s32.totalorder %s147, 0
    %s150 = sadd.s32 %s149, 1
    %s151 = scalar_select %p148, %s149, %s150
    %p154 = pneg %p148
    %p155 = scmp.eq.s32.totalorder %s11, 1
    %p156 = por %p154, %p155
    %p157 = scmp.ne.s32.totalorder %s149, %s152
    %p158 = scmp.eq.s32.totalorder %s11, 0
    %p159 = por %p157, %p158
    %p160 = scmp.ne.s32.totalorder %s149, %s152
    %p161 = scmp.eq.s32.totalorder %s16, 1
    %p162 = por %p160, %p161
    %p163 = scmp.ne.s32.totalorder %s152, %s153
    %p164 = scmp.eq.s32.totalorder %s16, 0
    %p165 = por %p163, %p164
    %p166 = scmp.ne.s32.totalorder %s152, %s153
    %p167 = scmp.eq.s32.totalorder %s17, 1
    %p168 = por %p166, %p167
    %p170 = scmp.ne.s32.totalorder %s153, %s169
    %p171 = scmp.eq.s32.totalorder %s17, 0
    %p172 = por %p170, %p171
    %p173 = scmp.le.s32.totalorder 1, %s11
    %p174 = scmp.lt.s32.totalorder %s11, 3
    %p175 = pnand %p173, %p174
    %p176 = pneg %p175
    // Predicated region
    $region9: #{decoder_forward.6} parent=5 // pred_check
      _
    $region10: #{decoder_forward.6} parent=5 // pred_check_branch
      %178 = sbr.rel (%p175) target = $region12
    $region11: #{decoder_forward.6} parent=5 // pred_region
      %s179 = ssub.s32 %s11, 1
      // Predicated region
      $region13: #{decoder_forward.6} parent=11 // pred_check
        %p180 = pneg %p74
      $region14: #{decoder_forward.6} parent=11 // pred_check_branch
        %182 = sbr.rel (%p180) target = $region16
      $region15: #{decoder_forward.6} parent=11 // pred_region
        _
      $region16: #{decoder_forward.6} parent=11 // pred_fallthru
        _
      // Predicated region
      $region17: #{decoder_forward.6} parent=11 // pred_check
        %p183 = pneg %p95
      $region18: #{decoder_forward.6} parent=11 // pred_check_branch
        %185 = sbr.rel (%p183) target = $region20
      $region19: #{decoder_forward.6} parent=11 // pred_region
        _
      $region20: #{decoder_forward.6} parent=11 // pred_fallthru
        _
      // Predicated region
      $region21: #{decoder_forward.6} parent=11 // pred_check
        %p186 = pneg %p116
      $region22: #{decoder_forward.6} parent=11 // pred_check_branch
        %188 = sbr.rel (%p186) target = $region24
      $region23: #{decoder_forward.6} parent=11 // pred_region
        _
      $region24: #{decoder_forward.6} parent=11 // pred_fallthru
        _
      // Predicated region
      $region25: #{decoder_forward.6} parent=11 // pred_check
        %p189 = pneg %p137
      $region26: #{decoder_forward.6} parent=11 // pred_check_branch
        %191 = sbr.rel (%p189) target = $region28
      $region27: #{decoder_forward.6} parent=11 // pred_region
        _
      $region28: #{decoder_forward.6} parent=11 // pred_fallthru
        _
    $region12: #{decoder_forward.6} parent=5 // pred_fallthru
      _
    %p192 = scmp.lt.s32.totalorder %s11, 2
    // Predicated region
    $region29: #{decoder_forward.6} parent=5 // pred_check
      %p193 = pneg %p192
    $region30: #{decoder_forward.6} parent=5 // pred_check_branch
      %195 = sbr.rel (%p193) target = $region32
    $region31: #{decoder_forward.6} parent=5 // pred_region
      // Predicated region
      $region33: #{decoder_forward.6} parent=31 // pred_check
        %p196 = pneg %p47
      $region34: #{decoder_forward.6} parent=31 // pred_check_branch
        %198 = sbr.rel (%p196) target = $region36
      $region35: #{decoder_forward.6} parent=31 // pred_region
        %s199 = ssub.s32 1, %s18
        %s200 = smul.u32 %s19, %s199
        %p201 = scmp.lt.s32.totalorder %s200, 0
        %s202 = scalar_select %p201, %s200, 0
        %s203 = smul.addr %s202, 4
        %s204 = scalar_lea.vmem %s0, %s203
        %s205 = ssub.s32 1, %s18
        %s206 = smul.u32 %s19, %s205
      $region36: #{decoder_forward.6} parent=31 // pred_fallthru
        _
    $region32: #{decoder_forward.6} parent=5 // pred_fallthru
      _
    %p207 = scmp.le.s32.totalorder 1, %s11
    %p208 = scmp.lt.s32.totalorder %s11, 3
    %p209 = pnand %p207, %p208
    %p210 = pneg %p209
    // Predicated region
    $region37: #{decoder_forward.6} parent=5 // pred_check
      _
    $region38: #{decoder_forward.6} parent=5 // pred_check_branch
      %212 = sbr.rel (%p209) target = $region40
    $region39: #{decoder_forward.6} parent=5 // pred_region
      %s213 = ssub.s32 %s11, 1
      %s214 = ssub.s32 1, %s20
      %s215 = smul.u32 %s21, %s214
      %p216 = scmp.lt.s32.totalorder %s215, 0
      %s217 = scalar_select %p216, %s215, 0
      %s218 = smul.addr %s217, 4
      %s219 = scalar_lea.vmem %s0, %s218
      %p220 = pneg %p53
      %p221 = pneg %p50
      %p222 = pneg %p74
      %p223 = pneg %p71
      %p224 = pneg %p95
      %p225 = pneg %p92
      %p226 = pneg %p116
      %p227 = pneg %p113
      %p228 = pneg %p137
      %p229 = pneg %p134
      %p230 = pneg %p165
      %p231 = pneg %p162
      %s232 = smul.u32 %s21, %s20
      %p233 = scmp.lt.s32.totalorder %s232, 0
      %s234 = scalar_select %p233, %s232, 0
      %s235 = smul.addr %s234, 8
      %s236 = scalar_lea.vmem %s5, %s235
      %s237 = ssub.s32 1, %s20
      %s238 = smul.u32 %s21, %s237
      %p239 = scmp.lt.s32.totalorder %s238, 0
      %s240 = scalar_select %p239, %s238, 0
      %s241 = smul.addr %s240, 4
      %s242 = scalar_lea.vmem %s0, %s241
      %s243 = ssub.s32 1, %s20
      %s244 = smul.u32 %s21, %s243
      %s245 = smul.u32 %s21, %s20
      %p246 = scmp.lt.s32.totalorder %s245, 0
      %s247 = scalar_select %p246, %s245, 0
      %s248 = smul.addr %s247, 8
      %s249 = scalar_lea.vmem %s5, %s248
      %s250 = smul.u32 %s21, %s20
      %s252 = smul.u32 %s21, 128
      %p253 = scmp.eq.s32.totalorder %s20, 0
      // Predicated region
      $region41: #{decoder_forward.6} parent=39 // pred_check
        %p254 = pneg %p253
      $region42: #{decoder_forward.6} parent=39 // pred_check_branch
        %256 = sbr.rel (%p254) target = $region44
      $region43: #{decoder_forward.6} parent=39 // pred_region
        %v257 = vld [vmem:[%s1] sm:$0xff]
        %v258 = vld [vmem:[%s1 + $0x8] sm:$0xff]
        %v259 = vld [vmem:[%s242] sm:$0xf]
        %v260 = vld [vmem:[%s242 + $0x4] sm:$0xf]
        %v261 = vld [vmem:[%s242 + $0x8] sm:$0xf]
        %v262 = vld [vmem:[%s242 + $0xc] sm:$0xf]
        %v263 = vld [vmem:[%s242 + $0x10] sm:$0xf]
        %v264 = vld [vmem:[%s242 + $0x14] sm:$0xf]
        %v265 = vld [vmem:[%s242 + $0x18] sm:$0xf]
        %v266 = vld [vmem:[%s242 + $0x1c] sm:$0xf]
        %v267 = vld [vmem:[%s242 + $0x20] sm:$0xf]
        %v268 = vld [vmem:[%s242 + $0x24] sm:$0xf]
        %v269 = vld [vmem:[%s242 + $0x28] sm:$0xf]
        %v270 = vld [vmem:[%s242 + $0x2c] sm:$0xf]
        %v271 = vld [vmem:[%s242 + $0x30] sm:$0xf]
        %v272 = vld [vmem:[%s242 + $0x34] sm:$0xf]
        %v273 = vld [vmem:[%s242 + $0x38] sm:$0xf]
        %v274 = vld [vmem:[%s242 + $0x3c] sm:$0xf]
        %v275 = vld [vmem:[%s242 + $0x40] sm:$0xf]
        %v276 = vld [vmem:[%s242 + $0x44] sm:$0xf]
        %v277 = vld [vmem:[%s2] sm:$0xff]
        %v278 = vld [vmem:[%s2 + $0x8] sm:$0xff]
        %280 = vset.pattern.permute.xlu0 0
        %281 = vperm.xlu0 %280, %v277
        %v282 = vpop.permute.xlu0 %281
        %285 = vset.pattern.permute.xlu0 0
        %286 = vperm.xlu0 %285, %v278
        %v287 = vpop.permute.xlu0 %286
        %v291 = vunpack.c.l.b16 %v257
        %v292 = vunpack.c.h.b16 %v257
        %v293 = vunpack.c.l.b16 %v258
        %v294 = vunpack.c.h.b16 %v258
        %v295 = vpack.c.b16 %v293, %v291
        %v296 = vpack.c.b16 %v294, %v292
        %v316 = vunpack.c.l.b16 %v259
        %v317 = vunpack.c.l.b16 %v260
        %v318 = vunpack.c.l.b16 %v261
        %v319 = vunpack.c.l.b16 %v262
        %v320 = vunpack.c.l.b16 %v263
        %v321 = vunpack.c.l.b16 %v264
        %v322 = vunpack.c.l.b16 %v265
        %v323 = vunpack.c.l.b16 %v266
        %v324 = vunpack.c.l.b16 %v267
        %v325 = vunpack.c.l.b16 %v268
        %v326 = vunpack.c.l.b16 %v269
        %v327 = vunpack.c.l.b16 %v270
        %v328 = vunpack.c.l.b16 %v271
        %v329 = vunpack.c.l.b16 %v272
        %v330 = vunpack.c.l.b16 %v273
        %v331 = vunpack.c.l.b16 %v274
        %v332 = vunpack.c.l.b16 %v275
        %v333 = vunpack.c.l.b16 %v276
        %v334 = vpack.c.b16 %v317, %v316
        %v335 = vpack.c.b16 %v319, %v318
        %v336 = vpack.c.b16 %v321, %v320
        %v337 = vpack.c.b16 %v323, %v322
        %v338 = vpack.c.b16 %v325, %v324
        %v339 = vpack.c.b16 %v327, %v326
        %v340 = vpack.c.b16 %v329, %v328
        %v341 = vpack.c.b16 %v331, %v330
        %v342 = vpack.c.b16 %v333, %v332
        %vm352 = vcmask 130048
        %v354 = vsel %vm352, %v296, 0
        %356 = vmatpush.bf16.msra.mxu0 %v341
        %357 = vmatpush.bf16.msra.mxu0 %v340
        %358 = vmatpush.bf16.msra.mxu0 %v339
        %359 = vmatpush.bf16.msra.mxu0 %v338
        %360 = vmatpush.bf16.msra.mxu0 %v337
        %361 = vmatpush.bf16.msra.mxu0 %v336
        %362 = vmatpush.bf16.msra.mxu0 %v335
        %363 = vmatpush.bf16.msra.mxu0 %v334
        %364 = vmatmul.bf16.gmra.mxu0 %v295
        %v365 = vpop.f32.mrf.mxu0
        %v366 = vadd.f32 %v282, %v365
        %v367 = vpop.f32.mrf.mxu0
        %v368 = vadd.f32 %v287, %v367
        %369 = vdwg.mxu0
        %370 = vmatpush.bf16.msra.mxu0 0
        %371 = vmatpush.bf16.msra.mxu0 0
        %372 = vmatpush.bf16.msra.mxu0 0
        %373 = vmatpush.bf16.msra.mxu0 0
        %374 = vmatpush.bf16.msra.mxu0 0
        %375 = vmatpush.bf16.msra.mxu0 0
        %376 = vmatpush.bf16.msra.mxu0 0
        %377 = vmatpush.bf16.msra.mxu0 %v342
        %378 = vmatmul.bf16.gmra.mxu0 %v354
        %v379 = vpop.f32.mrf.mxu0
        %v380 = vadd.f32 %v366, %v379
        %v381 = vpop.f32.mrf.mxu0
        %v382 = vadd.f32 %v368, %v381
        %383 = vdwg.mxu0
        %s384 = sshra.s32 %s252, 7
        %s385 = sand.u32 %s252, 127
        %s386 = scalar_lea.vmem [#allocation2], %s384
        %387 = vst [vmem:[%s386] sm:$0xff] %v380
        %388 = vst [vmem:[%s386 + $0x8] sm:$0xff] %v382
        %p389 = scmp.eq.s32.totalorder %s21, 0
        // Predicated region
        $region45: #{decoder_forward.6} parent=43 // pred_check
          %p390 = pneg %p389
        $region46: #{decoder_forward.6} parent=43 // pred_check_branch
          %392 = sbr.rel (%p390) target = $region48
        $region47: #{decoder_forward.6} parent=43 // pred_region
          %vm393 = vcmask 7168
          %394 = vst.msk [vmem:[#allocation3] sm:$0xff] %vm393, 0.0
          %395 = vst.msk [vmem:[#allocation3 + $0x8] sm:$0xff] %vm393, 0.0
          %396 = vst.msk [vmem:[#allocation4] sm:$0xff] %vm393, 0.0
          %397 = vst.msk [vmem:[#allocation4 + $0x8] sm:$0xff] %vm393, 0.0
          %v398 = vlaneseq
          %v399 = vand.u32 %v398, 127
          %v400 = vstv %s252
          %v401 = vadd.s32 %v399, %v400
          %vm402 = vcmp.lt.s32.totalorder %v401, 32
          %v403 = vsel %vm402, %v380, 0.0
          %v404 = vsel %vm402, %v382, 0.0
          %405 = vadd.xlane.f32.xlu0 %v403
          %v406 = vpop.xlane.xlu0 %405
          %407 = vadd.xlane.f32.xlu0 %v404
          %v408 = vpop.xlane.xlu0 %407
          %v409 = vadd.f32 %v406, 0.0
          %v410 = vadd.f32 %v408, 0.0
          %v411 = vmul.f32 %v403, %v403
          %v412 = vmul.f32 %v404, %v404
          %413 = vadd.xlane.f32.xlu0 %v411
          %v414 = vpop.xlane.xlu0 %413
          %415 = vadd.xlane.f32.xlu0 %v412
          %v416 = vpop.xlane.xlu0 %415
          %v417 = vadd.f32 %v414, 0.0
          %v418 = vadd.f32 %v416, 0.0
          %v419 = vld [vmem:[#allocation3] sm:$0xff]
          %v420 = vld [vmem:[#allocation3 + $0x8] sm:$0xff]
          %v421 = vadd.f32 %v419, %v409
          %v422 = vadd.f32 %v420, %v410
          %423 = vst.msk [vmem:[#allocation3] sm:$0xff] %vm393, %v421
          %424 = vst.msk [vmem:[#allocation3 + $0x8] sm:$0xff] %vm393, %v422
          %v425 = vld [vmem:[#allocation4] sm:$0xff]
          %v426 = vld [vmem:[#allocation4 + $0x8] sm:$0xff]
          %v427 = vadd.f32 %v425, %v417
          %v428 = vadd.f32 %v426, %v418
          %429 = vst.msk [vmem:[#allocation4] sm:$0xff] %vm393, %v427
          %430 = vst.msk [vmem:[#allocation4 + $0x8] sm:$0xff] %vm393, %v428
        $region48: #{decoder_forward.6} parent=43 // pred_fallthru
          _
        %p431 = scmp.ne.s32.totalorder %s21, 0
        // Predicated region
        $region49: #{decoder_forward.6} parent=43 // pred_check
          %p432 = pneg %p431
        $region50: #{decoder_forward.6} parent=43 // pred_check_branch
          %434 = sbr.rel (%p432) target = $region52
        $region51: #{decoder_forward.6} parent=43 // pred_region
          %435 = vadd.xlane.f32.xlu0 %v380
          %v436 = vpop.xlane.xlu0 %435
          %437 = vadd.xlane.f32.xlu0 %v382
          %v438 = vpop.xlane.xlu0 %437
          %v439 = vadd.f32 %v436, 0.0
          %v440 = vadd.f32 %v438, 0.0
          %v441 = vmul.f32 %v380, %v380
          %v442 = vmul.f32 %v382, %v382
          %443 = vadd.xlane.f32.xlu0 %v441
          %v444 = vpop.xlane.xlu0 %443
          %445 = vadd.xlane.f32.xlu0 %v442
          %v446 = vpop.xlane.xlu0 %445
          %v447 = vadd.f32 %v444, 0.0
          %v448 = vadd.f32 %v446, 0.0
          %v449 = vld [vmem:[#allocation3] sm:$0xff]
          %v450 = vld [vmem:[#allocation3 + $0x8] sm:$0xff]
          %v451 = vadd.f32 %v449, %v439
          %v452 = vadd.f32 %v450, %v440
          %vm453 = vcmask 7168
          %454 = vst.msk [vmem:[#allocation3] sm:$0xff] %vm453, %v451
          %455 = vst.msk [vmem:[#allocation3 + $0x8] sm:$0xff] %vm453, %v452
          %v456 = vld [vmem:[#allocation4] sm:$0xff]
          %v457 = vld [vmem:[#allocation4 + $0x8] sm:$0xff]
          %v458 = vadd.f32 %v456, %v447
          %v459 = vadd.f32 %v457, %v448
          %460 = vst.msk [vmem:[#allocation4] sm:$0xff] %vm453, %v458
          %461 = vst.msk [vmem:[#allocation4 + $0x8] sm:$0xff] %vm453, %v459
        $region52: #{decoder_forward.6} parent=43 // pred_fallthru
          _
      $region44: #{decoder_forward.6} parent=39 // pred_fallthru
        _
      %p462 = scmp.eq.s32.totalorder %s20, 1
      // Predicated region
      $region53: #{decoder_forward.6} parent=39 // pred_check
        %p463 = pneg %p462
      $region54: #{decoder_forward.6} parent=39 // pred_check_branch
        %465 = sbr.rel (%p463) target = $region56
      $region55: #{decoder_forward.6} parent=39 // pred_region
        %v466 = vld [vmem:[#allocation3] sm:$0xff]
        %v467 = vld [vmem:[#allocation3 + $0x8] sm:$0xff]
        %v468 = vmul.f32 %v466, 0.03125
        %v469 = vmul.f32 %v467, 0.03125
        %v470 = vld [vmem:[#allocation4] sm:$0xff]
        %v471 = vld [vmem:[#allocation4 + $0x8] sm:$0xff]
        %v472 = vmul.f32 %v470, 0.03125
        %v473 = vmul.f32 %v471, 0.03125
        %v474 = vmul.f32 %v468, %v468
        %v475 = vmul.f32 %v469, %v469
        %v476 = vsub.f32 %v472, %v474
        %v477 = vsub.f32 %v473, %v475
        %v478 = vmax.f32 %v476, 0.0
        %v479 = vmax.f32 %v477, 0.0
        %v480 = vadd.f32 %v478, 1e-05
        %v481 = vadd.f32 %v479, 1e-05
        %v482 = vrsqrt.pop %v480
        %v483 = vmul.f32 %v482, %v480
        %v484 = vmul.f32 %v483, %v482
        %v485 = vmul.f32 0.5, %v484
        %v486 = vsub.f32 1.5, %v485
        %v487 = vmul.f32 %v482, %v486
        %vm488 = vweird.f32 %v480
        %vm489 = vweird.f32 %v482
        %vm490 = vmor %vm488, %vm489
        %v491 = vsel %vm490, %v482, %v487
        %v492 = vrsqrt.pop %v481
        %v493 = vmul.f32 %v492, %v481
        %v494 = vmul.f32 %v493, %v492
        %v495 = vmul.f32 0.5, %v494
        %v496 = vsub.f32 1.5, %v495
        %v497 = vmul.f32 %v492, %v496
        %vm498 = vweird.f32 %v481
        %vm499 = vweird.f32 %v492
        %vm500 = vmor %vm498, %vm499
        %v501 = vsel %vm500, %v492, %v497
        %v502 = vld [vmem:[%s3] sm:$0xff]
        %v503 = vld [vmem:[%s3 + $0x8] sm:$0xff]
        %v504 = vmul.f32 %v491, %v502
        %v505 = vmul.f32 %v501, %v503
        %v506 = vld [vmem:[%s4] sm:$0xff]
        %v507 = vld [vmem:[%s4 + $0x8] sm:$0xff]
        %v508 = vmul.f32 %v468, %v504
        %v509 = vmul.f32 %v469, %v505
        %v510 = vsub.f32 %v506, %v508
        %v511 = vsub.f32 %v507, %v509
        %s512 = sshra.s32 %s252, 7
        %s513 = sand.u32 %s252, 127
        %s514 = scalar_lea.vmem [#allocation2], %s512
        %v515 = vld [vmem:[%s514] sm:$0xff]
        %v516 = vld [vmem:[%s514 + $0x8] sm:$0xff]
        %518 = vset.pattern.permute.xlu0 0
        %519 = vperm.xlu0 %518, %v504
        %v520 = vpop.permute.xlu0 %519
        %523 = vset.pattern.permute.xlu0 0
        %524 = vperm.xlu0 %523, %v505
        %v525 = vpop.permute.xlu0 %524
        %v527 = vmul.f32 %v515, %v520
        %v528 = vmul.f32 %v516, %v525
        %530 = vset.pattern.permute.xlu0 0
        %531 = vperm.xlu0 %530, %v510
        %v532 = vpop.permute.xlu0 %531
        %535 = vset.pattern.permute.xlu0 0
        %536 = vperm.xlu0 %535, %v511
        %v537 = vpop.permute.xlu0 %536
        %v539 = vadd.f32 %v527, %v532
        %v540 = vadd.f32 %v528, %v537
        %v541 = vmax.f32 %v539, 0.0
        %v542 = vmax.f32 %v540, 0.0
        %543 = vst [vmem:[%s249] sm:$0xff] %v541
        %544 = vst [vmem:[%s249 + $0x8] sm:$0xff] %v542
      $region56: #{decoder_forward.6} parent=39 // pred_fallthru
        _
      %s545 = smul.u32 %s21, %s20
      %p546 = scmp.lt.s32.totalorder %s545, 0
      %s547 = scalar_select %p546, %s545, 0
      %s548 = smul.addr %s547, 8
      %s549 = scalar_lea.vmem %s5, %s548
      // Predicated region
      $region57: #{decoder_forward.6} parent=39 // pred_check
        %p550 = pneg %p162
      $region58: #{decoder_forward.6} parent=39 // pred_check_branch
        %552 = sbr.rel (%p550) target = $region60
      $region59: #{decoder_forward.6} parent=39 // pred_region
        %s553 = smul.u32 %s21, %s20
      $region60: #{decoder_forward.6} parent=39 // pred_fallthru
        _
    $region40: #{decoder_forward.6} parent=5 // pred_fallthru
      _
    %p554 = scmp.le.s32.totalorder 2, %s11
    // Predicated region
    $region61: #{decoder_forward.6} parent=5 // pred_check
      %p555 = pneg %p554
    $region62: #{decoder_forward.6} parent=5 // pred_check_branch
      %557 = sbr.rel (%p555) target = $region64
    $region63: #{decoder_forward.6} parent=5 // pred_region
      %s558 = ssub.s32 %s11, 2
      // Predicated region
      $region65: #{decoder_forward.6} parent=63 // pred_check
        %p559 = pneg %p168
      $region66: #{decoder_forward.6} parent=63 // pred_check_branch
        %561 = sbr.rel (%p559) target = $region68
      $region67: #{decoder_forward.6} parent=63 // pred_region
        %s562 = smul.u32 %s23, %s22
        %p563 = scmp.lt.s32.totalorder %s562, 0
        %s564 = scalar_select %p563, %s562, 0
        %s565 = smul.addr %s564, 8
        %s566 = scalar_lea.vmem %s5, %s565
      $region68: #{decoder_forward.6} parent=63 // pred_fallthru
        _
    $region64: #{decoder_forward.6} parent=5 // pred_fallthru
      _
  $region6: #{decoder_forward.6} parent=0 // loop_footer
    %s15 = sadd.s32 1, %s11
  $region7: #{decoder_forward.6} parent=0 // loop_footer_branch
    %10 = sbr.rel target = $region3
  $region8: #{decoder_forward.6} parent=0 // loop_exit
    _

// kernel: decoder_forward.7
$region0: #{decoder_forward.7}
  #allocation0 [shape = 'u32[]', space=smem, size = 0x4, offset = 0x4, fixed_abs, tag = 'smem constant byte address 0x4 - core index']
  #allocation1 [shape = 'u32[72,128]{1,0:T(1,128)}', space=vmem, size = 0x9000, scoped, tag = 'internal scratch']
  #allocation2 [shape = 'f32[16,128]{1,0:T(8,128)}', space=vmem, size = 0x2000, scoped, tag = 'scratch operand']
  #allocation3 [shape = 'f32[16,1]{1,0:T(8,128)}', space=vmem, size = 0x2000, scoped, tag = 'scratch operand']
  #allocation4 [shape = 'f32[16,1]{1,0:T(8,128)}', space=vmem, size = 0x2000, scoped, tag = 'scratch operand']
  %s0 = inlined_call_operand.vmem [shape: bf16[144,128], index: 0, kind: input, shape index: {}]
  %s1 = inlined_call_operand.vmem [shape: bf16[16,144], index: 1, kind: input, shape index: {}]
  %s2 = inlined_call_operand.vmem [shape: f32[16,1], index: 2, kind: input, shape index: {}]
  %s3 = inlined_call_operand.vmem [shape: f32[16,1], index: 3, kind: input, shape index: {}]
  %s4 = inlined_call_operand.vmem [shape: f32[16,1], index: 4, kind: input, shape index: {}]
  %s5 = inlined_call_operand.vmem [shape: f32[16,128], index: 5, kind: input, shape index: {}]
  %s6 = inlined_call_operand.vmem [shape: f32[16,128], index: 6, kind: output, shape index: {}]
  %s7 = sld [smem:[#allocation0]]
  $region73: #{decoder_forward.7} parent=0
    _
  %s9 = ssub.s32 1, %s7
  %s10 = scalar_select 0, %s9, %s7
  loop: start=0, step=1, limit=4
  $region2: #{decoder_forward.7} parent=0 // loop_pre_header
    _
  $region3: #{decoder_forward.7} parent=0 // loop_header
    %s12 = sphi 0, %s16
    %p13 = scmp.ge.s32.totalorder %s12, 4
    %s19 = sphi 0, %s31
    %s20 = sphi 0, %s27
    %s21 = sphi 0, %s19
    %s22 = sphi 0, %s20
    %s23 = sphi 0, %s21
    %s24 = sphi 0, %s22
    %s38 = sphi 0, %s40
    %s41 = sphi 0, %s38
    %s42 = sphi 0, %s41
    %s58 = sphi 0, %s42
    %s62 = sphi 0, %s62
    %s64 = sphi 0, %s62
    %s65 = sphi 0, %s64
    %s79 = sphi 0, %s65
    %s83 = sphi 0, %s83
    %s85 = sphi 0, %s83
    %s86 = sphi 0, %s85
    %s100 = sphi 0, %s86
    %s104 = sphi 0, %s104
    %s106 = sphi 0, %s104
    %s107 = sphi 0, %s106
    %s121 = sphi 0, %s107
    %s125 = sphi 0, %s125
    %s127 = sphi 0, %s125
    %s128 = sphi 0, %s127
    %s142 = sphi 0, %s128
    %s150 = sphi 0, %s152
    %s153 = sphi 0, %s150
    %s154 = sphi 0, %s153
    %s170 = sphi 0, %s154
    %s178 = sphi 0, %s180
    %s181 = sphi 0, %s178
    %s182 = sphi 0, %s181
    %s198 = sphi 0, %s182
  $region4: #{decoder_forward.7} parent=0 // loop_header_branch
    %15 = sbr.rel (%p13) target = $region8
  $region5: #{decoder_forward.7} parent=0 // loop_body
    %s17 = ssub.s32 %s12, 1
    %s18 = ssub.s32 %s12, 2
    %s25 = sadd.s32 1, %s20
    %p26 = scmp.ge.s32.totalorder %s25, 1
    %s27 = scalar_select %p26, 0, %s25
    %s28 = sadd.s32 1, %s19
    %s29 = scalar_select %p26, %s28, %s19
    %p30 = scmp.ge.s32.totalorder %s29, 2
    %s31 = scalar_select %p30, 0, %s29
    %s32 = ssub.s32 1, %s19
    %s33 = smul.u32 %s20, %s32
    %s34 = ssub.s32 1, %s31
    %s35 = smul.u32 %s27, %s34
    %s36 = ssub.s32 %s33, %s35
    %p37 = scmp.eq.s32.totalorder %s36, 0
    %s39 = sadd.s32 %s38, 1
    %s40 = scalar_select %p37, %s38, %s39
    %p43 = pneg %p37
    %p44 = scmp.eq.s32.totalorder %s12, 1
    %p45 = por %p43, %p44
    %p46 = scmp.ne.s32.totalorder %s38, %s41
    %p47 = scmp.eq.s32.totalorder %s12, 0
    %p48 = por %p46, %p47
    %p49 = scmp.ne.s32.totalorder %s38, %s41
    %p50 = scmp.eq.s32.totalorder %s17, 1
    %p51 = por %p49, %p50
    %p52 = scmp.ne.s32.totalorder %s41, %s42
    %p53 = scmp.eq.s32.totalorder %s17, 0
    %p54 = por %p52, %p53
    %p55 = scmp.ne.s32.totalorder %s41, %s42
    %p56 = scmp.eq.s32.totalorder %s18, 1
    %p57 = por %p55, %p56
    %p59 = scmp.ne.s32.totalorder %s42, %s58
    %p60 = scmp.eq.s32.totalorder %s18, 0
    %p61 = por %p59, %p60
    %s63 = sadd.s32 %s62, 1
    %p66 = scmp.eq.s32.totalorder %s12, 1
    %p67 = scmp.ne.s32.totalorder %s62, %s64
    %p68 = scmp.eq.s32.totalorder %s12, 0
    %p69 = por %p67, %p68
    %p70 = scmp.ne.s32.totalorder %s62, %s64
    %p71 = scmp.eq.s32.totalorder %s17, 1
    %p72 = por %p70, %p71
    %p73 = scmp.ne.s32.totalorder %s64, %s65
    %p74 = scmp.eq.s32.totalorder %s17, 0
    %p75 = por %p73, %p74
    %p76 = scmp.ne.s32.totalorder %s64, %s65
    %p77 = scmp.eq.s32.totalorder %s18, 1
    %p78 = por %p76, %p77
    %p80 = scmp.ne.s32.totalorder %s65, %s79
    %p81 = scmp.eq.s32.totalorder %s18, 0
    %p82 = por %p80, %p81
    %s84 = sadd.s32 %s83, 1
    %p87 = scmp.eq.s32.totalorder %s12, 1
    %p88 = scmp.ne.s32.totalorder %s83, %s85
    %p89 = scmp.eq.s32.totalorder %s12, 0
    %p90 = por %p88, %p89
    %p91 = scmp.ne.s32.totalorder %s83, %s85
    %p92 = scmp.eq.s32.totalorder %s17, 1
    %p93 = por %p91, %p92
    %p94 = scmp.ne.s32.totalorder %s85, %s86
    %p95 = scmp.eq.s32.totalorder %s17, 0
    %p96 = por %p94, %p95
    %p97 = scmp.ne.s32.totalorder %s85, %s86
    %p98 = scmp.eq.s32.totalorder %s18, 1
    %p99 = por %p97, %p98
    %p101 = scmp.ne.s32.totalorder %s86, %s100
    %p102 = scmp.eq.s32.totalorder %s18, 0
    %p103 = por %p101, %p102
    %s105 = sadd.s32 %s104, 1
    %p108 = scmp.eq.s32.totalorder %s12, 1
    %p109 = scmp.ne.s32.totalorder %s104, %s106
    %p110 = scmp.eq.s32.totalorder %s12, 0
    %p111 = por %p109, %p110
    %p112 = scmp.ne.s32.totalorder %s104, %s106
    %p113 = scmp.eq.s32.totalorder %s17, 1
    %p114 = por %p112, %p113
    %p115 = scmp.ne.s32.totalorder %s106, %s107
    %p116 = scmp.eq.s32.totalorder %s17, 0
    %p117 = por %p115, %p116
    %p118 = scmp.ne.s32.totalorder %s106, %s107
    %p119 = scmp.eq.s32.totalorder %s18, 1
    %p120 = por %p118, %p119
    %p122 = scmp.ne.s32.totalorder %s107, %s121
    %p123 = scmp.eq.s32.totalorder %s18, 0
    %p124 = por %p122, %p123
    %s126 = sadd.s32 %s125, 1
    %p129 = scmp.eq.s32.totalorder %s12, 1
    %p130 = scmp.ne.s32.totalorder %s125, %s127
    %p131 = scmp.eq.s32.totalorder %s12, 0
    %p132 = por %p130, %p131
    %p133 = scmp.ne.s32.totalorder %s125, %s127
    %p134 = scmp.eq.s32.totalorder %s17, 1
    %p135 = por %p133, %p134
    %p136 = scmp.ne.s32.totalorder %s127, %s128
    %p137 = scmp.eq.s32.totalorder %s17, 0
    %p138 = por %p136, %p137
    %p139 = scmp.ne.s32.totalorder %s127, %s128
    %p140 = scmp.eq.s32.totalorder %s18, 1
    %p141 = por %p139, %p140
    %p143 = scmp.ne.s32.totalorder %s128, %s142
    %p144 = scmp.eq.s32.totalorder %s18, 0
    %p145 = por %p143, %p144
    %s146 = smul.u32 %s20, %s19
    %s147 = smul.u32 %s27, %s31
    %s148 = ssub.s32 %s146, %s147
    %p149 = scmp.eq.s32.totalorder %s148, 0
    %s151 = sadd.s32 %s150, 1
    %s152 = scalar_select %p149, %s150, %s151
    %p155 = pneg %p149
    %p156 = scmp.eq.s32.totalorder %s12, 1
    %p157 = por %p155, %p156
    %p158 = scmp.ne.s32.totalorder %s150, %s153
    %p159 = scmp.eq.s32.totalorder %s12, 0
    %p160 = por %p158, %p159
    %p161 = scmp.ne.s32.totalorder %s150, %s153
    %p162 = scmp.eq.s32.totalorder %s17, 1
    %p163 = por %p161, %p162
    %p164 = scmp.ne.s32.totalorder %s153, %s154
    %p165 = scmp.eq.s32.totalorder %s17, 0
    %p166 = por %p164, %p165
    %p167 = scmp.ne.s32.totalorder %s153, %s154
    %p168 = scmp.eq.s32.totalorder %s18, 1
    %p169 = por %p167, %p168
    %p171 = scmp.ne.s32.totalorder %s154, %s170
    %p172 = scmp.eq.s32.totalorder %s18, 0
    %p173 = por %p171, %p172
    %s174 = smul.u32 %s20, %s19
    %s175 = smul.u32 %s27, %s31
    %s176 = ssub.s32 %s174, %s175
    %p177 = scmp.eq.s32.totalorder %s176, 0
    %s179 = sadd.s32 %s178, 1
    %s180 = scalar_select %p177, %s178, %s179
    %p183 = pneg %p177
    %p184 = scmp.eq.s32.totalorder %s12, 1
    %p185 = por %p183, %p184
    %p186 = scmp.ne.s32.totalorder %s178, %s181
    %p187 = scmp.eq.s32.totalorder %s12, 0
    %p188 = por %p186, %p187
    %p189 = scmp.ne.s32.totalorder %s178, %s181
    %p190 = scmp.eq.s32.totalorder %s17, 1
    %p191 = por %p189, %p190
    %p192 = scmp.ne.s32.totalorder %s181, %s182
    %p193 = scmp.eq.s32.totalorder %s17, 0
    %p194 = por %p192, %p193
    %p195 = scmp.ne.s32.totalorder %s181, %s182
    %p196 = scmp.eq.s32.totalorder %s18, 1
    %p197 = por %p195, %p196
    %p199 = scmp.ne.s32.totalorder %s182, %s198
    %p200 = scmp.eq.s32.totalorder %s18, 0
    %p201 = por %p199, %p200
    %p202 = scmp.le.s32.totalorder 1, %s12
    %p203 = scmp.lt.s32.totalorder %s12, 3
    %p204 = pnand %p202, %p203
    %p205 = pneg %p204
    // Predicated region
    $region9: #{decoder_forward.7} parent=5 // pred_check
      _
    $region10: #{decoder_forward.7} parent=5 // pred_check_branch
      %207 = sbr.rel (%p204) target = $region12
    $region11: #{decoder_forward.7} parent=5 // pred_region
      %s208 = ssub.s32 %s12, 1
      // Predicated region
      $region13: #{decoder_forward.7} parent=11 // pred_check
        %p209 = pneg %p75
      $region14: #{decoder_forward.7} parent=11 // pred_check_branch
        %211 = sbr.rel (%p209) target = $region16
      $region15: #{decoder_forward.7} parent=11 // pred_region
        _
      $region16: #{decoder_forward.7} parent=11 // pred_fallthru
        _
      // Predicated region
      $region17: #{decoder_forward.7} parent=11 // pred_check
        %p212 = pneg %p96
      $region18: #{decoder_forward.7} parent=11 // pred_check_branch
        %214 = sbr.rel (%p212) target = $region20
      $region19: #{decoder_forward.7} parent=11 // pred_region
        _
      $region20: #{decoder_forward.7} parent=11 // pred_fallthru
        _
      // Predicated region
      $region21: #{decoder_forward.7} parent=11 // pred_check
        %p215 = pneg %p117
      $region22: #{decoder_forward.7} parent=11 // pred_check_branch
        %217 = sbr.rel (%p215) target = $region24
      $region23: #{decoder_forward.7} parent=11 // pred_region
        _
      $region24: #{decoder_forward.7} parent=11 // pred_fallthru
        _
      // Predicated region
      $region25: #{decoder_forward.7} parent=11 // pred_check
        %p218 = pneg %p138
      $region26: #{decoder_forward.7} parent=11 // pred_check_branch
        %220 = sbr.rel (%p218) target = $region28
      $region27: #{decoder_forward.7} parent=11 // pred_region
        _
      $region28: #{decoder_forward.7} parent=11 // pred_fallthru
        _
    $region12: #{decoder_forward.7} parent=5 // pred_fallthru
      _
    %p221 = scmp.lt.s32.totalorder %s12, 2
    // Predicated region
    $region29: #{decoder_forward.7} parent=5 // pred_check
      %p222 = pneg %p221
    $region30: #{decoder_forward.7} parent=5 // pred_check_branch
      %224 = sbr.rel (%p222) target = $region32
    $region31: #{decoder_forward.7} parent=5 // pred_region
      // Predicated region
      $region33: #{decoder_forward.7} parent=31 // pred_check
        %p225 = pneg %p48
      $region34: #{decoder_forward.7} parent=31 // pred_check_branch
        %227 = sbr.rel (%p225) target = $region36
      $region35: #{decoder_forward.7} parent=31 // pred_region
        %s228 = ssub.s32 1, %s19
        %s229 = smul.u32 %s20, %s228
        %p230 = scmp.lt.s32.totalorder %s229, 0
        %s231 = scalar_select %p230, %s229, 0
        %s232 = smul.addr %s231, 4
        %s233 = scalar_lea.vmem %s0, %s232
        %s234 = ssub.s32 1, %s19
        %s235 = smul.u32 %s20, %s234
      $region36: #{decoder_forward.7} parent=31 // pred_fallthru
        _
      // Predicated region
      $region37: #{decoder_forward.7} parent=31 // pred_check
        %p236 = pneg %p160
      $region38: #{decoder_forward.7} parent=31 // pred_check_branch
        %238 = sbr.rel (%p236) target = $region40
      $region39: #{decoder_forward.7} parent=31 // pred_region
        %s239 = smul.u32 %s20, %s19
        %p240 = scmp.lt.s32.totalorder %s239, 0
        %s241 = scalar_select %p240, %s239, 0
        %s242 = smul.addr %s241, 8
        %s243 = scalar_lea.vmem %s5, %s242
        %s244 = smul.u32 %s20, %s19
      $region40: #{decoder_forward.7} parent=31 // pred_fallthru
        _
    $region32: #{decoder_forward.7} parent=5 // pred_fallthru
      _
    %p245 = scmp.le.s32.totalorder 1, %s12
    %p246 = scmp.lt.s32.totalorder %s12, 3
    %p247 = pnand %p245, %p246
    %p248 = pneg %p247
    // Predicated region
    $region41: #{decoder_forward.7} parent=5 // pred_check
      _
    $region42: #{decoder_forward.7} parent=5 // pred_check_branch
      %250 = sbr.rel (%p247) target = $region44
    $region43: #{decoder_forward.7} parent=5 // pred_region
      %s251 = ssub.s32 %s12, 1
      %s252 = ssub.s32 1, %s21
      %s253 = smul.u32 %s22, %s252
      %p254 = scmp.lt.s32.totalorder %s253, 0
      %s255 = scalar_select %p254, %s253, 0
      %s256 = smul.addr %s255, 4
      %s257 = scalar_lea.vmem %s0, %s256
      %p258 = pneg %p54
      %p259 = pneg %p51
      %p260 = pneg %p75
      %p261 = pneg %p72
      %p262 = pneg %p96
      %p263 = pneg %p93
      %p264 = pneg %p117
      %p265 = pneg %p114
      %p266 = pneg %p138
      %p267 = pneg %p135
      %s268 = smul.u32 %s22, %s21
      %p269 = scmp.lt.s32.totalorder %s268, 0
      %s270 = scalar_select %p269, %s268, 0
      %s271 = smul.addr %s270, 8
      %s272 = scalar_lea.vmem %s5, %s271
      %p273 = pneg %p166
      %p274 = pneg %p163
      %p275 = pneg %p194
      %p276 = pneg %p191
      %s277 = smul.u32 %s22, %s21
      %p278 = scmp.lt.s32.totalorder %s277, 0
      %s279 = scalar_select %p278, %s277, 0
      %s280 = smul.addr %s279, 8
      %s281 = scalar_lea.vmem %s6, %s280
      %s282 = ssub.s32 1, %s21
      %s283 = smul.u32 %s22, %s282
      %p284 = scmp.lt.s32.totalorder %s283, 0
      %s285 = scalar_select %p284, %s283, 0
      %s286 = smul.addr %s285, 4
      %s287 = scalar_lea.vmem %s0, %s286
      %s288 = ssub.s32 1, %s21
      %s289 = smul.u32 %s22, %s288
      %s290 = smul.u32 %s22, %s21
      %p291 = scmp.lt.s32.totalorder %s290, 0
      %s292 = scalar_select %p291, %s290, 0
      %s293 = smul.addr %s292, 8
      %s294 = scalar_lea.vmem %s5, %s293
      %s295 = smul.u32 %s22, %s21
      %s296 = smul.u32 %s22, %s21
      %p297 = scmp.lt.s32.totalorder %s296, 0
      %s298 = scalar_select %p297, %s296, 0
      %s299 = smul.addr %s298, 8
      %s300 = scalar_lea.vmem %s6, %s299
      %s301 = smul.u32 %s22, %s21
      %s303 = smul.u32 %s22, 128
      %p304 = scmp.eq.s32.totalorder %s21, 0
      // Predicated region
      $region45: #{decoder_forward.7} parent=43 // pred_check
        %p305 = pneg %p304
      $region46: #{decoder_forward.7} parent=43 // pred_check_branch
        %307 = sbr.rel (%p305) target = $region48
      $region47: #{decoder_forward.7} parent=43 // pred_region
        %v308 = vld [vmem:[%s1] sm:$0xff]
        %v309 = vld [vmem:[%s1 + $0x8] sm:$0xff]
        %v310 = vld [vmem:[%s287] sm:$0xf]
        %v311 = vld [vmem:[%s287 + $0x4] sm:$0xf]
        %v312 = vld [vmem:[%s287 + $0x8] sm:$0xf]
        %v313 = vld [vmem:[%s287 + $0xc] sm:$0xf]
        %v314 = vld [vmem:[%s287 + $0x10] sm:$0xf]
        %v315 = vld [vmem:[%s287 + $0x14] sm:$0xf]
        %v316 = vld [vmem:[%s287 + $0x18] sm:$0xf]
        %v317 = vld [vmem:[%s287 + $0x1c] sm:$0xf]
        %v318 = vld [vmem:[%s287 + $0x20] sm:$0xf]
        %v319 = vld [vmem:[%s287 + $0x24] sm:$0xf]
        %v320 = vld [vmem:[%s287 + $0x28] sm:$0xf]
        %v321 = vld [vmem:[%s287 + $0x2c] sm:$0xf]
        %v322 = vld [vmem:[%s287 + $0x30] sm:$0xf]
        %v323 = vld [vmem:[%s287 + $0x34] sm:$0xf]
        %v324 = vld [vmem:[%s287 + $0x38] sm:$0xf]
        %v325 = vld [vmem:[%s287 + $0x3c] sm:$0xf]
        %v326 = vld [vmem:[%s287 + $0x40] sm:$0xf]
        %v327 = vld [vmem:[%s287 + $0x44] sm:$0xf]
        %v328 = vld [vmem:[%s2] sm:$0xff]
        %v329 = vld [vmem:[%s2 + $0x8] sm:$0xff]
        %331 = vset.pattern.permute.xlu0 0
        %332 = vperm.xlu0 %331, %v328
        %v333 = vpop.permute.xlu0 %332
        %336 = vset.pattern.permute.xlu0 0
        %337 = vperm.xlu0 %336, %v329
        %v338 = vpop.permute.xlu0 %337
        %v342 = vunpack.c.l.b16 %v308
        %v343 = vunpack.c.h.b16 %v308
        %v344 = vunpack.c.l.b16 %v309
        %v345 = vunpack.c.h.b16 %v309
        %v346 = vpack.c.b16 %v344, %v342
        %v347 = vpack.c.b16 %v345, %v343
        %v367 = vunpack.c.l.b16 %v310
        %v368 = vunpack.c.l.b16 %v311
        %v369 = vunpack.c.l.b16 %v312
        %v370 = vunpack.c.l.b16 %v313
        %v371 = vunpack.c.l.b16 %v314
        %v372 = vunpack.c.l.b16 %v315
        %v373 = vunpack.c.l.b16 %v316
        %v374 = vunpack.c.l.b16 %v317
        %v375 = vunpack.c.l.b16 %v318
        %v376 = vunpack.c.l.b16 %v319
        %v377 = vunpack.c.l.b16 %v320
        %v378 = vunpack.c.l.b16 %v321
        %v379 = vunpack.c.l.b16 %v322
        %v380 = vunpack.c.l.b16 %v323
        %v381 = vunpack.c.l.b16 %v324
        %v382 = vunpack.c.l.b16 %v325
        %v383 = vunpack.c.l.b16 %v326
        %v384 = vunpack.c.l.b16 %v327
        %v385 = vpack.c.b16 %v368, %v367
        %v386 = vpack.c.b16 %v370, %v369
        %v387 = vpack.c.b16 %v372, %v371
        %v388 = vpack.c.b16 %v374, %v373
        %v389 = vpack.c.b16 %v376, %v375
        %v390 = vpack.c.b16 %v378, %v377
        %v391 = vpack.c.b16 %v380, %v379
        %v392 = vpack.c.b16 %v382, %v381
        %v393 = vpack.c.b16 %v384, %v383
        %vm403 = vcmask 130048
        %v405 = vsel %vm403, %v347, 0
        %407 = vmatpush.bf16.msra.mxu0 %v392
        %408 = vmatpush.bf16.msra.mxu0 %v391
        %409 = vmatpush.bf16.msra.mxu0 %v390
        %410 = vmatpush.bf16.msra.mxu0 %v389
        %411 = vmatpush.bf16.msra.mxu0 %v388
        %412 = vmatpush.bf16.msra.mxu0 %v387
        %413 = vmatpush.bf16.msra.mxu0 %v386
        %414 = vmatpush.bf16.msra.mxu0 %v385
        %415 = vmatmul.bf16.gmra.mxu0 %v346
        %v416 = vpop.f32.mrf.mxu0
        %v417 = vadd.f32 %v333, %v416
        %v418 = vpop.f32.mrf.mxu0
        %v419 = vadd.f32 %v338, %v418
        %420 = vdwg.mxu0
        %421 = vmatpush.bf16.msra.mxu0 0
        %422 = vmatpush.bf16.msra.mxu0 0
        %423 = vmatpush.bf16.msra.mxu0 0
        %424 = vmatpush.bf16.msra.mxu0 0
        %425 = vmatpush.bf16.msra.mxu0 0
        %426 = vmatpush.bf16.msra.mxu0 0
        %427 = vmatpush.bf16.msra.mxu0 0
        %428 = vmatpush.bf16.msra.mxu0 %v393
        %429 = vmatmul.bf16.gmra.mxu0 %v405
        %v430 = vpop.f32.mrf.mxu0
        %v431 = vadd.f32 %v417, %v430
        %v432 = vpop.f32.mrf.mxu0
        %v433 = vadd.f32 %v419, %v432
        %434 = vdwg.mxu0
        %s435 = sshra.s32 %s303, 7
        %s436 = sand.u32 %s303, 127
        %s437 = scalar_lea.vmem [#allocation2], %s435
        %438 = vst [vmem:[%s437] sm:$0xff] %v431
        %439 = vst [vmem:[%s437 + $0x8] sm:$0xff] %v433
        %p440 = scmp.eq.s32.totalorder %s22, 0
        // Predicated region
        $region49: #{decoder_forward.7} parent=47 // pred_check
          %p441 = pneg %p440
        $region50: #{decoder_forward.7} parent=47 // pred_check_branch
          %443 = sbr.rel (%p441) target = $region52
        $region51: #{decoder_forward.7} parent=47 // pred_region
          %vm444 = vcmask 7168
          %445 = vst.msk [vmem:[#allocation3] sm:$0xff] %vm444, 0.0
          %446 = vst.msk [vmem:[#allocation3 + $0x8] sm:$0xff] %vm444, 0.0
          %447 = vst.msk [vmem:[#allocation4] sm:$0xff] %vm444, 0.0
          %448 = vst.msk [vmem:[#allocation4 + $0x8] sm:$0xff] %vm444, 0.0
          %v449 = vlaneseq
          %v450 = vand.u32 %v449, 127
          %v451 = vstv %s303
          %v452 = vadd.s32 %v450, %v451
          %vm453 = vcmp.lt.s32.totalorder %v452, 32
          %v454 = vsel %vm453, %v431, 0.0
          %v455 = vsel %vm453, %v433, 0.0
          %456 = vadd.xlane.f32.xlu0 %v454
          %v457 = vpop.xlane.xlu0 %456
          %458 = vadd.xlane.f32.xlu0 %v455
          %v459 = vpop.xlane.xlu0 %458
          %v460 = vadd.f32 %v457, 0.0
          %v461 = vadd.f32 %v459, 0.0
          %v462 = vmul.f32 %v454, %v454
          %v463 = vmul.f32 %v455, %v455
          %464 = vadd.xlane.f32.xlu0 %v462
          %v465 = vpop.xlane.xlu0 %464
          %466 = vadd.xlane.f32.xlu0 %v463
          %v467 = vpop.xlane.xlu0 %466
          %v468 = vadd.f32 %v465, 0.0
          %v469 = vadd.f32 %v467, 0.0
          %v470 = vld [vmem:[#allocation3] sm:$0xff]
          %v471 = vld [vmem:[#allocation3 + $0x8] sm:$0xff]
          %v472 = vadd.f32 %v470, %v460
          %v473 = vadd.f32 %v471, %v461
          %474 = vst.msk [vmem:[#allocation3] sm:$0xff] %vm444, %v472
          %475 = vst.msk [vmem:[#allocation3 + $0x8] sm:$0xff] %vm444, %v473
          %v476 = vld [vmem:[#allocation4] sm:$0xff]
          %v477 = vld [vmem:[#allocation4 + $0x8] sm:$0xff]
          %v478 = vadd.f32 %v476, %v468
          %v479 = vadd.f32 %v477, %v469
          %480 = vst.msk [vmem:[#allocation4] sm:$0xff] %vm444, %v478
          %481 = vst.msk [vmem:[#allocation4 + $0x8] sm:$0xff] %vm444, %v479
        $region52: #{decoder_forward.7} parent=47 // pred_fallthru
          _
        %p482 = scmp.ne.s32.totalorder %s22, 0
        // Predicated region
        $region53: #{decoder_forward.7} parent=47 // pred_check
          %p483 = pneg %p482
        $region54: #{decoder_forward.7} parent=47 // pred_check_branch
          %485 = sbr.rel (%p483) target = $region56
        $region55: #{decoder_forward.7} parent=47 // pred_region
          %486 = vadd.xlane.f32.xlu0 %v431
          %v487 = vpop.xlane.xlu0 %486
          %488 = vadd.xlane.f32.xlu0 %v433
          %v489 = vpop.xlane.xlu0 %488
          %v490 = vadd.f32 %v487, 0.0
          %v491 = vadd.f32 %v489, 0.0
          %v492 = vmul.f32 %v431, %v431
          %v493 = vmul.f32 %v433, %v433
          %494 = vadd.xlane.f32.xlu0 %v492
          %v495 = vpop.xlane.xlu0 %494
          %496 = vadd.xlane.f32.xlu0 %v493
          %v497 = vpop.xlane.xlu0 %496
          %v498 = vadd.f32 %v495, 0.0
          %v499 = vadd.f32 %v497, 0.0
          %v500 = vld [vmem:[#allocation3] sm:$0xff]
          %v501 = vld [vmem:[#allocation3 + $0x8] sm:$0xff]
          %v502 = vadd.f32 %v500, %v490
          %v503 = vadd.f32 %v501, %v491
          %vm504 = vcmask 7168
          %505 = vst.msk [vmem:[#allocation3] sm:$0xff] %vm504, %v502
          %506 = vst.msk [vmem:[#allocation3 + $0x8] sm:$0xff] %vm504, %v503
          %v507 = vld [vmem:[#allocation4] sm:$0xff]
          %v508 = vld [vmem:[#allocation4 + $0x8] sm:$0xff]
          %v509 = vadd.f32 %v507, %v498
          %v510 = vadd.f32 %v508, %v499
          %511 = vst.msk [vmem:[#allocation4] sm:$0xff] %vm504, %v509
          %512 = vst.msk [vmem:[#allocation4 + $0x8] sm:$0xff] %vm504, %v510
        $region56: #{decoder_forward.7} parent=47 // pred_fallthru
          _
      $region48: #{decoder_forward.7} parent=43 // pred_fallthru
        _
      %p513 = scmp.eq.s32.totalorder %s21, 1
      // Predicated region
      $region57: #{decoder_forward.7} parent=43 // pred_check
        %p514 = pneg %p513
      $region58: #{decoder_forward.7} parent=43 // pred_check_branch
        %516 = sbr.rel (%p514) target = $region60
      $region59: #{decoder_forward.7} parent=43 // pred_region
        %v517 = vld [vmem:[#allocation3] sm:$0xff]
        %v518 = vld [vmem:[#allocation3 + $0x8] sm:$0xff]
        %v519 = vmul.f32 %v517, 0.03125
        %v520 = vmul.f32 %v518, 0.03125
        %v521 = vld [vmem:[#allocation4] sm:$0xff]
        %v522 = vld [vmem:[#allocation4 + $0x8] sm:$0xff]
        %v523 = vmul.f32 %v521, 0.03125
        %v524 = vmul.f32 %v522, 0.03125
        %v525 = vmul.f32 %v519, %v519
        %v526 = vmul.f32 %v520, %v520
        %v527 = vsub.f32 %v523, %v525
        %v528 = vsub.f32 %v524, %v526
        %v529 = vmax.f32 %v527, 0.0
        %v530 = vmax.f32 %v528, 0.0
        %v531 = vadd.f32 %v529, 1e-05
        %v532 = vadd.f32 %v530, 1e-05
        %v533 = vrsqrt.pop %v531
        %v534 = vmul.f32 %v533, %v531
        %v535 = vmul.f32 %v534, %v533
        %v536 = vmul.f32 0.5, %v535
        %v537 = vsub.f32 1.5, %v536
        %v538 = vmul.f32 %v533, %v537
        %vm539 = vweird.f32 %v531
        %vm540 = vweird.f32 %v533
        %vm541 = vmor %vm539, %vm540
        %v542 = vsel %vm541, %v533, %v538
        %v543 = vrsqrt.pop %v532
        %v544 = vmul.f32 %v543, %v532
        %v545 = vmul.f32 %v544, %v543
        %v546 = vmul.f32 0.5, %v545
        %v547 = vsub.f32 1.5, %v546
        %v548 = vmul.f32 %v543, %v547
        %vm549 = vweird.f32 %v532
        %vm550 = vweird.f32 %v543
        %vm551 = vmor %vm549, %vm550
        %v552 = vsel %vm551, %v543, %v548
        %v553 = vld [vmem:[%s3] sm:$0xff]
        %v554 = vld [vmem:[%s3 + $0x8] sm:$0xff]
        %v555 = vmul.f32 %v542, %v553
        %v556 = vmul.f32 %v552, %v554
        %v557 = vld [vmem:[%s4] sm:$0xff]
        %v558 = vld [vmem:[%s4 + $0x8] sm:$0xff]
        %v559 = vmul.f32 %v519, %v555
        %v560 = vmul.f32 %v520, %v556
        %v561 = vsub.f32 %v557, %v559
        %v562 = vsub.f32 %v558, %v560
        %s563 = sshra.s32 %s303, 7
        %s564 = sand.u32 %s303, 127
        %s565 = scalar_lea.vmem [#allocation2], %s563
        %v566 = vld [vmem:[%s565] sm:$0xff]
        %v567 = vld [vmem:[%s565 + $0x8] sm:$0xff]
        %569 = vset.pattern.permute.xlu0 0
        %570 = vperm.xlu0 %569, %v555
        %v571 = vpop.permute.xlu0 %570
        %574 = vset.pattern.permute.xlu0 0
        %575 = vperm.xlu0 %574, %v556
        %v576 = vpop.permute.xlu0 %575
        %v578 = vmul.f32 %v566, %v571
        %v579 = vmul.f32 %v567, %v576
        %581 = vset.pattern.permute.xlu0 0
        %582 = vperm.xlu0 %581, %v561
        %v583 = vpop.permute.xlu0 %582
        %586 = vset.pattern.permute.xlu0 0
        %587 = vperm.xlu0 %586, %v562
        %v588 = vpop.permute.xlu0 %587
        %v590 = vadd.f32 %v578, %v583
        %v591 = vadd.f32 %v579, %v588
        %v592 = vld [vmem:[%s294] sm:$0xff]
        %v593 = vld [vmem:[%s294 + $0x8] sm:$0xff]
        %v594 = vadd.f32 %v590, %v592
        %v595 = vadd.f32 %v591, %v593
        %v596 = vmax.f32 %v594, 0.0
        %v597 = vmax.f32 %v595, 0.0
        %598 = vst [vmem:[%s300] sm:$0xff] %v596
        %599 = vst [vmem:[%s300 + $0x8] sm:$0xff] %v597
      $region60: #{decoder_forward.7} parent=43 // pred_fallthru
        _
      %s600 = smul.u32 %s22, %s21
      %p601 = scmp.lt.s32.totalorder %s600, 0
      %s602 = scalar_select %p601, %s600, 0
      %s603 = smul.addr %s602, 8
      %s604 = scalar_lea.vmem %s6, %s603
      // Predicated region
      $region61: #{decoder_forward.7} parent=43 // pred_check
        %p605 = pneg %p191
      $region62: #{decoder_forward.7} parent=43 // pred_check_branch
        %607 = sbr.rel (%p605) target = $region64
      $region63: #{decoder_forward.7} parent=43 // pred_region
        %s608 = smul.u32 %s22, %s21
      $region64: #{decoder_forward.7} parent=43 // pred_fallthru
        _
    $region44: #{decoder_forward.7} parent=5 // pred_fallthru
      _
    %p609 = scmp.le.s32.totalorder 2, %s12
    // Predicated region
    $region65: #{decoder_forward.7} parent=5 // pred_check
      %p610 = pneg %p609
    $region66: #{decoder_forward.7} parent=5 // pred_check_branch
      %612 = sbr.rel (%p610) target = $region68
    $region67: #{decoder_forward.7} parent=5 // pred_region
      %s613 = ssub.s32 %s12, 2
      // Predicated region
      $region69: #{decoder_forward.7} parent=67 // pred_check
        %p614 = pneg %p197
      $region70: #{decoder_forward.7} parent=67 // pred_check_branch
        %616 = sbr.rel (%p614) target = $region72
      $region71: #{decoder_forward.7} parent=67 // pred_region
        %s617 = smul.u32 %s24, %s23
        %p618 = scmp.lt.s32.totalorder %s617, 0
        %s619 = scalar_select %p618, %s617, 0
        %s620 = smul.addr %s619, 8
        %s621 = scalar_lea.vmem %s6, %s620
      $region72: #{decoder_forward.7} parent=67 // pred_fallthru
        _
    $region68: #{decoder_forward.7} parent=5 // pred_fallthru
      _
  $region6: #{decoder_forward.7} parent=0 // loop_footer
    %s16 = sadd.s32 1, %s12
  $region7: #{decoder_forward.7} parent=0 // loop_footer_branch
    %11 = sbr.rel target = $region3
  $region8: #{decoder_forward.7} parent=0 // loop_exit
    _

// kernel: decoder_forward.8
$region0: #{decoder_forward.8}
  #allocation0 [shape = 'u32[]', space=smem, size = 0x4, offset = 0x4, fixed_abs, tag = 'smem constant byte address 0x4 - core index']
  #allocation1 [shape = 'u32[72,128]{1,0:T(1,128)}', space=vmem, size = 0x9000, scoped, tag = 'internal scratch']
  #allocation2 [shape = 'f32[32,128]{1,0:T(8,128)}', space=vmem, size = 0x4000, scoped, tag = 'scratch operand']
  #allocation3 [shape = 'f32[8,1]{1,0:T(8,128)}', space=vmem, size = 0x1000, scoped, tag = 'scratch operand']
  #allocation4 [shape = 'f32[8,1]{1,0:T(8,128)}', space=vmem, size = 0x1000, scoped, tag = 'scratch operand']
  %s0 = inlined_call_operand.vmem [shape: bf16[144,128], index: 0, kind: input, shape index: {}]
  %s1 = inlined_call_operand.vmem [shape: bf16[32,144], index: 1, kind: input, shape index: {}]
  %s2 = inlined_call_operand.vmem [shape: f32[32,1], index: 2, kind: input, shape index: {}]
  %s3 = inlined_call_operand.vmem [shape: f32[8,1], index: 3, kind: input, shape index: {}]
  %s4 = inlined_call_operand.vmem [shape: f32[8,1], index: 4, kind: input, shape index: {}]
  %s5 = inlined_call_operand.vmem [shape: f32[32,128], index: 5, kind: output, shape index: {}]
  %s6 = sld [smem:[#allocation0]]
  $region69: #{decoder_forward.8} parent=0
    _
  %s8 = ssub.s32 1, %s6
  %s9 = scalar_select 0, %s8, %s6
  loop: start=0, step=1, limit=4
  $region2: #{decoder_forward.8} parent=0 // loop_pre_header
    _
  $region3: #{decoder_forward.8} parent=0 // loop_header
    %s11 = sphi 0, %s15
    %p12 = scmp.ge.s32.totalorder %s11, 4
    %s18 = sphi 0, %s30
    %s19 = sphi 0, %s26
    %s20 = sphi 0, %s18
    %s21 = sphi 0, %s19
    %s22 = sphi 0, %s20
    %s23 = sphi 0, %s21
    %s37 = sphi 0, %s39
    %s40 = sphi 0, %s37
    %s41 = sphi 0, %s40
    %s57 = sphi 0, %s41
    %s61 = sphi 0, %s61
    %s63 = sphi 0, %s61
    %s64 = sphi 0, %s63
    %s78 = sphi 0, %s64
    %s82 = sphi 0, %s82
    %s84 = sphi 0, %s82
    %s85 = sphi 0, %s84
    %s99 = sphi 0, %s85
    %s103 = sphi 0, %s103
    %s105 = sphi 0, %s103
    %s106 = sphi 0, %s105
    %s120 = sphi 0, %s106
    %s124 = sphi 0, %s124
    %s126 = sphi 0, %s124
    %s127 = sphi 0, %s126
    %s141 = sphi 0, %s127
    %s149 = sphi 0, %s151
    %s152 = sphi 0, %s149
    %s153 = sphi 0, %s152
    %s169 = sphi 0, %s153
  $region4: #{decoder_forward.8} parent=0 // loop_header_branch
    %14 = sbr.rel (%p12) target = $region8
  $region5: #{decoder_forward.8} parent=0 // loop_body
    %s16 = ssub.s32 %s11, 1
    %s17 = ssub.s32 %s11, 2
    %s24 = sadd.s32 1, %s19
    %p25 = scmp.ge.s32.totalorder %s24, 1
    %s26 = scalar_select %p25, 0, %s24
    %s27 = sadd.s32 1, %s18
    %s28 = scalar_select %p25, %s27, %s18
    %p29 = scmp.ge.s32.totalorder %s28, 2
    %s30 = scalar_select %p29, 0, %s28
    %s31 = ssub.s32 1, %s18
    %s32 = smul.u32 %s19, %s31
    %s33 = ssub.s32 1, %s30
    %s34 = smul.u32 %s26, %s33
    %s35 = ssub.s32 %s32, %s34
    %p36 = scmp.eq.s32.totalorder %s35, 0
    %s38 = sadd.s32 %s37, 1
    %s39 = scalar_select %p36, %s37, %s38
    %p42 = pneg %p36
    %p43 = scmp.eq.s32.totalorder %s11, 1
    %p44 = por %p42, %p43
    %p45 = scmp.ne.s32.totalorder %s37, %s40
    %p46 = scmp.eq.s32.totalorder %s11, 0
    %p47 = por %p45, %p46
    %p48 = scmp.ne.s32.totalorder %s37, %s40
    %p49 = scmp.eq.s32.totalorder %s16, 1
    %p50 = por %p48, %p49
    %p51 = scmp.ne.s32.totalorder %s40, %s41
    %p52 = scmp.eq.s32.totalorder %s16, 0
    %p53 = por %p51, %p52
    %p54 = scmp.ne.s32.totalorder %s40, %s41
    %p55 = scmp.eq.s32.totalorder %s17, 1
    %p56 = por %p54, %p55
    %p58 = scmp.ne.s32.totalorder %s41, %s57
    %p59 = scmp.eq.s32.totalorder %s17, 0
    %p60 = por %p58, %p59
    %s62 = sadd.s32 %s61, 1
    %p65 = scmp.eq.s32.totalorder %s11, 1
    %p66 = scmp.ne.s32.totalorder %s61, %s63
    %p67 = scmp.eq.s32.totalorder %s11, 0
    %p68 = por %p66, %p67
    %p69 = scmp.ne.s32.totalorder %s61, %s63
    %p70 = scmp.eq.s32.totalorder %s16, 1
    %p71 = por %p69, %p70
    %p72 = scmp.ne.s32.totalorder %s63, %s64
    %p73 = scmp.eq.s32.totalorder %s16, 0
    %p74 = por %p72, %p73
    %p75 = scmp.ne.s32.totalorder %s63, %s64
    %p76 = scmp.eq.s32.totalorder %s17, 1
    %p77 = por %p75, %p76
    %p79 = scmp.ne.s32.totalorder %s64, %s78
    %p80 = scmp.eq.s32.totalorder %s17, 0
    %p81 = por %p79, %p80
    %s83 = sadd.s32 %s82, 1
    %p86 = scmp.eq.s32.totalorder %s11, 1
    %p87 = scmp.ne.s32.totalorder %s82, %s84
    %p88 = scmp.eq.s32.totalorder %s11, 0
    %p89 = por %p87, %p88
    %p90 = scmp.ne.s32.totalorder %s82, %s84
    %p91 = scmp.eq.s32.totalorder %s16, 1
    %p92 = por %p90, %p91
    %p93 = scmp.ne.s32.totalorder %s84, %s85
    %p94 = scmp.eq.s32.totalorder %s16, 0
    %p95 = por %p93, %p94
    %p96 = scmp.ne.s32.totalorder %s84, %s85
    %p97 = scmp.eq.s32.totalorder %s17, 1
    %p98 = por %p96, %p97
    %p100 = scmp.ne.s32.totalorder %s85, %s99
    %p101 = scmp.eq.s32.totalorder %s17, 0
    %p102 = por %p100, %p101
    %s104 = sadd.s32 %s103, 1
    %p107 = scmp.eq.s32.totalorder %s11, 1
    %p108 = scmp.ne.s32.totalorder %s103, %s105
    %p109 = scmp.eq.s32.totalorder %s11, 0
    %p110 = por %p108, %p109
    %p111 = scmp.ne.s32.totalorder %s103, %s105
    %p112 = scmp.eq.s32.totalorder %s16, 1
    %p113 = por %p111, %p112
    %p114 = scmp.ne.s32.totalorder %s105, %s106
    %p115 = scmp.eq.s32.totalorder %s16, 0
    %p116 = por %p114, %p115
    %p117 = scmp.ne.s32.totalorder %s105, %s106
    %p118 = scmp.eq.s32.totalorder %s17, 1
    %p119 = por %p117, %p118
    %p121 = scmp.ne.s32.totalorder %s106, %s120
    %p122 = scmp.eq.s32.totalorder %s17, 0
    %p123 = por %p121, %p122
    %s125 = sadd.s32 %s124, 1
    %p128 = scmp.eq.s32.totalorder %s11, 1
    %p129 = scmp.ne.s32.totalorder %s124, %s126
    %p130 = scmp.eq.s32.totalorder %s11, 0
    %p131 = por %p129, %p130
    %p132 = scmp.ne.s32.totalorder %s124, %s126
    %p133 = scmp.eq.s32.totalorder %s16, 1
    %p134 = por %p132, %p133
    %p135 = scmp.ne.s32.totalorder %s126, %s127
    %p136 = scmp.eq.s32.totalorder %s16, 0
    %p137 = por %p135, %p136
    %p138 = scmp.ne.s32.totalorder %s126, %s127
    %p139 = scmp.eq.s32.totalorder %s17, 1
    %p140 = por %p138, %p139
    %p142 = scmp.ne.s32.totalorder %s127, %s141
    %p143 = scmp.eq.s32.totalorder %s17, 0
    %p144 = por %p142, %p143
    %s145 = smul.u32 %s19, %s18
    %s146 = smul.u32 %s26, %s30
    %s147 = ssub.s32 %s145, %s146
    %p148 = scmp.eq.s32.totalorder %s147, 0
    %s150 = sadd.s32 %s149, 1
    %s151 = scalar_select %p148, %s149, %s150
    %p154 = pneg %p148
    %p155 = scmp.eq.s32.totalorder %s11, 1
    %p156 = por %p154, %p155
    %p157 = scmp.ne.s32.totalorder %s149, %s152
    %p158 = scmp.eq.s32.totalorder %s11, 0
    %p159 = por %p157, %p158
    %p160 = scmp.ne.s32.totalorder %s149, %s152
    %p161 = scmp.eq.s32.totalorder %s16, 1
    %p162 = por %p160, %p161
    %p163 = scmp.ne.s32.totalorder %s152, %s153
    %p164 = scmp.eq.s32.totalorder %s16, 0
    %p165 = por %p163, %p164
    %p166 = scmp.ne.s32.totalorder %s152, %s153
    %p167 = scmp.eq.s32.totalorder %s17, 1
    %p168 = por %p166, %p167
    %p170 = scmp.ne.s32.totalorder %s153, %s169
    %p171 = scmp.eq.s32.totalorder %s17, 0
    %p172 = por %p170, %p171
    %p173 = scmp.le.s32.totalorder 1, %s11
    %p174 = scmp.lt.s32.totalorder %s11, 3
    %p175 = pnand %p173, %p174
    %p176 = pneg %p175
    // Predicated region
    $region9: #{decoder_forward.8} parent=5 // pred_check
      _
    $region10: #{decoder_forward.8} parent=5 // pred_check_branch
      %178 = sbr.rel (%p175) target = $region12
    $region11: #{decoder_forward.8} parent=5 // pred_region
      %s179 = ssub.s32 %s11, 1
      // Predicated region
      $region13: #{decoder_forward.8} parent=11 // pred_check
        %p180 = pneg %p74
      $region14: #{decoder_forward.8} parent=11 // pred_check_branch
        %182 = sbr.rel (%p180) target = $region16
      $region15: #{decoder_forward.8} parent=11 // pred_region
        _
      $region16: #{decoder_forward.8} parent=11 // pred_fallthru
        _
      // Predicated region
      $region17: #{decoder_forward.8} parent=11 // pred_check
        %p183 = pneg %p95
      $region18: #{decoder_forward.8} parent=11 // pred_check_branch
        %185 = sbr.rel (%p183) target = $region20
      $region19: #{decoder_forward.8} parent=11 // pred_region
        _
      $region20: #{decoder_forward.8} parent=11 // pred_fallthru
        _
      // Predicated region
      $region21: #{decoder_forward.8} parent=11 // pred_check
        %p186 = pneg %p116
      $region22: #{decoder_forward.8} parent=11 // pred_check_branch
        %188 = sbr.rel (%p186) target = $region24
      $region23: #{decoder_forward.8} parent=11 // pred_region
        _
      $region24: #{decoder_forward.8} parent=11 // pred_fallthru
        _
      // Predicated region
      $region25: #{decoder_forward.8} parent=11 // pred_check
        %p189 = pneg %p137
      $region26: #{decoder_forward.8} parent=11 // pred_check_branch
        %191 = sbr.rel (%p189) target = $region28
      $region27: #{decoder_forward.8} parent=11 // pred_region
        _
      $region28: #{decoder_forward.8} parent=11 // pred_fallthru
        _
    $region12: #{decoder_forward.8} parent=5 // pred_fallthru
      _
    %p192 = scmp.lt.s32.totalorder %s11, 2
    // Predicated region
    $region29: #{decoder_forward.8} parent=5 // pred_check
      %p193 = pneg %p192
    $region30: #{decoder_forward.8} parent=5 // pred_check_branch
      %195 = sbr.rel (%p193) target = $region32
    $region31: #{decoder_forward.8} parent=5 // pred_region
      // Predicated region
      $region33: #{decoder_forward.8} parent=31 // pred_check
        %p196 = pneg %p47
      $region34: #{decoder_forward.8} parent=31 // pred_check_branch
        %198 = sbr.rel (%p196) target = $region36
      $region35: #{decoder_forward.8} parent=31 // pred_region
        %s199 = ssub.s32 1, %s18
        %s200 = smul.u32 %s19, %s199
        %p201 = scmp.lt.s32.totalorder %s200, 0
        %s202 = scalar_select %p201, %s200, 0
        %s203 = smul.addr %s202, 4
        %s204 = scalar_lea.vmem %s0, %s203
        %s205 = ssub.s32 1, %s18
        %s206 = smul.u32 %s19, %s205
      $region36: #{decoder_forward.8} parent=31 // pred_fallthru
        _
    $region32: #{decoder_forward.8} parent=5 // pred_fallthru
      _
    %p207 = scmp.le.s32.totalorder 1, %s11
    %p208 = scmp.lt.s32.totalorder %s11, 3
    %p209 = pnand %p207, %p208
    %p210 = pneg %p209
    // Predicated region
    $region37: #{decoder_forward.8} parent=5 // pred_check
      _
    $region38: #{decoder_forward.8} parent=5 // pred_check_branch
      %212 = sbr.rel (%p209) target = $region40
    $region39: #{decoder_forward.8} parent=5 // pred_region
      %s213 = ssub.s32 %s11, 1
      %s214 = ssub.s32 1, %s20
      %s215 = smul.u32 %s21, %s214
      %p216 = scmp.lt.s32.totalorder %s215, 0
      %s217 = scalar_select %p216, %s215, 0
      %s218 = smul.addr %s217, 4
      %s219 = scalar_lea.vmem %s0, %s218
      %p220 = pneg %p53
      %p221 = pneg %p50
      %p222 = pneg %p74
      %p223 = pneg %p71
      %p224 = pneg %p95
      %p225 = pneg %p92
      %p226 = pneg %p116
      %p227 = pneg %p113
      %p228 = pneg %p137
      %p229 = pneg %p134
      %p230 = pneg %p165
      %p231 = pneg %p162
      %s232 = smul.u32 %s21, %s20
      %p233 = scmp.lt.s32.totalorder %s232, 0
      %s234 = scalar_select %p233, %s232, 0
      %s235 = smul.addr %s234, 8
      %s236 = scalar_lea.vmem %s5, %s235
      %s237 = ssub.s32 1, %s20
      %s238 = smul.u32 %s21, %s237
      %p239 = scmp.lt.s32.totalorder %s238, 0
      %s240 = scalar_select %p239, %s238, 0
      %s241 = smul.addr %s240, 4
      %s242 = scalar_lea.vmem %s0, %s241
      %s243 = ssub.s32 1, %s20
      %s244 = smul.u32 %s21, %s243
      %s245 = smul.u32 %s21, %s20
      %p246 = scmp.lt.s32.totalorder %s245, 0
      %s247 = scalar_select %p246, %s245, 0
      %s248 = smul.addr %s247, 8
      %s249 = scalar_lea.vmem %s5, %s248
      %s250 = smul.u32 %s21, %s20
      %s252 = smul.u32 %s21, 128
      %p253 = scmp.eq.s32.totalorder %s20, 0
      // Predicated region
      $region41: #{decoder_forward.8} parent=39 // pred_check
        %p254 = pneg %p253
      $region42: #{decoder_forward.8} parent=39 // pred_check_branch
        %256 = sbr.rel (%p254) target = $region44
      $region43: #{decoder_forward.8} parent=39 // pred_region
        %v257 = vld [vmem:[%s1] sm:$0xff]
        %v258 = vld [vmem:[%s1 + $0x8] sm:$0xff]
        %v259 = vld [vmem:[%s1 + $0x10] sm:$0xff]
        %v260 = vld [vmem:[%s1 + $0x18] sm:$0xff]
        %v261 = vld [vmem:[%s242] sm:$0xf]
        %v262 = vld [vmem:[%s242 + $0x4] sm:$0xf]
        %v263 = vld [vmem:[%s242 + $0x8] sm:$0xf]
        %v264 = vld [vmem:[%s242 + $0xc] sm:$0xf]
        %v265 = vld [vmem:[%s242 + $0x10] sm:$0xf]
        %v266 = vld [vmem:[%s242 + $0x14] sm:$0xf]
        %v267 = vld [vmem:[%s242 + $0x18] sm:$0xf]
        %v268 = vld [vmem:[%s242 + $0x1c] sm:$0xf]
        %v269 = vld [vmem:[%s242 + $0x20] sm:$0xf]
        %v270 = vld [vmem:[%s242 + $0x24] sm:$0xf]
        %v271 = vld [vmem:[%s242 + $0x28] sm:$0xf]
        %v272 = vld [vmem:[%s242 + $0x2c] sm:$0xf]
        %v273 = vld [vmem:[%s242 + $0x30] sm:$0xf]
        %v274 = vld [vmem:[%s242 + $0x34] sm:$0xf]
        %v275 = vld [vmem:[%s242 + $0x38] sm:$0xf]
        %v276 = vld [vmem:[%s242 + $0x3c] sm:$0xf]
        %v277 = vld [vmem:[%s242 + $0x40] sm:$0xf]
        %v278 = vld [vmem:[%s242 + $0x44] sm:$0xf]
        %v279 = vld [vmem:[%s2] sm:$0xff]
        %v280 = vld [vmem:[%s2 + $0x8] sm:$0xff]
        %v281 = vld [vmem:[%s2 + $0x10] sm:$0xff]
        %v282 = vld [vmem:[%s2 + $0x18] sm:$0xff]
        %284 = vset.pattern.permute.xlu0 0
        %285 = vperm.xlu0 %284, %v279
        %v286 = vpop.permute.xlu0 %285
        %289 = vset.pattern.permute.xlu0 0
        %290 = vperm.xlu0 %289, %v280
        %v291 = vpop.permute.xlu0 %290
        %294 = vset.pattern.permute.xlu0 0
        %295 = vperm.xlu0 %294, %v281
        %v296 = vpop.permute.xlu0 %295
        %299 = vset.pattern.permute.xlu0 0
        %300 = vperm.xlu0 %299, %v282
        %v301 = vpop.permute.xlu0 %300
        %v307 = vunpack.c.l.b16 %v257
        %v308 = vunpack.c.h.b16 %v257
        %v309 = vunpack.c.l.b16 %v258
        %v310 = vunpack.c.h.b16 %v258
        %v311 = vunpack.c.l.b16 %v259
        %v312 = vunpack.c.h.b16 %v259
        %v313 = vunpack.c.l.b16 %v260
        %v314 = vunpack.c.h.b16 %v260
        %v315 = vpack.c.b16 %v309, %v307
        %v316 = vpack.c.b16 %v310, %v308
        %v317 = vpack.c.b16 %v313, %v311
        %v318 = vpack.c.b16 %v314, %v312
        %v339 = vunpack.c.l.b16 %v261
        %v340 = vunpack.c.l.b16 %v262
        %v341 = vunpack.c.l.b16 %v263
        %v342 = vunpack.c.l.b16 %v264
        %v343 = vunpack.c.l.b16 %v265
        %v344 = vunpack.c.l.b16 %v266
        %v345 = vunpack.c.l.b16 %v267
        %v346 = vunpack.c.l.b16 %v268
        %v347 = vunpack.c.l.b16 %v269
        %v348 = vunpack.c.l.b16 %v270
        %v349 = vunpack.c.l.b16 %v271
        %v350 = vunpack.c.l.b16 %v272
        %v351 = vunpack.c.l.b16 %v273
        %v352 = vunpack.c.l.b16 %v274
        %v353 = vunpack.c.l.b16 %v275
        %v354 = vunpack.c.l.b16 %v276
        %v355 = vunpack.c.l.b16 %v277
        %v356 = vunpack.c.l.b16 %v278
        %v357 = vpack.c.b16 %v340, %v339
        %v358 = vpack.c.b16 %v342, %v341
        %v359 = vpack.c.b16 %v344, %v343
        %v360 = vpack.c.b16 %v346, %v345
        %v361 = vpack.c.b16 %v348, %v347
        %v362 = vpack.c.b16 %v350, %v349
        %v363 = vpack.c.b16 %v352, %v351
        %v364 = vpack.c.b16 %v354, %v353
        %v365 = vpack.c.b16 %v356, %v355
        %vm375 = vcmask 130048
        %v377 = vsel %vm375, %v316, 0
        %v380 = vsel %vm375, %v318, 0
        %382 = vmatpush.bf16.msra.mxu0 %v364
        %383 = vmatpush.bf16.msra.mxu0 %v363
        %384 = vmatpush.bf16.msra.mxu0 %v362
        %385 = vmatpush.bf16.msra.mxu0 %v361
        %386 = vmatpush.bf16.msra.mxu0 %v360
        %387 = vmatpush.bf16.msra.mxu0 %v359
        %388 = vmatpush.bf16.msra.mxu0 %v358
        %389 = vmatpush.bf16.msra.mxu0 %v357
        %390 = vmatmul.bf16.gmra.mxu0 %v315
        %v391 = vpop.f32.mrf.mxu0
        %v392 = vadd.f32 %v286, %v391
        %v393 = vpop.f32.mrf.mxu0
        %v394 = vadd.f32 %v291, %v393
        %395 = vmatmul.bf16.gmra.mxu0 %v317
        %v396 = vpop.f32.mrf.mxu0
        %v397 = vadd.f32 %v296, %v396
        %v398 = vpop.f32.mrf.mxu0
        %v399 = vadd.f32 %v301, %v398
        %400 = vdwg.mxu0
        %401 = vmatpush.bf16.msra.mxu0 0
        %402 = vmatpush.bf16.msra.mxu0 0
        %403 = vmatpush.bf16.msra.mxu0 0
        %404 = vmatpush.bf16.msra.mxu0 0
        %405 = vmatpush.bf16.msra.mxu0 0
        %406 = vmatpush.bf16.msra.mxu0 0
        %407 = vmatpush.bf16.msra.mxu0 0
        %408 = vmatpush.bf16.msra.mxu0 %v365
        %409 = vmatmul.bf16.gmra.mxu0 %v377
        %v410 = vpop.f32.mrf.mxu0
        %v411 = vadd.f32 %v392, %v410
        %v412 = vpop.f32.mrf.mxu0
        %v413 = vadd.f32 %v394, %v412
        %414 = vmatmul.bf16.gmra.mxu0 %v380
        %v415 = vpop.f32.mrf.mxu0
        %v416 = vadd.f32 %v397, %v415
        %v417 = vpop.f32.mrf.mxu0
        %v418 = vadd.f32 %v399, %v417
        %419 = vdwg.mxu0
        %s420 = sshra.s32 %s252, 7
        %s421 = sand.u32 %s252, 127
        %s422 = scalar_lea.vmem [#allocation2], %s420
        %423 = vst [vmem:[%s422] sm:$0xff] %v411
        %424 = vst [vmem:[%s422 + $0x8] sm:$0xff] %v413
        %425 = vst [vmem:[%s422 + $0x10] sm:$0xff] %v416
        %426 = vst [vmem:[%s422 + $0x18] sm:$0xff] %v418
        %p427 = scmp.eq.s32.totalorder %s21, 0
        // Predicated region
        $region45: #{decoder_forward.8} parent=43 // pred_check
          %p428 = pneg %p427
        $region46: #{decoder_forward.8} parent=43 // pred_check_branch
          %430 = sbr.rel (%p428) target = $region48
        $region47: #{decoder_forward.8} parent=43 // pred_region
          %vm431 = vcmask 7168
          %432 = vst.msk [vmem:[#allocation3] sm:$0xff] %vm431, 0.0
          %433 = vst.msk [vmem:[#allocation4] sm:$0xff] %vm431, 0.0
          %v434 = vlaneseq
          %v435 = vand.u32 %v434, 127
          %v436 = vstv %s252
          %v437 = vadd.s32 %v435, %v436
          %vm438 = vcmp.lt.s32.totalorder %v437, 32
          %v439 = vsel %vm438, %v411, 0.0
          %v440 = vsel %vm438, %v413, 0.0
          %v441 = vsel %vm438, %v416, 0.0
          %v442 = vsel %vm438, %v418, 0.0
          %443 = vadd.xlane.f32.xlu0 %v439
          %v444 = vpop.xlane.xlu0 %443
          %v445 = vadd.f32 %v444, 0.0
          %v446 = vmul.f32 %v439, %v439
          %447 = vadd.xlane.f32.xlu0 %v446
          %v448 = vpop.xlane.xlu0 %447
          %v449 = vadd.f32 %v448, 0.0
          %450 = vadd.xlane.f32.xlu0 %v440
          %v451 = vpop.xlane.xlu0 %450
          %v452 = vadd.f32 %v445, %v451
          %v453 = vmul.f32 %v440, %v440
          %454 = vadd.xlane.f32.xlu0 %v453
          %v455 = vpop.xlane.xlu0 %454
          %v456 = vadd.f32 %v449, %v455
          %457 = vadd.xlane.f32.xlu0 %v441
          %v458 = vpop.xlane.xlu0 %457
          %v459 = vadd.f32 %v452, %v458
          %v460 = vmul.f32 %v441, %v441
          %461 = vadd.xlane.f32.xlu0 %v460
          %v462 = vpop.xlane.xlu0 %461
          %v463 = vadd.f32 %v456, %v462
          %464 = vadd.xlane.f32.xlu0 %v442
          %v465 = vpop.xlane.xlu0 %464
          %v466 = vadd.f32 %v459, %v465
          %v467 = vmul.f32 %v442, %v442
          %468 = vadd.xlane.f32.xlu0 %v467
          %v469 = vpop.xlane.xlu0 %468
          %v470 = vadd.f32 %v463, %v469
          %v471 = vld [vmem:[#allocation3] sm:$0xff]
          %v472 = vadd.f32 %v471, %v466
          %473 = vst.msk [vmem:[#allocation3] sm:$0xff] %vm431, %v472
          %v474 = vld [vmem:[#allocation4] sm:$0xff]
          %v475 = vadd.f32 %v474, %v470
          %476 = vst.msk [vmem:[#allocation4] sm:$0xff] %vm431, %v475
        $region48: #{decoder_forward.8} parent=43 // pred_fallthru
          _
        %p477 = scmp.ne.s32.totalorder %s21, 0
        // Predicated region
        $region49: #{decoder_forward.8} parent=43 // pred_check
          %p478 = pneg %p477
        $region50: #{decoder_forward.8} parent=43 // pred_check_branch
          %480 = sbr.rel (%p478) target = $region52
        $region51: #{decoder_forward.8} parent=43 // pred_region
          %481 = vadd.xlane.f32.xlu0 %v411
          %v482 = vpop.xlane.xlu0 %481
          %v483 = vadd.f32 %v482, 0.0
          %v484 = vmul.f32 %v411, %v411
          %485 = vadd.xlane.f32.xlu0 %v484
          %v486 = vpop.xlane.xlu0 %485
          %v487 = vadd.f32 %v486, 0.0
          %488 = vadd.xlane.f32.xlu0 %v413
          %v489 = vpop.xlane.xlu0 %488
          %v490 = vadd.f32 %v483, %v489
          %v491 = vmul.f32 %v413, %v413
          %492 = vadd.xlane.f32.xlu0 %v491
          %v493 = vpop.xlane.xlu0 %492
          %v494 = vadd.f32 %v487, %v493
          %495 = vadd.xlane.f32.xlu0 %v416
          %v496 = vpop.xlane.xlu0 %495
          %v497 = vadd.f32 %v490, %v496
          %v498 = vmul.f32 %v416, %v416
          %499 = vadd.xlane.f32.xlu0 %v498
          %v500 = vpop.xlane.xlu0 %499
          %v501 = vadd.f32 %v494, %v500
          %502 = vadd.xlane.f32.xlu0 %v418
          %v503 = vpop.xlane.xlu0 %502
          %v504 = vadd.f32 %v497, %v503
          %v505 = vmul.f32 %v418, %v418
          %506 = vadd.xlane.f32.xlu0 %v505
          %v507 = vpop.xlane.xlu0 %506
          %v508 = vadd.f32 %v501, %v507
          %v509 = vld [vmem:[#allocation3] sm:$0xff]
          %v510 = vadd.f32 %v509, %v504
          %vm511 = vcmask 7168
          %512 = vst.msk [vmem:[#allocation3] sm:$0xff] %vm511, %v510
          %v513 = vld [vmem:[#allocation4] sm:$0xff]
          %v514 = vadd.f32 %v513, %v508
          %515 = vst.msk [vmem:[#allocation4] sm:$0xff] %vm511, %v514
        $region52: #{decoder_forward.8} parent=43 // pred_fallthru
          _
      $region44: #{decoder_forward.8} parent=39 // pred_fallthru
        _
      %p516 = scmp.eq.s32.totalorder %s20, 1
      // Predicated region
      $region53: #{decoder_forward.8} parent=39 // pred_check
        %p517 = pneg %p516
      $region54: #{decoder_forward.8} parent=39 // pred_check_branch
        %519 = sbr.rel (%p517) target = $region56
      $region55: #{decoder_forward.8} parent=39 // pred_region
        %v520 = vld [vmem:[#allocation3] sm:$0xff]
        %v521 = vmul.f32 %v520, 0.0078125
        %v522 = vld [vmem:[#allocation4] sm:$0xff]
        %v523 = vmul.f32 %v522, 0.0078125
        %v524 = vmul.f32 %v521, %v521
        %v525 = vsub.f32 %v523, %v524
        %v526 = vmax.f32 %v525, 0.0
        %v527 = vadd.f32 %v526, 1e-05
        %v528 = vrsqrt.pop %v527
        %v529 = vmul.f32 %v528, %v527
        %v530 = vmul.f32 %v529, %v528
        %v531 = vmul.f32 0.5, %v530
        %v532 = vsub.f32 1.5, %v531
        %v533 = vmul.f32 %v528, %v532
        %vm534 = vweird.f32 %v527
        %vm535 = vweird.f32 %v528
        %vm536 = vmor %vm534, %vm535
        %v537 = vsel %vm536, %v528, %v533
        %v538 = vld [vmem:[%s3] sm:$0xff]
        %v539 = vmul.f32 %v537, %v538
        %v540 = vld [vmem:[%s4] sm:$0xff]
        %v541 = vmul.f32 %v521, %v539
        %v542 = vsub.f32 %v540, %v541
        %s543 = sshra.s32 %s252, 7
        %s544 = sand.u32 %s252, 127
        %s545 = scalar_lea.vmem [#allocation2], %s543
        %v546 = vld [vmem:[%s545] sm:$0xff]
        %548 = vset.pattern.permute.xlu0 0
        %549 = vperm.xlu0 %548, %v539
        %v550 = vpop.permute.xlu0 %549
        %v552 = vmul.f32 %v546, %v550
        %554 = vset.pattern.permute.xlu0 0
        %555 = vperm.xlu0 %554, %v542
        %v556 = vpop.permute.xlu0 %555
        %v558 = vadd.f32 %v552, %v556
        %v559 = vmax.f32 %v558, 0.0
        %560 = vst [vmem:[%s249] sm:$0xff] %v559
        %v561 = vld [vmem:[%s545 + $0x8] sm:$0xff]
        %v562 = vmul.f32 %v561, %v550
        %v563 = vadd.f32 %v562, %v556
        %v564 = vmax.f32 %v563, 0.0
        %565 = vst [vmem:[%s249 + $0x8] sm:$0xff] %v564
        %v566 = vld [vmem:[%s545 + $0x10] sm:$0xff]
        %v567 = vmul.f32 %v566, %v550
        %v568 = vadd.f32 %v567, %v556
        %v569 = vmax.f32 %v568, 0.0
        %570 = vst [vmem:[%s249 + $0x10] sm:$0xff] %v569
        %v571 = vld [vmem:[%s545 + $0x18] sm:$0xff]
        %v572 = vmul.f32 %v571, %v550
        %v573 = vadd.f32 %v572, %v556
        %v574 = vmax.f32 %v573, 0.0
        %575 = vst [vmem:[%s249 + $0x18] sm:$0xff] %v574
      $region56: #{decoder_forward.8} parent=39 // pred_fallthru
        _
      %s576 = smul.u32 %s21, %s20
      %p577 = scmp.lt.s32.totalorder %s576, 0
      %s578 = scalar_select %p577, %s576, 0
      %s579 = smul.addr %s578, 8
      %s580 = scalar_lea.vmem %s5, %s579
      // Predicated region
      $region57: #{decoder_forward.8} parent=39 // pred_check
        %p581 = pneg %p162
      $region58: #{decoder_forward.8} parent=39 // pred_check_branch
        %583 = sbr.rel (%p581) target = $region60
      $region59: #{decoder_forward.8} parent=39 // pred_region
        %s584 = smul.u32 %s21, %s20
      $region60: #{decoder_forward.8} parent=39 // pred_fallthru
        _
    $region40: #{decoder_forward.8} parent=5 // pred_fallthru
      _
    %p585 = scmp.le.s32.totalorder 2, %s11
    // Predicated region
    $region61: #{decoder_forward.8} parent=5 // pred_check
      %p586 = pneg %p585
    $region62: #{decoder_forward.8} parent=5 // pred_check_branch
      %588 = sbr.rel (%p586) target = $region64
    $region63: #{decoder_forward.8} parent=5 // pred_region
      %s589 = ssub.s32 %s11, 2
      // Predicated region
      $region65: #{decoder_forward.8} parent=63 // pred_check
        %p590 = pneg %p168
      $region66: #{decoder_forward.8} parent=63 // pred_check_branch
        %592 = sbr.rel (%p590) target = $region68
      $region67: #{decoder_forward.8} parent=63 // pred_region
        %s593 = smul.u32 %s23, %s22
        %p594 = scmp.lt.s32.totalorder %s593, 0
        %s595 = scalar_select %p594, %s593, 0
        %s596 = smul.addr %s595, 8
        %s597 = scalar_lea.vmem %s5, %s596
      $region68: #{decoder_forward.8} parent=63 // pred_fallthru
        _
    $region64: #{decoder_forward.8} parent=5 // pred_fallthru
      _
  $region6: #{decoder_forward.8} parent=0 // loop_footer
    %s15 = sadd.s32 1, %s11
  $region7: #{decoder_forward.8} parent=0 // loop_footer_branch
    %10 = sbr.rel target = $region3
  $region8: #{decoder_forward.8} parent=0 // loop_exit
    _

// kernel: decoder_forward.9
$region0: #{decoder_forward.9}
  #allocation0 [shape = 'u32[]', space=smem, size = 0x4, offset = 0x4, fixed_abs, tag = 'smem constant byte address 0x4 - core index']
  #allocation1 [shape = 'u32[72,128]{1,0:T(1,128)}', space=vmem, size = 0x9000, scoped, tag = 'internal scratch']
  %s0 = inlined_call_operand.vmem [shape: bf16[72,128], index: 0, kind: input, shape index: {}]
  %s1 = inlined_call_operand.vmem [shape: bf16[4,72], index: 1, kind: input, shape index: {}]
  %s2 = inlined_call_operand.vmem [shape: f32[4,1], index: 2, kind: input, shape index: {}]
  %s3 = inlined_call_operand.vmem [shape: f32[4,128], index: 3, kind: output, shape index: {}]
  %s4 = sld [smem:[#allocation0]]
  $region22: #{decoder_forward.9} parent=0
    _
  %s6 = ssub.s32 1, %s4
  %s7 = scalar_select 0, %s6, %s4
  // Predicated region
  $region2: #{decoder_forward.9} parent=0 // pred_check
    _
  $region3: #{decoder_forward.9} parent=0 // pred_check_branch
    %9 = sbr.rel (0) target = $region5
  $region4: #{decoder_forward.9} parent=0 // pred_region
    _
  $region5: #{decoder_forward.9} parent=0 // pred_fallthru
    _
  // Predicated region
  $region6: #{decoder_forward.9} parent=0 // pred_check
    _
  $region7: #{decoder_forward.9} parent=0 // pred_check_branch
    %11 = sbr.rel (0) target = $region9
  $region8: #{decoder_forward.9} parent=0 // pred_region
    _
  $region9: #{decoder_forward.9} parent=0 // pred_fallthru
    _
  // Predicated region
  $region10: #{decoder_forward.9} parent=0 // pred_check
    _
  $region11: #{decoder_forward.9} parent=0 // pred_check_branch
    %13 = sbr.rel (0) target = $region13
  $region12: #{decoder_forward.9} parent=0 // pred_region
    _
  $region13: #{decoder_forward.9} parent=0 // pred_fallthru
    _
  %v15 = vld [vmem:[%s1] sm:$0x3]
  %v16 = vld [vmem:[%s0] sm:$0xf]
  %v17 = vld [vmem:[%s0 + $0x4] sm:$0xf]
  %v18 = vld [vmem:[%s0 + $0x8] sm:$0xf]
  %v19 = vld [vmem:[%s0 + $0xc] sm:$0xf]
  %v20 = vld [vmem:[%s0 + $0x10] sm:$0xf]
  %v21 = vld [vmem:[%s0 + $0x14] sm:$0xf]
  %v22 = vld [vmem:[%s0 + $0x18] sm:$0xf]
  %v23 = vld [vmem:[%s0 + $0x1c] sm:$0xf]
  %v24 = vld [vmem:[%s0 + $0x20] sm:$0xf]
  %v25 = vld [vmem:[%s2] sm:$0xf]
  %27 = vset.pattern.permute.xlu0 0
  %28 = vperm.xlu0 %27, %v25
  %v29 = vpop.permute.xlu0 %28
  %v40 = vunpack.c.l.b16 %v16
  %v41 = vunpack.c.l.b16 %v17
  %v42 = vunpack.c.l.b16 %v18
  %v43 = vunpack.c.l.b16 %v19
  %v44 = vunpack.c.l.b16 %v20
  %v45 = vunpack.c.l.b16 %v21
  %v46 = vunpack.c.l.b16 %v22
  %v47 = vunpack.c.l.b16 %v23
  %v48 = vunpack.c.l.b16 %v24
  %v49 = vpack.c.b16 %v41, %v40
  %v50 = vpack.c.b16 %v43, %v42
  %v51 = vpack.c.b16 %v45, %v44
  %v52 = vpack.c.b16 %v47, %v46
  %v53 = vpack.c.b16 %v48, %v48
  %vm58 = vcmask 588800
  %v60 = vsel %vm58, %v15, 0
  %vm62 = vcmask 1043456
  %v64 = vsel %vm62, %v53, 0
  %66 = vmatpush.bf16.msra.mxu0 0
  %67 = vmatpush.bf16.msra.mxu0 0
  %68 = vmatpush.bf16.msra.mxu0 0
  %69 = vmatpush.bf16.msra.mxu0 %v64
  %70 = vmatpush.bf16.msra.mxu0 %v52
  %71 = vmatpush.bf16.msra.mxu0 %v51
  %72 = vmatpush.bf16.msra.mxu0 %v50
  %73 = vmatpush.bf16.msra.mxu0 %v49
  %74 = vmatmul.bf16.gmra.mxu0 %v60
  %v75 = vpop.f32.mrf.mxu0
  %v76 = vadd.f32 %v29, %v75
  %v77 = vpop.f32.mrf.mxu0
  %78 = vdwg.mxu0
  %v79 = vxor.u32 %v76, 2147483648
  %v80 = vmul.f32 %v79, 1.442695
  %v81 = vpow.pop %v80
  %v82 = vadd.f32 %v81, 1.0
  %v83 = vrcp.pop %v82
  %v84 = vmul.f32 %v82, %v83
  %v85 = vsub.f32 1.0, %v84
  %v86 = vmul.f32 %v83, %v85
  %v87 = vadd.f32 %v83, %v86
  %vm88 = vweird.f32 %v82
  %vm89 = vweird.f32 %v83
  %vm90 = vmor %vm88, %vm89
  %v91 = vsel %vm90, %v83, %v87
  %v92 = vand.u32 2147483647, %v82
  %vm93 = vcmp.eq.f32.partialorder %v92, 8.507059e+37
  %v94 = vand.u32 %v82, 2147483648
  %v95 = vor.u32 1.1754944e-38, %v94
  %v96 = vsel %vm93, %v95, %v91
  %v97 = vmul.f32 1.0, %v96
  %98 = vst [vmem:[%s3] sm:$0xf] %v97
  // Predicated region
  $region14: #{decoder_forward.9} parent=0 // pred_check
    _
  $region15: #{decoder_forward.9} parent=0 // pred_check_branch
    %100 = sbr.rel (0) target = $region17
  $region16: #{decoder_forward.9} parent=0 // pred_region
    _
  $region17: #{decoder_forward.9} parent=0 // pred_fallthru
    _
  // Predicated region
  $region18: #{decoder_forward.9} parent=0 // pred_check
    _
  $region19: #{decoder_forward.9} parent=0 // pred_check_branch
    %102 = sbr.rel (0) target = $region21
  $region20: #{decoder_forward.9} parent=0 // pred_region
    _
  $region21: #{decoder_forward.9} parent=0 // pred_fallthru
    _

</llo_original>
